<compile_context>
chip_gen: v5e
topology: v5e:2x2
jax: 0.10.0
libtpu: 0.0.40
codegen_flags: <defaults>
</compile_context>

<pallas_src>
import functools

import jax
import jax.numpy as jnp
from jax.experimental import pallas as pl
from jax.experimental.pallas import tpu as pltpu

H = 16  # hidden_features of the coupling nets (default flow_kwgs)

# packed-parameter layout (per neuron, along the lane axis)
W0_OFF = 0
B0_OFF = 4 * H
W1_OFF = 8 * H
B1_OFF = 12 * H          # 4 scalars (one per net)
AS_OFF = B1_OFF + 4      # a00, a01, a10, a11
TR_OFF = AS_OFF + 4      # tx, ty
PDIM = TR_OFF + 2        # 202


def coord_transform_kernel(coords_ref, params_ref, out_ref):
    # coords_ref: (2, Nc, C) with Nc in {1, Nb}
    # params_ref: (Nb, PDIM)
    # out_ref:    (2, Nb, C)
    nb = out_ref.shape[1]
    c = out_ref.shape[2]

    def col(j):
        # per-neuron scalar column, broadcast along lanes when used
        return params_ref[:, j:j + 1]                     # (Nb, 1)

    def mlp(x, k):
        # per-neuron LinearPerDim(1->H) -> ReLU -> LinearPerDim(H->1),
        # H statically unrolled; every op is a dense (Nb, C) VPU op.
        acc = jnp.zeros((nb, c), dtype=jnp.float32)
        for h in range(H):
            pre = x * col(W0_OFF + k * H + h) + col(B0_OFF + k * H + h)
            acc = acc + jnp.maximum(pre, 0.0) * col(W1_OFF + k * H + h)
        return acc + col(B1_OFF + k)                      # (Nb, C)

    x1 = coords_ref[0]                                    # (Nc, C)
    x2 = coords_ref[1]                                    # (Nc, C)

    # --- RealNVP coupling layer 0 (untouched_half='first', affine=True) ---
    s0 = mlp(x1, 0)
    t0 = mlp(x1, 1)
    z1 = x1
    z2 = x2 * jnp.exp(s0) + t0                            # (Nb, C)

    # --- RealNVP coupling layer 1 (untouched_half='second', affine=True) ---
    s1 = mlp(z2, 2)
    t1 = mlp(z2, 3)
    z1 = z1 * jnp.exp(s1) + t1                            # (Nb, C)

    # --- AffineTransform: out[n,c,a] = sum_b As[n,a,b] * z[n,c,b] + tr[n,a] ---
    a00 = col(AS_OFF + 0)
    a01 = col(AS_OFF + 1)
    a10 = col(AS_OFF + 2)
    a11 = col(AS_OFF + 3)
    tx = col(TR_OFF + 0)
    ty = col(TR_OFF + 1)
    out_ref[0] = a00 * z1 + a01 * z2 + tx
    out_ref[1] = a10 * z1 + a11 * z2 + ty


def _choose_block(n):
    """Pick neurons-per-step Nb (multiple of 8) and padded N."""
    n8 = ((n + 7) // 8) * 8
    nb = min(n8, 128)
    if n8 > 8 and n8 // nb < 2:
        # keep the neuron grid at least 2-way parallel (v7x has 2 TCs)
        nb = max(8, ((n8 // 2 + 7) // 8) * 8)
    n_pad = ((n8 + nb - 1) // nb) * nb
    return nb, n_pad


def _pack_params(params, n_pad):
    n = params["As"].shape[0]
    packed = jnp.concatenate(
        [
            params["w0"].reshape(n, 4 * H),
            params["b0"].reshape(n, 4 * H),
            params["w1"].reshape(n, 4 * H),
            params["b1"].reshape(n, 4),
            params["As"].reshape(n, 4),
            params["translation"].reshape(n, 2),
        ],
        axis=1,
    ).astype(jnp.float32)
    if n_pad > n:
        packed = jnp.pad(packed, ((0, n_pad - n), (0, 0)))
    return packed


@functools.partial(jax.jit, static_argnames=())
def coordinate_transform(coords, params):
    """coords: (N, C, 2), (1, C, 2) or (C, 2) float32. Returns (N, C, 2)."""
    N = params["As"].shape[0]
    if coords.ndim == 2:
        coords = coords[None]
    n_coords, C, _ = coords.shape
    shared = (n_coords == 1 and N > 1)   # shared grid: keep block resident

    nb, n_pad = _choose_block(N)
    packed = _pack_params(params, n_pad)

    # lane-dense layout: (2, Nc, C) -> x/y rows of length C
    c_t = jnp.transpose(coords.astype(jnp.float32), (2, 0, 1))
    if not shared and n_pad > n_coords:
        c_t = jnp.pad(c_t, ((0, 0), (0, n_pad - n_coords), (0, 0)))

    if shared:
        coords_spec = pl.BlockSpec((2, 1, C), lambda i: (0, 0, 0))
    else:
        coords_spec = pl.BlockSpec((2, nb, C), lambda i: (0, i, 0))

    out = pl.pallas_call(
        coord_transform_kernel,
        out_shape=jax.ShapeDtypeStruct((2, n_pad, C), jnp.float32),
        grid_spec=pltpu.PrefetchScalarGridSpec(
            num_scalar_prefetch=0,
            grid=(n_pad // nb,),
            in_specs=[
                coords_spec,                                    # coords (2, *, C)
                pl.BlockSpec((nb, PDIM), lambda i: (i, 0)),     # packed params
            ],
            out_specs=pl.BlockSpec((2, nb, C), lambda i: (0, i, 0)),
        ),
        compiler_params=pltpu.CompilerParams(
            dimension_semantics=("parallel",)),
    )(c_t, packed)

    return jnp.transpose(out[:, :N, :], (1, 2, 0))   # (N, C, 2)


def make_params(key, n_neurons, hidden=H):
    """Deterministic synthetic parameters matching the module's shapes.

    Note: init_identity (zeroed final coupling layers) is NOT applied so the
    warp path produces non-trivial compute.  Noise parameters for the
    stochastic path are unused (forward is deterministic by default).
    """
    N = n_neurons
    ks = jax.random.split(key, 12)

    # --- AffineTransform parameters ---
    angles = 0.3 * jax.random.normal(ks[0], (N,), dtype=jnp.float32)
    scalings = 1.0 + 0.1 * jax.random.normal(ks[1], (N, 2), dtype=jnp.float32)
    shears = 0.1 * jax.random.normal(ks[2], (N, 2), dtype=jnp.float32)
    translation = 0.1 * jax.random.normal(ks[3], (N, 1, 2), dtype=jnp.float32)

    c, s = jnp.cos(angles), jnp.sin(angles)
    R = jnp.stack([jnp.stack([c, -s], -1), jnp.stack([s, c], -1)], -2)  # (N,2,2)
    S = jax.vmap(jnp.diag)(scalings)                                    # (N,2,2)
    ones = jnp.ones((N,), jnp.float32)
    Sh = jnp.stack([jnp.stack([ones, shears[:, 0]], -1),
                    jnp.stack([shears[:, 1], ones], -1)], -2)           # (N,2,2)
    As = jnp.einsum('nab,nbc,ncd->nad', R, S, Sh)

    # --- coupling-net parameters (layer0.s, layer0.t, layer1.s, layer1.t) ---
    def lin(key, in_dim, out_dim, scale):
        k1, k2 = jax.random.split(key)
        sk = scale / jnp.sqrt(jnp.float32(in_dim))
        w = jax.random.uniform(k1, (N, in_dim, out_dim), jnp.float32, -sk, sk)
        b = jax.random.uniform(k2, (N, 1, out_dim), jnp.float32, -sk, sk)
        return w, b

    nets = []
    for i in range(4):
        w0, b0 = lin(ks[4 + 2 * i], 1, hidden, scale=0.5)
        w1, b1 = lin(ks[5 + 2 * i], hidden, 1, scale=0.5)
        nets.append((w0, b0, w1, b1))

    return {
        "As": As,
        "translation": translation,
        "w0": jnp.stack([n[0].reshape(N, hidden) for n in nets], axis=1),  # (N,4,H)
        "b0": jnp.stack([n[1].reshape(N, hidden) for n in nets], axis=1),  # (N,4,H)
        "w1": jnp.stack([n[2].reshape(N, hidden) for n in nets], axis=1),  # (N,4,H)
        "b1": jnp.stack([n[3].reshape(N, 1) for n in nets], axis=1),       # (N,4,1)
        "nets": nets,
    }


def reference(coords, p):
    """Pure-JAX mirror of the PyTorch forward (deterministic path)."""
    def net(x, w0, b0, w1, b1):
        h = jnp.maximum(jnp.einsum('dni,dio->dno', x, w0) + b0, 0.0)
        return jnp.einsum('dni,dio->dno', h, w1) + b1

    z = coords
    # CouplingLayer 0, untouched_half='first'
    x1, x2 = z[..., 0:1], z[..., 1:2]
    s = net(x1, *p["nets"][0])
    t = net(x1, *p["nets"][1])
    z = jnp.concatenate([x1, x2 * jnp.exp(s) + t], axis=-1)
    # CouplingLayer 1, untouched_half='second'
    x1, x2 = z[..., 0:1], z[..., 1:2]
    s = net(x2, *p["nets"][2])
    t = net(x2, *p["nets"][3])
    z = jnp.concatenate([x1 * jnp.exp(s) + t, x2], axis=-1)
    # AffineTransform
    return jnp.einsum('nab,ncb->nca', p["As"], z) + p["translation"]


if __name__ == "__main__":
    # TODO(synk): stochastic training-mode noise path (randn_like * noise_scale)
    # is not exercised; the PyTorch forward defaults to the deterministic path.
    key = jax.random.PRNGKey(0)
    kc, kp, ks = jax.random.split(key, 3)

    N, C = 64, 128  # n_neurons, n_coords
    params = make_params(kp, N)

    # per-neuron coordinate grids
    coords = jax.random.normal(kc, (N, C, 2), dtype=jnp.float32)
    out = jax.block_until_ready(coordinate_transform(coords, params))
    ref = reference(coords, params)
    assert out.shape == (N, C, 2) and out.dtype == jnp.float32
    assert jnp.allclose(out, ref, rtol=1e-4, atol=1e-4), (
        float(jnp.max(jnp.abs(out - ref))))

    # shared coordinate grid ((C, 2) input, broadcast across neurons)
    coords_shared = jax.random.normal(ks, (C, 2), dtype=jnp.float32)
    out_s = jax.block_until_ready(coordinate_transform(coords_shared, params))
    ref_s = reference(jnp.broadcast_to(coords_shared[None], (N, C, 2)), params)
    assert out_s.shape == (N, C, 2)
    assert jnp.allclose(out_s, ref_s, rtol=1e-4, atol=1e-4), (
        float(jnp.max(jnp.abs(out_s - ref_s))))

    print("KERNEL_OK")
</pallas_src>

<mosaic_0001>
module attributes {stable_mosaic.version = 11 : i64} {
  func.func @coord_transform_kernel(%arg0: i32, %arg1: memref<2x32x128xf32, #tpu.memory_space<vmem>>, %arg2: memref<32x202xf32, #tpu.memory_space<vmem>>, %arg3: memref<2x32x128xf32, #tpu.memory_space<vmem>>) attributes {dimension_semantics = [#tpu.dimension_semantics<parallel>], iteration_bounds = array<i64: 2>, scalar_prefetch = 0 : i64, scratch_operands = 0 : i64, tpu.core_type = #tpu.core_type<tc>, window_params = [{transform_indices = @transform_0, window_bounds = array<i64: 2, 32, 128>}, {transform_indices = @transform_1, window_bounds = array<i64: 32, 202>}, {transform_indices = @transform_2, window_bounds = array<i64: 2, 32, 128>}]} {
    %c0 = arith.constant 0 : index
    %c0_0 = arith.constant 0 : index
    %c0_1 = arith.constant 0 : index
    %0 = vector.load %arg1[%c0, %c0_0, %c0_1] : memref<2x32x128xf32, #tpu.memory_space<vmem>>, vector<1x32x128xf32>
    %1 = vector.shape_cast %0 : vector<1x32x128xf32> to vector<32x128xf32>
    %c1 = arith.constant 1 : index
    %c0_2 = arith.constant 0 : index
    %c0_3 = arith.constant 0 : index
    %2 = vector.load %arg1[%c1, %c0_2, %c0_3] : memref<2x32x128xf32, #tpu.memory_space<vmem>>, vector<1x32x128xf32>
    %3 = vector.shape_cast %2 : vector<1x32x128xf32> to vector<32x128xf32>
    %cst = arith.constant 0.000000e+00 : f32
    %4 = vector.broadcast %cst : f32 to vector<32x128xf32>
    %c0_4 = arith.constant 0 : index
    %c0_5 = arith.constant 0 : index
    %5 = vector.load %arg2[%c0_4, %c0_5] : memref<32x202xf32, #tpu.memory_space<vmem>>, vector<32x1xf32>
    %6 = vector.broadcast %5 : vector<32x1xf32> to vector<32x128xf32>
    %7 = arith.mulf %1, %6 : vector<32x128xf32>
    %c0_6 = arith.constant 0 : index
    %c64 = arith.constant 64 : index
    %8 = vector.load %arg2[%c0_6, %c64] : memref<32x202xf32, #tpu.memory_space<vmem>>, vector<32x1xf32>
    %9 = vector.broadcast %8 : vector<32x1xf32> to vector<32x128xf32>
    %10 = arith.addf %7, %9 : vector<32x128xf32>
    %cst_7 = arith.constant 0.000000e+00 : f32
    %11 = vector.broadcast %cst_7 : f32 to vector<32x128xf32>
    %12 = arith.maximumf %10, %11 : vector<32x128xf32>
    %c0_8 = arith.constant 0 : index
    %c128 = arith.constant 128 : index
    %13 = vector.load %arg2[%c0_8, %c128] : memref<32x202xf32, #tpu.memory_space<vmem>>, vector<32x1xf32>
    %14 = vector.broadcast %13 : vector<32x1xf32> to vector<32x128xf32>
    %15 = arith.mulf %12, %14 : vector<32x128xf32>
    %16 = arith.addf %4, %15 : vector<32x128xf32>
    %c0_9 = arith.constant 0 : index
    %c1_10 = arith.constant 1 : index
    %17 = vector.load %arg2[%c0_9, %c1_10] : memref<32x202xf32, #tpu.memory_space<vmem>>, vector<32x1xf32>
    %18 = vector.broadcast %17 : vector<32x1xf32> to vector<32x128xf32>
    %19 = arith.mulf %1, %18 : vector<32x128xf32>
    %c0_11 = arith.constant 0 : index
    %c65 = arith.constant 65 : index
    %20 = vector.load %arg2[%c0_11, %c65] : memref<32x202xf32, #tpu.memory_space<vmem>>, vector<32x1xf32>
    %21 = vector.broadcast %20 : vector<32x1xf32> to vector<32x128xf32>
    %22 = arith.addf %19, %21 : vector<32x128xf32>
    %cst_12 = arith.constant 0.000000e+00 : f32
    %23 = vector.broadcast %cst_12 : f32 to vector<32x128xf32>
    %24 = arith.maximumf %22, %23 : vector<32x128xf32>
    %c0_13 = arith.constant 0 : index
    %c129 = arith.constant 129 : index
    %25 = vector.load %arg2[%c0_13, %c129] : memref<32x202xf32, #tpu.memory_space<vmem>>, vector<32x1xf32>
    %26 = vector.broadcast %25 : vector<32x1xf32> to vector<32x128xf32>
    %27 = arith.mulf %24, %26 : vector<32x128xf32>
    %28 = arith.addf %16, %27 : vector<32x128xf32>
    %c0_14 = arith.constant 0 : index
    %c2 = arith.constant 2 : index
    %29 = vector.load %arg2[%c0_14, %c2] : memref<32x202xf32, #tpu.memory_space<vmem>>, vector<32x1xf32>
    %30 = vector.broadcast %29 : vector<32x1xf32> to vector<32x128xf32>
    %31 = arith.mulf %1, %30 : vector<32x128xf32>
    %c0_15 = arith.constant 0 : index
    %c66 = arith.constant 66 : index
    %32 = vector.load %arg2[%c0_15, %c66] : memref<32x202xf32, #tpu.memory_space<vmem>>, vector<32x1xf32>
    %33 = vector.broadcast %32 : vector<32x1xf32> to vector<32x128xf32>
    %34 = arith.addf %31, %33 : vector<32x128xf32>
    %cst_16 = arith.constant 0.000000e+00 : f32
    %35 = vector.broadcast %cst_16 : f32 to vector<32x128xf32>
    %36 = arith.maximumf %34, %35 : vector<32x128xf32>
    %c0_17 = arith.constant 0 : index
    %c130 = arith.constant 130 : index
    %37 = vector.load %arg2[%c0_17, %c130] : memref<32x202xf32, #tpu.memory_space<vmem>>, vector<32x1xf32>
    %38 = vector.broadcast %37 : vector<32x1xf32> to vector<32x128xf32>
    %39 = arith.mulf %36, %38 : vector<32x128xf32>
    %40 = arith.addf %28, %39 : vector<32x128xf32>
    %c0_18 = arith.constant 0 : index
    %c3 = arith.constant 3 : index
    %41 = vector.load %arg2[%c0_18, %c3] : memref<32x202xf32, #tpu.memory_space<vmem>>, vector<32x1xf32>
    %42 = vector.broadcast %41 : vector<32x1xf32> to vector<32x128xf32>
    %43 = arith.mulf %1, %42 : vector<32x128xf32>
    %c0_19 = arith.constant 0 : index
    %c67 = arith.constant 67 : index
    %44 = vector.load %arg2[%c0_19, %c67] : memref<32x202xf32, #tpu.memory_space<vmem>>, vector<32x1xf32>
    %45 = vector.broadcast %44 : vector<32x1xf32> to vector<32x128xf32>
    %46 = arith.addf %43, %45 : vector<32x128xf32>
    %cst_20 = arith.constant 0.000000e+00 : f32
    %47 = vector.broadcast %cst_20 : f32 to vector<32x128xf32>
    %48 = arith.maximumf %46, %47 : vector<32x128xf32>
    %c0_21 = arith.constant 0 : index
    %c131 = arith.constant 131 : index
    %49 = vector.load %arg2[%c0_21, %c131] : memref<32x202xf32, #tpu.memory_space<vmem>>, vector<32x1xf32>
    %50 = vector.broadcast %49 : vector<32x1xf32> to vector<32x128xf32>
    %51 = arith.mulf %48, %50 : vector<32x128xf32>
    %52 = arith.addf %40, %51 : vector<32x128xf32>
    %c0_22 = arith.constant 0 : index
    %c4 = arith.constant 4 : index
    %53 = vector.load %arg2[%c0_22, %c4] : memref<32x202xf32, #tpu.memory_space<vmem>>, vector<32x1xf32>
    %54 = vector.broadcast %53 : vector<32x1xf32> to vector<32x128xf32>
    %55 = arith.mulf %1, %54 : vector<32x128xf32>
    %c0_23 = arith.constant 0 : index
    %c68 = arith.constant 68 : index
    %56 = vector.load %arg2[%c0_23, %c68] : memref<32x202xf32, #tpu.memory_space<vmem>>, vector<32x1xf32>
    %57 = vector.broadcast %56 : vector<32x1xf32> to vector<32x128xf32>
    %58 = arith.addf %55, %57 : vector<32x128xf32>
    %cst_24 = arith.constant 0.000000e+00 : f32
    %59 = vector.broadcast %cst_24 : f32 to vector<32x128xf32>
    %60 = arith.maximumf %58, %59 : vector<32x128xf32>
    %c0_25 = arith.constant 0 : index
    %c132 = arith.constant 132 : index
    %61 = vector.load %arg2[%c0_25, %c132] : memref<32x202xf32, #tpu.memory_space<vmem>>, vector<32x1xf32>
    %62 = vector.broadcast %61 : vector<32x1xf32> to vector<32x128xf32>
    %63 = arith.mulf %60, %62 : vector<32x128xf32>
    %64 = arith.addf %52, %63 : vector<32x128xf32>
    %c0_26 = arith.constant 0 : index
    %c5 = arith.constant 5 : index
    %65 = vector.load %arg2[%c0_26, %c5] : memref<32x202xf32, #tpu.memory_space<vmem>>, vector<32x1xf32>
    %66 = vector.broadcast %65 : vector<32x1xf32> to vector<32x128xf32>
    %67 = arith.mulf %1, %66 : vector<32x128xf32>
    %c0_27 = arith.constant 0 : index
    %c69 = arith.constant 69 : index
    %68 = vector.load %arg2[%c0_27, %c69] : memref<32x202xf32, #tpu.memory_space<vmem>>, vector<32x1xf32>
    %69 = vector.broadcast %68 : vector<32x1xf32> to vector<32x128xf32>
    %70 = arith.addf %67, %69 : vector<32x128xf32>
    %cst_28 = arith.constant 0.000000e+00 : f32
    %71 = vector.broadcast %cst_28 : f32 to vector<32x128xf32>
    %72 = arith.maximumf %70, %71 : vector<32x128xf32>
    %c0_29 = arith.constant 0 : index
    %c133 = arith.constant 133 : index
    %73 = vector.load %arg2[%c0_29, %c133] : memref<32x202xf32, #tpu.memory_space<vmem>>, vector<32x1xf32>
    %74 = vector.broadcast %73 : vector<32x1xf32> to vector<32x128xf32>
    %75 = arith.mulf %72, %74 : vector<32x128xf32>
    %76 = arith.addf %64, %75 : vector<32x128xf32>
    %c0_30 = arith.constant 0 : index
    %c6 = arith.constant 6 : index
    %77 = vector.load %arg2[%c0_30, %c6] : memref<32x202xf32, #tpu.memory_space<vmem>>, vector<32x1xf32>
    %78 = vector.broadcast %77 : vector<32x1xf32> to vector<32x128xf32>
    %79 = arith.mulf %1, %78 : vector<32x128xf32>
    %c0_31 = arith.constant 0 : index
    %c70 = arith.constant 70 : index
    %80 = vector.load %arg2[%c0_31, %c70] : memref<32x202xf32, #tpu.memory_space<vmem>>, vector<32x1xf32>
    %81 = vector.broadcast %80 : vector<32x1xf32> to vector<32x128xf32>
    %82 = arith.addf %79, %81 : vector<32x128xf32>
    %cst_32 = arith.constant 0.000000e+00 : f32
    %83 = vector.broadcast %cst_32 : f32 to vector<32x128xf32>
    %84 = arith.maximumf %82, %83 : vector<32x128xf32>
    %c0_33 = arith.constant 0 : index
    %c134 = arith.constant 134 : index
    %85 = vector.load %arg2[%c0_33, %c134] : memref<32x202xf32, #tpu.memory_space<vmem>>, vector<32x1xf32>
    %86 = vector.broadcast %85 : vector<32x1xf32> to vector<32x128xf32>
    %87 = arith.mulf %84, %86 : vector<32x128xf32>
    %88 = arith.addf %76, %87 : vector<32x128xf32>
    %c0_34 = arith.constant 0 : index
    %c7 = arith.constant 7 : index
    %89 = vector.load %arg2[%c0_34, %c7] : memref<32x202xf32, #tpu.memory_space<vmem>>, vector<32x1xf32>
    %90 = vector.broadcast %89 : vector<32x1xf32> to vector<32x128xf32>
    %91 = arith.mulf %1, %90 : vector<32x128xf32>
    %c0_35 = arith.constant 0 : index
    %c71 = arith.constant 71 : index
    %92 = vector.load %arg2[%c0_35, %c71] : memref<32x202xf32, #tpu.memory_space<vmem>>, vector<32x1xf32>
    %93 = vector.broadcast %92 : vector<32x1xf32> to vector<32x128xf32>
    %94 = arith.addf %91, %93 : vector<32x128xf32>
    %cst_36 = arith.constant 0.000000e+00 : f32
    %95 = vector.broadcast %cst_36 : f32 to vector<32x128xf32>
    %96 = arith.maximumf %94, %95 : vector<32x128xf32>
    %c0_37 = arith.constant 0 : index
    %c135 = arith.constant 135 : index
    %97 = vector.load %arg2[%c0_37, %c135] : memref<32x202xf32, #tpu.memory_space<vmem>>, vector<32x1xf32>
    %98 = vector.broadcast %97 : vector<32x1xf32> to vector<32x128xf32>
    %99 = arith.mulf %96, %98 : vector<32x128xf32>
    %100 = arith.addf %88, %99 : vector<32x128xf32>
    %c0_38 = arith.constant 0 : index
    %c8 = arith.constant 8 : index
    %101 = vector.load %arg2[%c0_38, %c8] : memref<32x202xf32, #tpu.memory_space<vmem>>, vector<32x1xf32>
    %102 = vector.broadcast %101 : vector<32x1xf32> to vector<32x128xf32>
    %103 = arith.mulf %1, %102 : vector<32x128xf32>
    %c0_39 = arith.constant 0 : index
    %c72 = arith.constant 72 : index
    %104 = vector.load %arg2[%c0_39, %c72] : memref<32x202xf32, #tpu.memory_space<vmem>>, vector<32x1xf32>
    %105 = vector.broadcast %104 : vector<32x1xf32> to vector<32x128xf32>
    %106 = arith.addf %103, %105 : vector<32x128xf32>
    %cst_40 = arith.constant 0.000000e+00 : f32
    %107 = vector.broadcast %cst_40 : f32 to vector<32x128xf32>
    %108 = arith.maximumf %106, %107 : vector<32x128xf32>
    %c0_41 = arith.constant 0 : index
    %c136 = arith.constant 136 : index
    %109 = vector.load %arg2[%c0_41, %c136] : memref<32x202xf32, #tpu.memory_space<vmem>>, vector<32x1xf32>
    %110 = vector.broadcast %109 : vector<32x1xf32> to vector<32x128xf32>
    %111 = arith.mulf %108, %110 : vector<32x128xf32>
    %112 = arith.addf %100, %111 : vector<32x128xf32>
    %c0_42 = arith.constant 0 : index
    %c9 = arith.constant 9 : index
    %113 = vector.load %arg2[%c0_42, %c9] : memref<32x202xf32, #tpu.memory_space<vmem>>, vector<32x1xf32>
    %114 = vector.broadcast %113 : vector<32x1xf32> to vector<32x128xf32>
    %115 = arith.mulf %1, %114 : vector<32x128xf32>
    %c0_43 = arith.constant 0 : index
    %c73 = arith.constant 73 : index
    %116 = vector.load %arg2[%c0_43, %c73] : memref<32x202xf32, #tpu.memory_space<vmem>>, vector<32x1xf32>
    %117 = vector.broadcast %116 : vector<32x1xf32> to vector<32x128xf32>
    %118 = arith.addf %115, %117 : vector<32x128xf32>
    %cst_44 = arith.constant 0.000000e+00 : f32
    %119 = vector.broadcast %cst_44 : f32 to vector<32x128xf32>
    %120 = arith.maximumf %118, %119 : vector<32x128xf32>
    %c0_45 = arith.constant 0 : index
    %c137 = arith.constant 137 : index
    %121 = vector.load %arg2[%c0_45, %c137] : memref<32x202xf32, #tpu.memory_space<vmem>>, vector<32x1xf32>
    %122 = vector.broadcast %121 : vector<32x1xf32> to vector<32x128xf32>
    %123 = arith.mulf %120, %122 : vector<32x128xf32>
    %124 = arith.addf %112, %123 : vector<32x128xf32>
    %c0_46 = arith.constant 0 : index
    %c10 = arith.constant 10 : index
    %125 = vector.load %arg2[%c0_46, %c10] : memref<32x202xf32, #tpu.memory_space<vmem>>, vector<32x1xf32>
    %126 = vector.broadcast %125 : vector<32x1xf32> to vector<32x128xf32>
    %127 = arith.mulf %1, %126 : vector<32x128xf32>
    %c0_47 = arith.constant 0 : index
    %c74 = arith.constant 74 : index
    %128 = vector.load %arg2[%c0_47, %c74] : memref<32x202xf32, #tpu.memory_space<vmem>>, vector<32x1xf32>
    %129 = vector.broadcast %128 : vector<32x1xf32> to vector<32x128xf32>
    %130 = arith.addf %127, %129 : vector<32x128xf32>
    %cst_48 = arith.constant 0.000000e+00 : f32
    %131 = vector.broadcast %cst_48 : f32 to vector<32x128xf32>
    %132 = arith.maximumf %130, %131 : vector<32x128xf32>
    %c0_49 = arith.constant 0 : index
    %c138 = arith.constant 138 : index
    %133 = vector.load %arg2[%c0_49, %c138] : memref<32x202xf32, #tpu.memory_space<vmem>>, vector<32x1xf32>
    %134 = vector.broadcast %133 : vector<32x1xf32> to vector<32x128xf32>
    %135 = arith.mulf %132, %134 : vector<32x128xf32>
    %136 = arith.addf %124, %135 : vector<32x128xf32>
    %c0_50 = arith.constant 0 : index
    %c11 = arith.constant 11 : index
    %137 = vector.load %arg2[%c0_50, %c11] : memref<32x202xf32, #tpu.memory_space<vmem>>, vector<32x1xf32>
    %138 = vector.broadcast %137 : vector<32x1xf32> to vector<32x128xf32>
    %139 = arith.mulf %1, %138 : vector<32x128xf32>
    %c0_51 = arith.constant 0 : index
    %c75 = arith.constant 75 : index
    %140 = vector.load %arg2[%c0_51, %c75] : memref<32x202xf32, #tpu.memory_space<vmem>>, vector<32x1xf32>
    %141 = vector.broadcast %140 : vector<32x1xf32> to vector<32x128xf32>
    %142 = arith.addf %139, %141 : vector<32x128xf32>
    %cst_52 = arith.constant 0.000000e+00 : f32
    %143 = vector.broadcast %cst_52 : f32 to vector<32x128xf32>
    %144 = arith.maximumf %142, %143 : vector<32x128xf32>
    %c0_53 = arith.constant 0 : index
    %c139 = arith.constant 139 : index
    %145 = vector.load %arg2[%c0_53, %c139] : memref<32x202xf32, #tpu.memory_space<vmem>>, vector<32x1xf32>
    %146 = vector.broadcast %145 : vector<32x1xf32> to vector<32x128xf32>
    %147 = arith.mulf %144, %146 : vector<32x128xf32>
    %148 = arith.addf %136, %147 : vector<32x128xf32>
    %c0_54 = arith.constant 0 : index
    %c12 = arith.constant 12 : index
    %149 = vector.load %arg2[%c0_54, %c12] : memref<32x202xf32, #tpu.memory_space<vmem>>, vector<32x1xf32>
    %150 = vector.broadcast %149 : vector<32x1xf32> to vector<32x128xf32>
    %151 = arith.mulf %1, %150 : vector<32x128xf32>
    %c0_55 = arith.constant 0 : index
    %c76 = arith.constant 76 : index
    %152 = vector.load %arg2[%c0_55, %c76] : memref<32x202xf32, #tpu.memory_space<vmem>>, vector<32x1xf32>
    %153 = vector.broadcast %152 : vector<32x1xf32> to vector<32x128xf32>
    %154 = arith.addf %151, %153 : vector<32x128xf32>
    %cst_56 = arith.constant 0.000000e+00 : f32
    %155 = vector.broadcast %cst_56 : f32 to vector<32x128xf32>
    %156 = arith.maximumf %154, %155 : vector<32x128xf32>
    %c0_57 = arith.constant 0 : index
    %c140 = arith.constant 140 : index
    %157 = vector.load %arg2[%c0_57, %c140] : memref<32x202xf32, #tpu.memory_space<vmem>>, vector<32x1xf32>
    %158 = vector.broadcast %157 : vector<32x1xf32> to vector<32x128xf32>
    %159 = arith.mulf %156, %158 : vector<32x128xf32>
    %160 = arith.addf %148, %159 : vector<32x128xf32>
    %c0_58 = arith.constant 0 : index
    %c13 = arith.constant 13 : index
    %161 = vector.load %arg2[%c0_58, %c13] : memref<32x202xf32, #tpu.memory_space<vmem>>, vector<32x1xf32>
    %162 = vector.broadcast %161 : vector<32x1xf32> to vector<32x128xf32>
    %163 = arith.mulf %1, %162 : vector<32x128xf32>
    %c0_59 = arith.constant 0 : index
    %c77 = arith.constant 77 : index
    %164 = vector.load %arg2[%c0_59, %c77] : memref<32x202xf32, #tpu.memory_space<vmem>>, vector<32x1xf32>
    %165 = vector.broadcast %164 : vector<32x1xf32> to vector<32x128xf32>
    %166 = arith.addf %163, %165 : vector<32x128xf32>
    %cst_60 = arith.constant 0.000000e+00 : f32
    %167 = vector.broadcast %cst_60 : f32 to vector<32x128xf32>
    %168 = arith.maximumf %166, %167 : vector<32x128xf32>
    %c0_61 = arith.constant 0 : index
    %c141 = arith.constant 141 : index
    %169 = vector.load %arg2[%c0_61, %c141] : memref<32x202xf32, #tpu.memory_space<vmem>>, vector<32x1xf32>
    %170 = vector.broadcast %169 : vector<32x1xf32> to vector<32x128xf32>
    %171 = arith.mulf %168, %170 : vector<32x128xf32>
    %172 = arith.addf %160, %171 : vector<32x128xf32>
    %c0_62 = arith.constant 0 : index
    %c14 = arith.constant 14 : index
    %173 = vector.load %arg2[%c0_62, %c14] : memref<32x202xf32, #tpu.memory_space<vmem>>, vector<32x1xf32>
    %174 = vector.broadcast %173 : vector<32x1xf32> to vector<32x128xf32>
    %175 = arith.mulf %1, %174 : vector<32x128xf32>
    %c0_63 = arith.constant 0 : index
    %c78 = arith.constant 78 : index
    %176 = vector.load %arg2[%c0_63, %c78] : memref<32x202xf32, #tpu.memory_space<vmem>>, vector<32x1xf32>
    %177 = vector.broadcast %176 : vector<32x1xf32> to vector<32x128xf32>
    %178 = arith.addf %175, %177 : vector<32x128xf32>
    %cst_64 = arith.constant 0.000000e+00 : f32
    %179 = vector.broadcast %cst_64 : f32 to vector<32x128xf32>
    %180 = arith.maximumf %178, %179 : vector<32x128xf32>
    %c0_65 = arith.constant 0 : index
    %c142 = arith.constant 142 : index
    %181 = vector.load %arg2[%c0_65, %c142] : memref<32x202xf32, #tpu.memory_space<vmem>>, vector<32x1xf32>
    %182 = vector.broadcast %181 : vector<32x1xf32> to vector<32x128xf32>
    %183 = arith.mulf %180, %182 : vector<32x128xf32>
    %184 = arith.addf %172, %183 : vector<32x128xf32>
    %c0_66 = arith.constant 0 : index
    %c15 = arith.constant 15 : index
    %185 = vector.load %arg2[%c0_66, %c15] : memref<32x202xf32, #tpu.memory_space<vmem>>, vector<32x1xf32>
    %186 = vector.broadcast %185 : vector<32x1xf32> to vector<32x128xf32>
    %187 = arith.mulf %1, %186 : vector<32x128xf32>
    %c0_67 = arith.constant 0 : index
    %c79 = arith.constant 79 : index
    %188 = vector.load %arg2[%c0_67, %c79] : memref<32x202xf32, #tpu.memory_space<vmem>>, vector<32x1xf32>
    %189 = vector.broadcast %188 : vector<32x1xf32> to vector<32x128xf32>
    %190 = arith.addf %187, %189 : vector<32x128xf32>
    %cst_68 = arith.constant 0.000000e+00 : f32
    %191 = vector.broadcast %cst_68 : f32 to vector<32x128xf32>
    %192 = arith.maximumf %190, %191 : vector<32x128xf32>
    %c0_69 = arith.constant 0 : index
    %c143 = arith.constant 143 : index
    %193 = vector.load %arg2[%c0_69, %c143] : memref<32x202xf32, #tpu.memory_space<vmem>>, vector<32x1xf32>
    %194 = vector.broadcast %193 : vector<32x1xf32> to vector<32x128xf32>
    %195 = arith.mulf %192, %194 : vector<32x128xf32>
    %196 = arith.addf %184, %195 : vector<32x128xf32>
    %c0_70 = arith.constant 0 : index
    %c192 = arith.constant 192 : index
    %197 = vector.load %arg2[%c0_70, %c192] : memref<32x202xf32, #tpu.memory_space<vmem>>, vector<32x1xf32>
    %198 = vector.broadcast %197 : vector<32x1xf32> to vector<32x128xf32>
    %199 = arith.addf %196, %198 : vector<32x128xf32>
    %cst_71 = arith.constant 0.000000e+00 : f32
    %200 = vector.broadcast %cst_71 : f32 to vector<32x128xf32>
    %c0_72 = arith.constant 0 : index
    %c16 = arith.constant 16 : index
    %201 = vector.load %arg2[%c0_72, %c16] : memref<32x202xf32, #tpu.memory_space<vmem>>, vector<32x1xf32>
    %202 = vector.broadcast %201 : vector<32x1xf32> to vector<32x128xf32>
    %203 = arith.mulf %1, %202 : vector<32x128xf32>
    %c0_73 = arith.constant 0 : index
    %c80 = arith.constant 80 : index
    %204 = vector.load %arg2[%c0_73, %c80] : memref<32x202xf32, #tpu.memory_space<vmem>>, vector<32x1xf32>
    %205 = vector.broadcast %204 : vector<32x1xf32> to vector<32x128xf32>
    %206 = arith.addf %203, %205 : vector<32x128xf32>
    %cst_74 = arith.constant 0.000000e+00 : f32
    %207 = vector.broadcast %cst_74 : f32 to vector<32x128xf32>
    %208 = arith.maximumf %206, %207 : vector<32x128xf32>
    %c0_75 = arith.constant 0 : index
    %c144 = arith.constant 144 : index
    %209 = vector.load %arg2[%c0_75, %c144] : memref<32x202xf32, #tpu.memory_space<vmem>>, vector<32x1xf32>
    %210 = vector.broadcast %209 : vector<32x1xf32> to vector<32x128xf32>
    %211 = arith.mulf %208, %210 : vector<32x128xf32>
    %212 = arith.addf %200, %211 : vector<32x128xf32>
    %c0_76 = arith.constant 0 : index
    %c17 = arith.constant 17 : index
    %213 = vector.load %arg2[%c0_76, %c17] : memref<32x202xf32, #tpu.memory_space<vmem>>, vector<32x1xf32>
    %214 = vector.broadcast %213 : vector<32x1xf32> to vector<32x128xf32>
    %215 = arith.mulf %1, %214 : vector<32x128xf32>
    %c0_77 = arith.constant 0 : index
    %c81 = arith.constant 81 : index
    %216 = vector.load %arg2[%c0_77, %c81] : memref<32x202xf32, #tpu.memory_space<vmem>>, vector<32x1xf32>
    %217 = vector.broadcast %216 : vector<32x1xf32> to vector<32x128xf32>
    %218 = arith.addf %215, %217 : vector<32x128xf32>
    %cst_78 = arith.constant 0.000000e+00 : f32
    %219 = vector.broadcast %cst_78 : f32 to vector<32x128xf32>
    %220 = arith.maximumf %218, %219 : vector<32x128xf32>
    %c0_79 = arith.constant 0 : index
    %c145 = arith.constant 145 : index
    %221 = vector.load %arg2[%c0_79, %c145] : memref<32x202xf32, #tpu.memory_space<vmem>>, vector<32x1xf32>
    %222 = vector.broadcast %221 : vector<32x1xf32> to vector<32x128xf32>
    %223 = arith.mulf %220, %222 : vector<32x128xf32>
    %224 = arith.addf %212, %223 : vector<32x128xf32>
    %c0_80 = arith.constant 0 : index
    %c18 = arith.constant 18 : index
    %225 = vector.load %arg2[%c0_80, %c18] : memref<32x202xf32, #tpu.memory_space<vmem>>, vector<32x1xf32>
    %226 = vector.broadcast %225 : vector<32x1xf32> to vector<32x128xf32>
    %227 = arith.mulf %1, %226 : vector<32x128xf32>
    %c0_81 = arith.constant 0 : index
    %c82 = arith.constant 82 : index
    %228 = vector.load %arg2[%c0_81, %c82] : memref<32x202xf32, #tpu.memory_space<vmem>>, vector<32x1xf32>
    %229 = vector.broadcast %228 : vector<32x1xf32> to vector<32x128xf32>
    %230 = arith.addf %227, %229 : vector<32x128xf32>
    %cst_82 = arith.constant 0.000000e+00 : f32
    %231 = vector.broadcast %cst_82 : f32 to vector<32x128xf32>
    %232 = arith.maximumf %230, %231 : vector<32x128xf32>
    %c0_83 = arith.constant 0 : index
    %c146 = arith.constant 146 : index
    %233 = vector.load %arg2[%c0_83, %c146] : memref<32x202xf32, #tpu.memory_space<vmem>>, vector<32x1xf32>
    %234 = vector.broadcast %233 : vector<32x1xf32> to vector<32x128xf32>
    %235 = arith.mulf %232, %234 : vector<32x128xf32>
    %236 = arith.addf %224, %235 : vector<32x128xf32>
    %c0_84 = arith.constant 0 : index
    %c19 = arith.constant 19 : index
    %237 = vector.load %arg2[%c0_84, %c19] : memref<32x202xf32, #tpu.memory_space<vmem>>, vector<32x1xf32>
    %238 = vector.broadcast %237 : vector<32x1xf32> to vector<32x128xf32>
    %239 = arith.mulf %1, %238 : vector<32x128xf32>
    %c0_85 = arith.constant 0 : index
    %c83 = arith.constant 83 : index
    %240 = vector.load %arg2[%c0_85, %c83] : memref<32x202xf32, #tpu.memory_space<vmem>>, vector<32x1xf32>
    %241 = vector.broadcast %240 : vector<32x1xf32> to vector<32x128xf32>
    %242 = arith.addf %239, %241 : vector<32x128xf32>
    %cst_86 = arith.constant 0.000000e+00 : f32
    %243 = vector.broadcast %cst_86 : f32 to vector<32x128xf32>
    %244 = arith.maximumf %242, %243 : vector<32x128xf32>
    %c0_87 = arith.constant 0 : index
    %c147 = arith.constant 147 : index
    %245 = vector.load %arg2[%c0_87, %c147] : memref<32x202xf32, #tpu.memory_space<vmem>>, vector<32x1xf32>
    %246 = vector.broadcast %245 : vector<32x1xf32> to vector<32x128xf32>
    %247 = arith.mulf %244, %246 : vector<32x128xf32>
    %248 = arith.addf %236, %247 : vector<32x128xf32>
    %c0_88 = arith.constant 0 : index
    %c20 = arith.constant 20 : index
    %249 = vector.load %arg2[%c0_88, %c20] : memref<32x202xf32, #tpu.memory_space<vmem>>, vector<32x1xf32>
    %250 = vector.broadcast %249 : vector<32x1xf32> to vector<32x128xf32>
    %251 = arith.mulf %1, %250 : vector<32x128xf32>
    %c0_89 = arith.constant 0 : index
    %c84 = arith.constant 84 : index
    %252 = vector.load %arg2[%c0_89, %c84] : memref<32x202xf32, #tpu.memory_space<vmem>>, vector<32x1xf32>
    %253 = vector.broadcast %252 : vector<32x1xf32> to vector<32x128xf32>
    %254 = arith.addf %251, %253 : vector<32x128xf32>
    %cst_90 = arith.constant 0.000000e+00 : f32
    %255 = vector.broadcast %cst_90 : f32 to vector<32x128xf32>
    %256 = arith.maximumf %254, %255 : vector<32x128xf32>
    %c0_91 = arith.constant 0 : index
    %c148 = arith.constant 148 : index
    %257 = vector.load %arg2[%c0_91, %c148] : memref<32x202xf32, #tpu.memory_space<vmem>>, vector<32x1xf32>
    %258 = vector.broadcast %257 : vector<32x1xf32> to vector<32x128xf32>
    %259 = arith.mulf %256, %258 : vector<32x128xf32>
    %260 = arith.addf %248, %259 : vector<32x128xf32>
    %c0_92 = arith.constant 0 : index
    %c21 = arith.constant 21 : index
    %261 = vector.load %arg2[%c0_92, %c21] : memref<32x202xf32, #tpu.memory_space<vmem>>, vector<32x1xf32>
    %262 = vector.broadcast %261 : vector<32x1xf32> to vector<32x128xf32>
    %263 = arith.mulf %1, %262 : vector<32x128xf32>
    %c0_93 = arith.constant 0 : index
    %c85 = arith.constant 85 : index
    %264 = vector.load %arg2[%c0_93, %c85] : memref<32x202xf32, #tpu.memory_space<vmem>>, vector<32x1xf32>
    %265 = vector.broadcast %264 : vector<32x1xf32> to vector<32x128xf32>
    %266 = arith.addf %263, %265 : vector<32x128xf32>
    %cst_94 = arith.constant 0.000000e+00 : f32
    %267 = vector.broadcast %cst_94 : f32 to vector<32x128xf32>
    %268 = arith.maximumf %266, %267 : vector<32x128xf32>
    %c0_95 = arith.constant 0 : index
    %c149 = arith.constant 149 : index
    %269 = vector.load %arg2[%c0_95, %c149] : memref<32x202xf32, #tpu.memory_space<vmem>>, vector<32x1xf32>
    %270 = vector.broadcast %269 : vector<32x1xf32> to vector<32x128xf32>
    %271 = arith.mulf %268, %270 : vector<32x128xf32>
    %272 = arith.addf %260, %271 : vector<32x128xf32>
    %c0_96 = arith.constant 0 : index
    %c22 = arith.constant 22 : index
    %273 = vector.load %arg2[%c0_96, %c22] : memref<32x202xf32, #tpu.memory_space<vmem>>, vector<32x1xf32>
    %274 = vector.broadcast %273 : vector<32x1xf32> to vector<32x128xf32>
    %275 = arith.mulf %1, %274 : vector<32x128xf32>
    %c0_97 = arith.constant 0 : index
    %c86 = arith.constant 86 : index
    %276 = vector.load %arg2[%c0_97, %c86] : memref<32x202xf32, #tpu.memory_space<vmem>>, vector<32x1xf32>
    %277 = vector.broadcast %276 : vector<32x1xf32> to vector<32x128xf32>
    %278 = arith.addf %275, %277 : vector<32x128xf32>
    %cst_98 = arith.constant 0.000000e+00 : f32
    %279 = vector.broadcast %cst_98 : f32 to vector<32x128xf32>
    %280 = arith.maximumf %278, %279 : vector<32x128xf32>
    %c0_99 = arith.constant 0 : index
    %c150 = arith.constant 150 : index
    %281 = vector.load %arg2[%c0_99, %c150] : memref<32x202xf32, #tpu.memory_space<vmem>>, vector<32x1xf32>
    %282 = vector.broadcast %281 : vector<32x1xf32> to vector<32x128xf32>
    %283 = arith.mulf %280, %282 : vector<32x128xf32>
    %284 = arith.addf %272, %283 : vector<32x128xf32>
    %c0_100 = arith.constant 0 : index
    %c23 = arith.constant 23 : index
    %285 = vector.load %arg2[%c0_100, %c23] : memref<32x202xf32, #tpu.memory_space<vmem>>, vector<32x1xf32>
    %286 = vector.broadcast %285 : vector<32x1xf32> to vector<32x128xf32>
    %287 = arith.mulf %1, %286 : vector<32x128xf32>
    %c0_101 = arith.constant 0 : index
    %c87 = arith.constant 87 : index
    %288 = vector.load %arg2[%c0_101, %c87] : memref<32x202xf32, #tpu.memory_space<vmem>>, vector<32x1xf32>
    %289 = vector.broadcast %288 : vector<32x1xf32> to vector<32x128xf32>
    %290 = arith.addf %287, %289 : vector<32x128xf32>
    %cst_102 = arith.constant 0.000000e+00 : f32
    %291 = vector.broadcast %cst_102 : f32 to vector<32x128xf32>
    %292 = arith.maximumf %290, %291 : vector<32x128xf32>
    %c0_103 = arith.constant 0 : index
    %c151 = arith.constant 151 : index
    %293 = vector.load %arg2[%c0_103, %c151] : memref<32x202xf32, #tpu.memory_space<vmem>>, vector<32x1xf32>
    %294 = vector.broadcast %293 : vector<32x1xf32> to vector<32x128xf32>
    %295 = arith.mulf %292, %294 : vector<32x128xf32>
    %296 = arith.addf %284, %295 : vector<32x128xf32>
    %c0_104 = arith.constant 0 : index
    %c24 = arith.constant 24 : index
    %297 = vector.load %arg2[%c0_104, %c24] : memref<32x202xf32, #tpu.memory_space<vmem>>, vector<32x1xf32>
    %298 = vector.broadcast %297 : vector<32x1xf32> to vector<32x128xf32>
    %299 = arith.mulf %1, %298 : vector<32x128xf32>
    %c0_105 = arith.constant 0 : index
    %c88 = arith.constant 88 : index
    %300 = vector.load %arg2[%c0_105, %c88] : memref<32x202xf32, #tpu.memory_space<vmem>>, vector<32x1xf32>
    %301 = vector.broadcast %300 : vector<32x1xf32> to vector<32x128xf32>
    %302 = arith.addf %299, %301 : vector<32x128xf32>
    %cst_106 = arith.constant 0.000000e+00 : f32
    %303 = vector.broadcast %cst_106 : f32 to vector<32x128xf32>
    %304 = arith.maximumf %302, %303 : vector<32x128xf32>
    %c0_107 = arith.constant 0 : index
    %c152 = arith.constant 152 : index
    %305 = vector.load %arg2[%c0_107, %c152] : memref<32x202xf32, #tpu.memory_space<vmem>>, vector<32x1xf32>
    %306 = vector.broadcast %305 : vector<32x1xf32> to vector<32x128xf32>
    %307 = arith.mulf %304, %306 : vector<32x128xf32>
    %308 = arith.addf %296, %307 : vector<32x128xf32>
    %c0_108 = arith.constant 0 : index
    %c25 = arith.constant 25 : index
    %309 = vector.load %arg2[%c0_108, %c25] : memref<32x202xf32, #tpu.memory_space<vmem>>, vector<32x1xf32>
    %310 = vector.broadcast %309 : vector<32x1xf32> to vector<32x128xf32>
    %311 = arith.mulf %1, %310 : vector<32x128xf32>
    %c0_109 = arith.constant 0 : index
    %c89 = arith.constant 89 : index
    %312 = vector.load %arg2[%c0_109, %c89] : memref<32x202xf32, #tpu.memory_space<vmem>>, vector<32x1xf32>
    %313 = vector.broadcast %312 : vector<32x1xf32> to vector<32x128xf32>
    %314 = arith.addf %311, %313 : vector<32x128xf32>
    %cst_110 = arith.constant 0.000000e+00 : f32
    %315 = vector.broadcast %cst_110 : f32 to vector<32x128xf32>
    %316 = arith.maximumf %314, %315 : vector<32x128xf32>
    %c0_111 = arith.constant 0 : index
    %c153 = arith.constant 153 : index
    %317 = vector.load %arg2[%c0_111, %c153] : memref<32x202xf32, #tpu.memory_space<vmem>>, vector<32x1xf32>
    %318 = vector.broadcast %317 : vector<32x1xf32> to vector<32x128xf32>
    %319 = arith.mulf %316, %318 : vector<32x128xf32>
    %320 = arith.addf %308, %319 : vector<32x128xf32>
    %c0_112 = arith.constant 0 : index
    %c26 = arith.constant 26 : index
    %321 = vector.load %arg2[%c0_112, %c26] : memref<32x202xf32, #tpu.memory_space<vmem>>, vector<32x1xf32>
    %322 = vector.broadcast %321 : vector<32x1xf32> to vector<32x128xf32>
    %323 = arith.mulf %1, %322 : vector<32x128xf32>
    %c0_113 = arith.constant 0 : index
    %c90 = arith.constant 90 : index
    %324 = vector.load %arg2[%c0_113, %c90] : memref<32x202xf32, #tpu.memory_space<vmem>>, vector<32x1xf32>
    %325 = vector.broadcast %324 : vector<32x1xf32> to vector<32x128xf32>
    %326 = arith.addf %323, %325 : vector<32x128xf32>
    %cst_114 = arith.constant 0.000000e+00 : f32
    %327 = vector.broadcast %cst_114 : f32 to vector<32x128xf32>
    %328 = arith.maximumf %326, %327 : vector<32x128xf32>
    %c0_115 = arith.constant 0 : index
    %c154 = arith.constant 154 : index
    %329 = vector.load %arg2[%c0_115, %c154] : memref<32x202xf32, #tpu.memory_space<vmem>>, vector<32x1xf32>
    %330 = vector.broadcast %329 : vector<32x1xf32> to vector<32x128xf32>
    %331 = arith.mulf %328, %330 : vector<32x128xf32>
    %332 = arith.addf %320, %331 : vector<32x128xf32>
    %c0_116 = arith.constant 0 : index
    %c27 = arith.constant 27 : index
    %333 = vector.load %arg2[%c0_116, %c27] : memref<32x202xf32, #tpu.memory_space<vmem>>, vector<32x1xf32>
    %334 = vector.broadcast %333 : vector<32x1xf32> to vector<32x128xf32>
    %335 = arith.mulf %1, %334 : vector<32x128xf32>
    %c0_117 = arith.constant 0 : index
    %c91 = arith.constant 91 : index
    %336 = vector.load %arg2[%c0_117, %c91] : memref<32x202xf32, #tpu.memory_space<vmem>>, vector<32x1xf32>
    %337 = vector.broadcast %336 : vector<32x1xf32> to vector<32x128xf32>
    %338 = arith.addf %335, %337 : vector<32x128xf32>
    %cst_118 = arith.constant 0.000000e+00 : f32
    %339 = vector.broadcast %cst_118 : f32 to vector<32x128xf32>
    %340 = arith.maximumf %338, %339 : vector<32x128xf32>
    %c0_119 = arith.constant 0 : index
    %c155 = arith.constant 155 : index
    %341 = vector.load %arg2[%c0_119, %c155] : memref<32x202xf32, #tpu.memory_space<vmem>>, vector<32x1xf32>
    %342 = vector.broadcast %341 : vector<32x1xf32> to vector<32x128xf32>
    %343 = arith.mulf %340, %342 : vector<32x128xf32>
    %344 = arith.addf %332, %343 : vector<32x128xf32>
    %c0_120 = arith.constant 0 : index
    %c28 = arith.constant 28 : index
    %345 = vector.load %arg2[%c0_120, %c28] : memref<32x202xf32, #tpu.memory_space<vmem>>, vector<32x1xf32>
    %346 = vector.broadcast %345 : vector<32x1xf32> to vector<32x128xf32>
    %347 = arith.mulf %1, %346 : vector<32x128xf32>
    %c0_121 = arith.constant 0 : index
    %c92 = arith.constant 92 : index
    %348 = vector.load %arg2[%c0_121, %c92] : memref<32x202xf32, #tpu.memory_space<vmem>>, vector<32x1xf32>
    %349 = vector.broadcast %348 : vector<32x1xf32> to vector<32x128xf32>
    %350 = arith.addf %347, %349 : vector<32x128xf32>
    %cst_122 = arith.constant 0.000000e+00 : f32
    %351 = vector.broadcast %cst_122 : f32 to vector<32x128xf32>
    %352 = arith.maximumf %350, %351 : vector<32x128xf32>
    %c0_123 = arith.constant 0 : index
    %c156 = arith.constant 156 : index
    %353 = vector.load %arg2[%c0_123, %c156] : memref<32x202xf32, #tpu.memory_space<vmem>>, vector<32x1xf32>
    %354 = vector.broadcast %353 : vector<32x1xf32> to vector<32x128xf32>
    %355 = arith.mulf %352, %354 : vector<32x128xf32>
    %356 = arith.addf %344, %355 : vector<32x128xf32>
    %c0_124 = arith.constant 0 : index
    %c29 = arith.constant 29 : index
    %357 = vector.load %arg2[%c0_124, %c29] : memref<32x202xf32, #tpu.memory_space<vmem>>, vector<32x1xf32>
    %358 = vector.broadcast %357 : vector<32x1xf32> to vector<32x128xf32>
    %359 = arith.mulf %1, %358 : vector<32x128xf32>
    %c0_125 = arith.constant 0 : index
    %c93 = arith.constant 93 : index
    %360 = vector.load %arg2[%c0_125, %c93] : memref<32x202xf32, #tpu.memory_space<vmem>>, vector<32x1xf32>
    %361 = vector.broadcast %360 : vector<32x1xf32> to vector<32x128xf32>
    %362 = arith.addf %359, %361 : vector<32x128xf32>
    %cst_126 = arith.constant 0.000000e+00 : f32
    %363 = vector.broadcast %cst_126 : f32 to vector<32x128xf32>
    %364 = arith.maximumf %362, %363 : vector<32x128xf32>
    %c0_127 = arith.constant 0 : index
    %c157 = arith.constant 157 : index
    %365 = vector.load %arg2[%c0_127, %c157] : memref<32x202xf32, #tpu.memory_space<vmem>>, vector<32x1xf32>
    %366 = vector.broadcast %365 : vector<32x1xf32> to vector<32x128xf32>
    %367 = arith.mulf %364, %366 : vector<32x128xf32>
    %368 = arith.addf %356, %367 : vector<32x128xf32>
    %c0_128 = arith.constant 0 : index
    %c30 = arith.constant 30 : index
    %369 = vector.load %arg2[%c0_128, %c30] : memref<32x202xf32, #tpu.memory_space<vmem>>, vector<32x1xf32>
    %370 = vector.broadcast %369 : vector<32x1xf32> to vector<32x128xf32>
    %371 = arith.mulf %1, %370 : vector<32x128xf32>
    %c0_129 = arith.constant 0 : index
    %c94 = arith.constant 94 : index
    %372 = vector.load %arg2[%c0_129, %c94] : memref<32x202xf32, #tpu.memory_space<vmem>>, vector<32x1xf32>
    %373 = vector.broadcast %372 : vector<32x1xf32> to vector<32x128xf32>
    %374 = arith.addf %371, %373 : vector<32x128xf32>
    %cst_130 = arith.constant 0.000000e+00 : f32
    %375 = vector.broadcast %cst_130 : f32 to vector<32x128xf32>
    %376 = arith.maximumf %374, %375 : vector<32x128xf32>
    %c0_131 = arith.constant 0 : index
    %c158 = arith.constant 158 : index
    %377 = vector.load %arg2[%c0_131, %c158] : memref<32x202xf32, #tpu.memory_space<vmem>>, vector<32x1xf32>
    %378 = vector.broadcast %377 : vector<32x1xf32> to vector<32x128xf32>
    %379 = arith.mulf %376, %378 : vector<32x128xf32>
    %380 = arith.addf %368, %379 : vector<32x128xf32>
    %c0_132 = arith.constant 0 : index
    %c31 = arith.constant 31 : index
    %381 = vector.load %arg2[%c0_132, %c31] : memref<32x202xf32, #tpu.memory_space<vmem>>, vector<32x1xf32>
    %382 = vector.broadcast %381 : vector<32x1xf32> to vector<32x128xf32>
    %383 = arith.mulf %1, %382 : vector<32x128xf32>
    %c0_133 = arith.constant 0 : index
    %c95 = arith.constant 95 : index
    %384 = vector.load %arg2[%c0_133, %c95] : memref<32x202xf32, #tpu.memory_space<vmem>>, vector<32x1xf32>
    %385 = vector.broadcast %384 : vector<32x1xf32> to vector<32x128xf32>
    %386 = arith.addf %383, %385 : vector<32x128xf32>
    %cst_134 = arith.constant 0.000000e+00 : f32
    %387 = vector.broadcast %cst_134 : f32 to vector<32x128xf32>
    %388 = arith.maximumf %386, %387 : vector<32x128xf32>
    %c0_135 = arith.constant 0 : index
    %c159 = arith.constant 159 : index
    %389 = vector.load %arg2[%c0_135, %c159] : memref<32x202xf32, #tpu.memory_space<vmem>>, vector<32x1xf32>
    %390 = vector.broadcast %389 : vector<32x1xf32> to vector<32x128xf32>
    %391 = arith.mulf %388, %390 : vector<32x128xf32>
    %392 = arith.addf %380, %391 : vector<32x128xf32>
    %c0_136 = arith.constant 0 : index
    %c193 = arith.constant 193 : index
    %393 = vector.load %arg2[%c0_136, %c193] : memref<32x202xf32, #tpu.memory_space<vmem>>, vector<32x1xf32>
    %394 = vector.broadcast %393 : vector<32x1xf32> to vector<32x128xf32>
    %395 = arith.addf %392, %394 : vector<32x128xf32>
    %396 = math.exp %199 : vector<32x128xf32>
    %397 = arith.mulf %3, %396 : vector<32x128xf32>
    %398 = arith.addf %397, %395 : vector<32x128xf32>
    %cst_137 = arith.constant 0.000000e+00 : f32
    %399 = vector.broadcast %cst_137 : f32 to vector<32x128xf32>
    %c0_138 = arith.constant 0 : index
    %c32 = arith.constant 32 : index
    %400 = vector.load %arg2[%c0_138, %c32] : memref<32x202xf32, #tpu.memory_space<vmem>>, vector<32x1xf32>
    %401 = vector.broadcast %400 : vector<32x1xf32> to vector<32x128xf32>
    %402 = arith.mulf %398, %401 : vector<32x128xf32>
    %c0_139 = arith.constant 0 : index
    %c96 = arith.constant 96 : index
    %403 = vector.load %arg2[%c0_139, %c96] : memref<32x202xf32, #tpu.memory_space<vmem>>, vector<32x1xf32>
    %404 = vector.broadcast %403 : vector<32x1xf32> to vector<32x128xf32>
    %405 = arith.addf %402, %404 : vector<32x128xf32>
    %cst_140 = arith.constant 0.000000e+00 : f32
    %406 = vector.broadcast %cst_140 : f32 to vector<32x128xf32>
    %407 = arith.maximumf %405, %406 : vector<32x128xf32>
    %c0_141 = arith.constant 0 : index
    %c160 = arith.constant 160 : index
    %408 = vector.load %arg2[%c0_141, %c160] : memref<32x202xf32, #tpu.memory_space<vmem>>, vector<32x1xf32>
    %409 = vector.broadcast %408 : vector<32x1xf32> to vector<32x128xf32>
    %410 = arith.mulf %407, %409 : vector<32x128xf32>
    %411 = arith.addf %399, %410 : vector<32x128xf32>
    %c0_142 = arith.constant 0 : index
    %c33 = arith.constant 33 : index
    %412 = vector.load %arg2[%c0_142, %c33] : memref<32x202xf32, #tpu.memory_space<vmem>>, vector<32x1xf32>
    %413 = vector.broadcast %412 : vector<32x1xf32> to vector<32x128xf32>
    %414 = arith.mulf %398, %413 : vector<32x128xf32>
    %c0_143 = arith.constant 0 : index
    %c97 = arith.constant 97 : index
    %415 = vector.load %arg2[%c0_143, %c97] : memref<32x202xf32, #tpu.memory_space<vmem>>, vector<32x1xf32>
    %416 = vector.broadcast %415 : vector<32x1xf32> to vector<32x128xf32>
    %417 = arith.addf %414, %416 : vector<32x128xf32>
    %cst_144 = arith.constant 0.000000e+00 : f32
    %418 = vector.broadcast %cst_144 : f32 to vector<32x128xf32>
    %419 = arith.maximumf %417, %418 : vector<32x128xf32>
    %c0_145 = arith.constant 0 : index
    %c161 = arith.constant 161 : index
    %420 = vector.load %arg2[%c0_145, %c161] : memref<32x202xf32, #tpu.memory_space<vmem>>, vector<32x1xf32>
    %421 = vector.broadcast %420 : vector<32x1xf32> to vector<32x128xf32>
    %422 = arith.mulf %419, %421 : vector<32x128xf32>
    %423 = arith.addf %411, %422 : vector<32x128xf32>
    %c0_146 = arith.constant 0 : index
    %c34 = arith.constant 34 : index
    %424 = vector.load %arg2[%c0_146, %c34] : memref<32x202xf32, #tpu.memory_space<vmem>>, vector<32x1xf32>
    %425 = vector.broadcast %424 : vector<32x1xf32> to vector<32x128xf32>
    %426 = arith.mulf %398, %425 : vector<32x128xf32>
    %c0_147 = arith.constant 0 : index
    %c98 = arith.constant 98 : index
    %427 = vector.load %arg2[%c0_147, %c98] : memref<32x202xf32, #tpu.memory_space<vmem>>, vector<32x1xf32>
    %428 = vector.broadcast %427 : vector<32x1xf32> to vector<32x128xf32>
    %429 = arith.addf %426, %428 : vector<32x128xf32>
    %cst_148 = arith.constant 0.000000e+00 : f32
    %430 = vector.broadcast %cst_148 : f32 to vector<32x128xf32>
    %431 = arith.maximumf %429, %430 : vector<32x128xf32>
    %c0_149 = arith.constant 0 : index
    %c162 = arith.constant 162 : index
    %432 = vector.load %arg2[%c0_149, %c162] : memref<32x202xf32, #tpu.memory_space<vmem>>, vector<32x1xf32>
    %433 = vector.broadcast %432 : vector<32x1xf32> to vector<32x128xf32>
    %434 = arith.mulf %431, %433 : vector<32x128xf32>
    %435 = arith.addf %423, %434 : vector<32x128xf32>
    %c0_150 = arith.constant 0 : index
    %c35 = arith.constant 35 : index
    %436 = vector.load %arg2[%c0_150, %c35] : memref<32x202xf32, #tpu.memory_space<vmem>>, vector<32x1xf32>
    %437 = vector.broadcast %436 : vector<32x1xf32> to vector<32x128xf32>
    %438 = arith.mulf %398, %437 : vector<32x128xf32>
    %c0_151 = arith.constant 0 : index
    %c99 = arith.constant 99 : index
    %439 = vector.load %arg2[%c0_151, %c99] : memref<32x202xf32, #tpu.memory_space<vmem>>, vector<32x1xf32>
    %440 = vector.broadcast %439 : vector<32x1xf32> to vector<32x128xf32>
    %441 = arith.addf %438, %440 : vector<32x128xf32>
    %cst_152 = arith.constant 0.000000e+00 : f32
    %442 = vector.broadcast %cst_152 : f32 to vector<32x128xf32>
    %443 = arith.maximumf %441, %442 : vector<32x128xf32>
    %c0_153 = arith.constant 0 : index
    %c163 = arith.constant 163 : index
    %444 = vector.load %arg2[%c0_153, %c163] : memref<32x202xf32, #tpu.memory_space<vmem>>, vector<32x1xf32>
    %445 = vector.broadcast %444 : vector<32x1xf32> to vector<32x128xf32>
    %446 = arith.mulf %443, %445 : vector<32x128xf32>
    %447 = arith.addf %435, %446 : vector<32x128xf32>
    %c0_154 = arith.constant 0 : index
    %c36 = arith.constant 36 : index
    %448 = vector.load %arg2[%c0_154, %c36] : memref<32x202xf32, #tpu.memory_space<vmem>>, vector<32x1xf32>
    %449 = vector.broadcast %448 : vector<32x1xf32> to vector<32x128xf32>
    %450 = arith.mulf %398, %449 : vector<32x128xf32>
    %c0_155 = arith.constant 0 : index
    %c100 = arith.constant 100 : index
    %451 = vector.load %arg2[%c0_155, %c100] : memref<32x202xf32, #tpu.memory_space<vmem>>, vector<32x1xf32>
    %452 = vector.broadcast %451 : vector<32x1xf32> to vector<32x128xf32>
    %453 = arith.addf %450, %452 : vector<32x128xf32>
    %cst_156 = arith.constant 0.000000e+00 : f32
    %454 = vector.broadcast %cst_156 : f32 to vector<32x128xf32>
    %455 = arith.maximumf %453, %454 : vector<32x128xf32>
    %c0_157 = arith.constant 0 : index
    %c164 = arith.constant 164 : index
    %456 = vector.load %arg2[%c0_157, %c164] : memref<32x202xf32, #tpu.memory_space<vmem>>, vector<32x1xf32>
    %457 = vector.broadcast %456 : vector<32x1xf32> to vector<32x128xf32>
    %458 = arith.mulf %455, %457 : vector<32x128xf32>
    %459 = arith.addf %447, %458 : vector<32x128xf32>
    %c0_158 = arith.constant 0 : index
    %c37 = arith.constant 37 : index
    %460 = vector.load %arg2[%c0_158, %c37] : memref<32x202xf32, #tpu.memory_space<vmem>>, vector<32x1xf32>
    %461 = vector.broadcast %460 : vector<32x1xf32> to vector<32x128xf32>
    %462 = arith.mulf %398, %461 : vector<32x128xf32>
    %c0_159 = arith.constant 0 : index
    %c101 = arith.constant 101 : index
    %463 = vector.load %arg2[%c0_159, %c101] : memref<32x202xf32, #tpu.memory_space<vmem>>, vector<32x1xf32>
    %464 = vector.broadcast %463 : vector<32x1xf32> to vector<32x128xf32>
    %465 = arith.addf %462, %464 : vector<32x128xf32>
    %cst_160 = arith.constant 0.000000e+00 : f32
    %466 = vector.broadcast %cst_160 : f32 to vector<32x128xf32>
    %467 = arith.maximumf %465, %466 : vector<32x128xf32>
    %c0_161 = arith.constant 0 : index
    %c165 = arith.constant 165 : index
    %468 = vector.load %arg2[%c0_161, %c165] : memref<32x202xf32, #tpu.memory_space<vmem>>, vector<32x1xf32>
    %469 = vector.broadcast %468 : vector<32x1xf32> to vector<32x128xf32>
    %470 = arith.mulf %467, %469 : vector<32x128xf32>
    %471 = arith.addf %459, %470 : vector<32x128xf32>
    %c0_162 = arith.constant 0 : index
    %c38 = arith.constant 38 : index
    %472 = vector.load %arg2[%c0_162, %c38] : memref<32x202xf32, #tpu.memory_space<vmem>>, vector<32x1xf32>
    %473 = vector.broadcast %472 : vector<32x1xf32> to vector<32x128xf32>
    %474 = arith.mulf %398, %473 : vector<32x128xf32>
    %c0_163 = arith.constant 0 : index
    %c102 = arith.constant 102 : index
    %475 = vector.load %arg2[%c0_163, %c102] : memref<32x202xf32, #tpu.memory_space<vmem>>, vector<32x1xf32>
    %476 = vector.broadcast %475 : vector<32x1xf32> to vector<32x128xf32>
    %477 = arith.addf %474, %476 : vector<32x128xf32>
    %cst_164 = arith.constant 0.000000e+00 : f32
    %478 = vector.broadcast %cst_164 : f32 to vector<32x128xf32>
    %479 = arith.maximumf %477, %478 : vector<32x128xf32>
    %c0_165 = arith.constant 0 : index
    %c166 = arith.constant 166 : index
    %480 = vector.load %arg2[%c0_165, %c166] : memref<32x202xf32, #tpu.memory_space<vmem>>, vector<32x1xf32>
    %481 = vector.broadcast %480 : vector<32x1xf32> to vector<32x128xf32>
    %482 = arith.mulf %479, %481 : vector<32x128xf32>
    %483 = arith.addf %471, %482 : vector<32x128xf32>
    %c0_166 = arith.constant 0 : index
    %c39 = arith.constant 39 : index
    %484 = vector.load %arg2[%c0_166, %c39] : memref<32x202xf32, #tpu.memory_space<vmem>>, vector<32x1xf32>
    %485 = vector.broadcast %484 : vector<32x1xf32> to vector<32x128xf32>
    %486 = arith.mulf %398, %485 : vector<32x128xf32>
    %c0_167 = arith.constant 0 : index
    %c103 = arith.constant 103 : index
    %487 = vector.load %arg2[%c0_167, %c103] : memref<32x202xf32, #tpu.memory_space<vmem>>, vector<32x1xf32>
    %488 = vector.broadcast %487 : vector<32x1xf32> to vector<32x128xf32>
    %489 = arith.addf %486, %488 : vector<32x128xf32>
    %cst_168 = arith.constant 0.000000e+00 : f32
    %490 = vector.broadcast %cst_168 : f32 to vector<32x128xf32>
    %491 = arith.maximumf %489, %490 : vector<32x128xf32>
    %c0_169 = arith.constant 0 : index
    %c167 = arith.constant 167 : index
    %492 = vector.load %arg2[%c0_169, %c167] : memref<32x202xf32, #tpu.memory_space<vmem>>, vector<32x1xf32>
    %493 = vector.broadcast %492 : vector<32x1xf32> to vector<32x128xf32>
    %494 = arith.mulf %491, %493 : vector<32x128xf32>
    %495 = arith.addf %483, %494 : vector<32x128xf32>
    %c0_170 = arith.constant 0 : index
    %c40 = arith.constant 40 : index
    %496 = vector.load %arg2[%c0_170, %c40] : memref<32x202xf32, #tpu.memory_space<vmem>>, vector<32x1xf32>
    %497 = vector.broadcast %496 : vector<32x1xf32> to vector<32x128xf32>
    %498 = arith.mulf %398, %497 : vector<32x128xf32>
    %c0_171 = arith.constant 0 : index
    %c104 = arith.constant 104 : index
    %499 = vector.load %arg2[%c0_171, %c104] : memref<32x202xf32, #tpu.memory_space<vmem>>, vector<32x1xf32>
    %500 = vector.broadcast %499 : vector<32x1xf32> to vector<32x128xf32>
    %501 = arith.addf %498, %500 : vector<32x128xf32>
    %cst_172 = arith.constant 0.000000e+00 : f32
    %502 = vector.broadcast %cst_172 : f32 to vector<32x128xf32>
    %503 = arith.maximumf %501, %502 : vector<32x128xf32>
    %c0_173 = arith.constant 0 : index
    %c168 = arith.constant 168 : index
    %504 = vector.load %arg2[%c0_173, %c168] : memref<32x202xf32, #tpu.memory_space<vmem>>, vector<32x1xf32>
    %505 = vector.broadcast %504 : vector<32x1xf32> to vector<32x128xf32>
    %506 = arith.mulf %503, %505 : vector<32x128xf32>
    %507 = arith.addf %495, %506 : vector<32x128xf32>
    %c0_174 = arith.constant 0 : index
    %c41 = arith.constant 41 : index
    %508 = vector.load %arg2[%c0_174, %c41] : memref<32x202xf32, #tpu.memory_space<vmem>>, vector<32x1xf32>
    %509 = vector.broadcast %508 : vector<32x1xf32> to vector<32x128xf32>
    %510 = arith.mulf %398, %509 : vector<32x128xf32>
    %c0_175 = arith.constant 0 : index
    %c105 = arith.constant 105 : index
    %511 = vector.load %arg2[%c0_175, %c105] : memref<32x202xf32, #tpu.memory_space<vmem>>, vector<32x1xf32>
    %512 = vector.broadcast %511 : vector<32x1xf32> to vector<32x128xf32>
    %513 = arith.addf %510, %512 : vector<32x128xf32>
    %cst_176 = arith.constant 0.000000e+00 : f32
    %514 = vector.broadcast %cst_176 : f32 to vector<32x128xf32>
    %515 = arith.maximumf %513, %514 : vector<32x128xf32>
    %c0_177 = arith.constant 0 : index
    %c169 = arith.constant 169 : index
    %516 = vector.load %arg2[%c0_177, %c169] : memref<32x202xf32, #tpu.memory_space<vmem>>, vector<32x1xf32>
    %517 = vector.broadcast %516 : vector<32x1xf32> to vector<32x128xf32>
    %518 = arith.mulf %515, %517 : vector<32x128xf32>
    %519 = arith.addf %507, %518 : vector<32x128xf32>
    %c0_178 = arith.constant 0 : index
    %c42 = arith.constant 42 : index
    %520 = vector.load %arg2[%c0_178, %c42] : memref<32x202xf32, #tpu.memory_space<vmem>>, vector<32x1xf32>
    %521 = vector.broadcast %520 : vector<32x1xf32> to vector<32x128xf32>
    %522 = arith.mulf %398, %521 : vector<32x128xf32>
    %c0_179 = arith.constant 0 : index
    %c106 = arith.constant 106 : index
    %523 = vector.load %arg2[%c0_179, %c106] : memref<32x202xf32, #tpu.memory_space<vmem>>, vector<32x1xf32>
    %524 = vector.broadcast %523 : vector<32x1xf32> to vector<32x128xf32>
    %525 = arith.addf %522, %524 : vector<32x128xf32>
    %cst_180 = arith.constant 0.000000e+00 : f32
    %526 = vector.broadcast %cst_180 : f32 to vector<32x128xf32>
    %527 = arith.maximumf %525, %526 : vector<32x128xf32>
    %c0_181 = arith.constant 0 : index
    %c170 = arith.constant 170 : index
    %528 = vector.load %arg2[%c0_181, %c170] : memref<32x202xf32, #tpu.memory_space<vmem>>, vector<32x1xf32>
    %529 = vector.broadcast %528 : vector<32x1xf32> to vector<32x128xf32>
    %530 = arith.mulf %527, %529 : vector<32x128xf32>
    %531 = arith.addf %519, %530 : vector<32x128xf32>
    %c0_182 = arith.constant 0 : index
    %c43 = arith.constant 43 : index
    %532 = vector.load %arg2[%c0_182, %c43] : memref<32x202xf32, #tpu.memory_space<vmem>>, vector<32x1xf32>
    %533 = vector.broadcast %532 : vector<32x1xf32> to vector<32x128xf32>
    %534 = arith.mulf %398, %533 : vector<32x128xf32>
    %c0_183 = arith.constant 0 : index
    %c107 = arith.constant 107 : index
    %535 = vector.load %arg2[%c0_183, %c107] : memref<32x202xf32, #tpu.memory_space<vmem>>, vector<32x1xf32>
    %536 = vector.broadcast %535 : vector<32x1xf32> to vector<32x128xf32>
    %537 = arith.addf %534, %536 : vector<32x128xf32>
    %cst_184 = arith.constant 0.000000e+00 : f32
    %538 = vector.broadcast %cst_184 : f32 to vector<32x128xf32>
    %539 = arith.maximumf %537, %538 : vector<32x128xf32>
    %c0_185 = arith.constant 0 : index
    %c171 = arith.constant 171 : index
    %540 = vector.load %arg2[%c0_185, %c171] : memref<32x202xf32, #tpu.memory_space<vmem>>, vector<32x1xf32>
    %541 = vector.broadcast %540 : vector<32x1xf32> to vector<32x128xf32>
    %542 = arith.mulf %539, %541 : vector<32x128xf32>
    %543 = arith.addf %531, %542 : vector<32x128xf32>
    %c0_186 = arith.constant 0 : index
    %c44 = arith.constant 44 : index
    %544 = vector.load %arg2[%c0_186, %c44] : memref<32x202xf32, #tpu.memory_space<vmem>>, vector<32x1xf32>
    %545 = vector.broadcast %544 : vector<32x1xf32> to vector<32x128xf32>
    %546 = arith.mulf %398, %545 : vector<32x128xf32>
    %c0_187 = arith.constant 0 : index
    %c108 = arith.constant 108 : index
    %547 = vector.load %arg2[%c0_187, %c108] : memref<32x202xf32, #tpu.memory_space<vmem>>, vector<32x1xf32>
    %548 = vector.broadcast %547 : vector<32x1xf32> to vector<32x128xf32>
    %549 = arith.addf %546, %548 : vector<32x128xf32>
    %cst_188 = arith.constant 0.000000e+00 : f32
    %550 = vector.broadcast %cst_188 : f32 to vector<32x128xf32>
    %551 = arith.maximumf %549, %550 : vector<32x128xf32>
    %c0_189 = arith.constant 0 : index
    %c172 = arith.constant 172 : index
    %552 = vector.load %arg2[%c0_189, %c172] : memref<32x202xf32, #tpu.memory_space<vmem>>, vector<32x1xf32>
    %553 = vector.broadcast %552 : vector<32x1xf32> to vector<32x128xf32>
    %554 = arith.mulf %551, %553 : vector<32x128xf32>
    %555 = arith.addf %543, %554 : vector<32x128xf32>
    %c0_190 = arith.constant 0 : index
    %c45 = arith.constant 45 : index
    %556 = vector.load %arg2[%c0_190, %c45] : memref<32x202xf32, #tpu.memory_space<vmem>>, vector<32x1xf32>
    %557 = vector.broadcast %556 : vector<32x1xf32> to vector<32x128xf32>
    %558 = arith.mulf %398, %557 : vector<32x128xf32>
    %c0_191 = arith.constant 0 : index
    %c109 = arith.constant 109 : index
    %559 = vector.load %arg2[%c0_191, %c109] : memref<32x202xf32, #tpu.memory_space<vmem>>, vector<32x1xf32>
    %560 = vector.broadcast %559 : vector<32x1xf32> to vector<32x128xf32>
    %561 = arith.addf %558, %560 : vector<32x128xf32>
    %cst_192 = arith.constant 0.000000e+00 : f32
    %562 = vector.broadcast %cst_192 : f32 to vector<32x128xf32>
    %563 = arith.maximumf %561, %562 : vector<32x128xf32>
    %c0_193 = arith.constant 0 : index
    %c173 = arith.constant 173 : index
    %564 = vector.load %arg2[%c0_193, %c173] : memref<32x202xf32, #tpu.memory_space<vmem>>, vector<32x1xf32>
    %565 = vector.broadcast %564 : vector<32x1xf32> to vector<32x128xf32>
    %566 = arith.mulf %563, %565 : vector<32x128xf32>
    %567 = arith.addf %555, %566 : vector<32x128xf32>
    %c0_194 = arith.constant 0 : index
    %c46 = arith.constant 46 : index
    %568 = vector.load %arg2[%c0_194, %c46] : memref<32x202xf32, #tpu.memory_space<vmem>>, vector<32x1xf32>
    %569 = vector.broadcast %568 : vector<32x1xf32> to vector<32x128xf32>
    %570 = arith.mulf %398, %569 : vector<32x128xf32>
    %c0_195 = arith.constant 0 : index
    %c110 = arith.constant 110 : index
    %571 = vector.load %arg2[%c0_195, %c110] : memref<32x202xf32, #tpu.memory_space<vmem>>, vector<32x1xf32>
    %572 = vector.broadcast %571 : vector<32x1xf32> to vector<32x128xf32>
    %573 = arith.addf %570, %572 : vector<32x128xf32>
    %cst_196 = arith.constant 0.000000e+00 : f32
    %574 = vector.broadcast %cst_196 : f32 to vector<32x128xf32>
    %575 = arith.maximumf %573, %574 : vector<32x128xf32>
    %c0_197 = arith.constant 0 : index
    %c174 = arith.constant 174 : index
    %576 = vector.load %arg2[%c0_197, %c174] : memref<32x202xf32, #tpu.memory_space<vmem>>, vector<32x1xf32>
    %577 = vector.broadcast %576 : vector<32x1xf32> to vector<32x128xf32>
    %578 = arith.mulf %575, %577 : vector<32x128xf32>
    %579 = arith.addf %567, %578 : vector<32x128xf32>
    %c0_198 = arith.constant 0 : index
    %c47 = arith.constant 47 : index
    %580 = vector.load %arg2[%c0_198, %c47] : memref<32x202xf32, #tpu.memory_space<vmem>>, vector<32x1xf32>
    %581 = vector.broadcast %580 : vector<32x1xf32> to vector<32x128xf32>
    %582 = arith.mulf %398, %581 : vector<32x128xf32>
    %c0_199 = arith.constant 0 : index
    %c111 = arith.constant 111 : index
    %583 = vector.load %arg2[%c0_199, %c111] : memref<32x202xf32, #tpu.memory_space<vmem>>, vector<32x1xf32>
    %584 = vector.broadcast %583 : vector<32x1xf32> to vector<32x128xf32>
    %585 = arith.addf %582, %584 : vector<32x128xf32>
    %cst_200 = arith.constant 0.000000e+00 : f32
    %586 = vector.broadcast %cst_200 : f32 to vector<32x128xf32>
    %587 = arith.maximumf %585, %586 : vector<32x128xf32>
    %c0_201 = arith.constant 0 : index
    %c175 = arith.constant 175 : index
    %588 = vector.load %arg2[%c0_201, %c175] : memref<32x202xf32, #tpu.memory_space<vmem>>, vector<32x1xf32>
    %589 = vector.broadcast %588 : vector<32x1xf32> to vector<32x128xf32>
    %590 = arith.mulf %587, %589 : vector<32x128xf32>
    %591 = arith.addf %579, %590 : vector<32x128xf32>
    %c0_202 = arith.constant 0 : index
    %c194 = arith.constant 194 : index
    %592 = vector.load %arg2[%c0_202, %c194] : memref<32x202xf32, #tpu.memory_space<vmem>>, vector<32x1xf32>
    %593 = vector.broadcast %592 : vector<32x1xf32> to vector<32x128xf32>
    %594 = arith.addf %591, %593 : vector<32x128xf32>
    %cst_203 = arith.constant 0.000000e+00 : f32
    %595 = vector.broadcast %cst_203 : f32 to vector<32x128xf32>
    %c0_204 = arith.constant 0 : index
    %c48 = arith.constant 48 : index
    %596 = vector.load %arg2[%c0_204, %c48] : memref<32x202xf32, #tpu.memory_space<vmem>>, vector<32x1xf32>
    %597 = vector.broadcast %596 : vector<32x1xf32> to vector<32x128xf32>
    %598 = arith.mulf %398, %597 : vector<32x128xf32>
    %c0_205 = arith.constant 0 : index
    %c112 = arith.constant 112 : index
    %599 = vector.load %arg2[%c0_205, %c112] : memref<32x202xf32, #tpu.memory_space<vmem>>, vector<32x1xf32>
    %600 = vector.broadcast %599 : vector<32x1xf32> to vector<32x128xf32>
    %601 = arith.addf %598, %600 : vector<32x128xf32>
    %cst_206 = arith.constant 0.000000e+00 : f32
    %602 = vector.broadcast %cst_206 : f32 to vector<32x128xf32>
    %603 = arith.maximumf %601, %602 : vector<32x128xf32>
    %c0_207 = arith.constant 0 : index
    %c176 = arith.constant 176 : index
    %604 = vector.load %arg2[%c0_207, %c176] : memref<32x202xf32, #tpu.memory_space<vmem>>, vector<32x1xf32>
    %605 = vector.broadcast %604 : vector<32x1xf32> to vector<32x128xf32>
    %606 = arith.mulf %603, %605 : vector<32x128xf32>
    %607 = arith.addf %595, %606 : vector<32x128xf32>
    %c0_208 = arith.constant 0 : index
    %c49 = arith.constant 49 : index
    %608 = vector.load %arg2[%c0_208, %c49] : memref<32x202xf32, #tpu.memory_space<vmem>>, vector<32x1xf32>
    %609 = vector.broadcast %608 : vector<32x1xf32> to vector<32x128xf32>
    %610 = arith.mulf %398, %609 : vector<32x128xf32>
    %c0_209 = arith.constant 0 : index
    %c113 = arith.constant 113 : index
    %611 = vector.load %arg2[%c0_209, %c113] : memref<32x202xf32, #tpu.memory_space<vmem>>, vector<32x1xf32>
    %612 = vector.broadcast %611 : vector<32x1xf32> to vector<32x128xf32>
    %613 = arith.addf %610, %612 : vector<32x128xf32>
    %cst_210 = arith.constant 0.000000e+00 : f32
    %614 = vector.broadcast %cst_210 : f32 to vector<32x128xf32>
    %615 = arith.maximumf %613, %614 : vector<32x128xf32>
    %c0_211 = arith.constant 0 : index
    %c177 = arith.constant 177 : index
    %616 = vector.load %arg2[%c0_211, %c177] : memref<32x202xf32, #tpu.memory_space<vmem>>, vector<32x1xf32>
    %617 = vector.broadcast %616 : vector<32x1xf32> to vector<32x128xf32>
    %618 = arith.mulf %615, %617 : vector<32x128xf32>
    %619 = arith.addf %607, %618 : vector<32x128xf32>
    %c0_212 = arith.constant 0 : index
    %c50 = arith.constant 50 : index
    %620 = vector.load %arg2[%c0_212, %c50] : memref<32x202xf32, #tpu.memory_space<vmem>>, vector<32x1xf32>
    %621 = vector.broadcast %620 : vector<32x1xf32> to vector<32x128xf32>
    %622 = arith.mulf %398, %621 : vector<32x128xf32>
    %c0_213 = arith.constant 0 : index
    %c114 = arith.constant 114 : index
    %623 = vector.load %arg2[%c0_213, %c114] : memref<32x202xf32, #tpu.memory_space<vmem>>, vector<32x1xf32>
    %624 = vector.broadcast %623 : vector<32x1xf32> to vector<32x128xf32>
    %625 = arith.addf %622, %624 : vector<32x128xf32>
    %cst_214 = arith.constant 0.000000e+00 : f32
    %626 = vector.broadcast %cst_214 : f32 to vector<32x128xf32>
    %627 = arith.maximumf %625, %626 : vector<32x128xf32>
    %c0_215 = arith.constant 0 : index
    %c178 = arith.constant 178 : index
    %628 = vector.load %arg2[%c0_215, %c178] : memref<32x202xf32, #tpu.memory_space<vmem>>, vector<32x1xf32>
    %629 = vector.broadcast %628 : vector<32x1xf32> to vector<32x128xf32>
    %630 = arith.mulf %627, %629 : vector<32x128xf32>
    %631 = arith.addf %619, %630 : vector<32x128xf32>
    %c0_216 = arith.constant 0 : index
    %c51 = arith.constant 51 : index
    %632 = vector.load %arg2[%c0_216, %c51] : memref<32x202xf32, #tpu.memory_space<vmem>>, vector<32x1xf32>
    %633 = vector.broadcast %632 : vector<32x1xf32> to vector<32x128xf32>
    %634 = arith.mulf %398, %633 : vector<32x128xf32>
    %c0_217 = arith.constant 0 : index
    %c115 = arith.constant 115 : index
    %635 = vector.load %arg2[%c0_217, %c115] : memref<32x202xf32, #tpu.memory_space<vmem>>, vector<32x1xf32>
    %636 = vector.broadcast %635 : vector<32x1xf32> to vector<32x128xf32>
    %637 = arith.addf %634, %636 : vector<32x128xf32>
    %cst_218 = arith.constant 0.000000e+00 : f32
    %638 = vector.broadcast %cst_218 : f32 to vector<32x128xf32>
    %639 = arith.maximumf %637, %638 : vector<32x128xf32>
    %c0_219 = arith.constant 0 : index
    %c179 = arith.constant 179 : index
    %640 = vector.load %arg2[%c0_219, %c179] : memref<32x202xf32, #tpu.memory_space<vmem>>, vector<32x1xf32>
    %641 = vector.broadcast %640 : vector<32x1xf32> to vector<32x128xf32>
    %642 = arith.mulf %639, %641 : vector<32x128xf32>
    %643 = arith.addf %631, %642 : vector<32x128xf32>
    %c0_220 = arith.constant 0 : index
    %c52 = arith.constant 52 : index
    %644 = vector.load %arg2[%c0_220, %c52] : memref<32x202xf32, #tpu.memory_space<vmem>>, vector<32x1xf32>
    %645 = vector.broadcast %644 : vector<32x1xf32> to vector<32x128xf32>
    %646 = arith.mulf %398, %645 : vector<32x128xf32>
    %c0_221 = arith.constant 0 : index
    %c116 = arith.constant 116 : index
    %647 = vector.load %arg2[%c0_221, %c116] : memref<32x202xf32, #tpu.memory_space<vmem>>, vector<32x1xf32>
    %648 = vector.broadcast %647 : vector<32x1xf32> to vector<32x128xf32>
    %649 = arith.addf %646, %648 : vector<32x128xf32>
    %cst_222 = arith.constant 0.000000e+00 : f32
    %650 = vector.broadcast %cst_222 : f32 to vector<32x128xf32>
    %651 = arith.maximumf %649, %650 : vector<32x128xf32>
    %c0_223 = arith.constant 0 : index
    %c180 = arith.constant 180 : index
    %652 = vector.load %arg2[%c0_223, %c180] : memref<32x202xf32, #tpu.memory_space<vmem>>, vector<32x1xf32>
    %653 = vector.broadcast %652 : vector<32x1xf32> to vector<32x128xf32>
    %654 = arith.mulf %651, %653 : vector<32x128xf32>
    %655 = arith.addf %643, %654 : vector<32x128xf32>
    %c0_224 = arith.constant 0 : index
    %c53 = arith.constant 53 : index
    %656 = vector.load %arg2[%c0_224, %c53] : memref<32x202xf32, #tpu.memory_space<vmem>>, vector<32x1xf32>
    %657 = vector.broadcast %656 : vector<32x1xf32> to vector<32x128xf32>
    %658 = arith.mulf %398, %657 : vector<32x128xf32>
    %c0_225 = arith.constant 0 : index
    %c117 = arith.constant 117 : index
    %659 = vector.load %arg2[%c0_225, %c117] : memref<32x202xf32, #tpu.memory_space<vmem>>, vector<32x1xf32>
    %660 = vector.broadcast %659 : vector<32x1xf32> to vector<32x128xf32>
    %661 = arith.addf %658, %660 : vector<32x128xf32>
    %cst_226 = arith.constant 0.000000e+00 : f32
    %662 = vector.broadcast %cst_226 : f32 to vector<32x128xf32>
    %663 = arith.maximumf %661, %662 : vector<32x128xf32>
    %c0_227 = arith.constant 0 : index
    %c181 = arith.constant 181 : index
    %664 = vector.load %arg2[%c0_227, %c181] : memref<32x202xf32, #tpu.memory_space<vmem>>, vector<32x1xf32>
    %665 = vector.broadcast %664 : vector<32x1xf32> to vector<32x128xf32>
    %666 = arith.mulf %663, %665 : vector<32x128xf32>
    %667 = arith.addf %655, %666 : vector<32x128xf32>
    %c0_228 = arith.constant 0 : index
    %c54 = arith.constant 54 : index
    %668 = vector.load %arg2[%c0_228, %c54] : memref<32x202xf32, #tpu.memory_space<vmem>>, vector<32x1xf32>
    %669 = vector.broadcast %668 : vector<32x1xf32> to vector<32x128xf32>
    %670 = arith.mulf %398, %669 : vector<32x128xf32>
    %c0_229 = arith.constant 0 : index
    %c118 = arith.constant 118 : index
    %671 = vector.load %arg2[%c0_229, %c118] : memref<32x202xf32, #tpu.memory_space<vmem>>, vector<32x1xf32>
    %672 = vector.broadcast %671 : vector<32x1xf32> to vector<32x128xf32>
    %673 = arith.addf %670, %672 : vector<32x128xf32>
    %cst_230 = arith.constant 0.000000e+00 : f32
    %674 = vector.broadcast %cst_230 : f32 to vector<32x128xf32>
    %675 = arith.maximumf %673, %674 : vector<32x128xf32>
    %c0_231 = arith.constant 0 : index
    %c182 = arith.constant 182 : index
    %676 = vector.load %arg2[%c0_231, %c182] : memref<32x202xf32, #tpu.memory_space<vmem>>, vector<32x1xf32>
    %677 = vector.broadcast %676 : vector<32x1xf32> to vector<32x128xf32>
    %678 = arith.mulf %675, %677 : vector<32x128xf32>
    %679 = arith.addf %667, %678 : vector<32x128xf32>
    %c0_232 = arith.constant 0 : index
    %c55 = arith.constant 55 : index
    %680 = vector.load %arg2[%c0_232, %c55] : memref<32x202xf32, #tpu.memory_space<vmem>>, vector<32x1xf32>
    %681 = vector.broadcast %680 : vector<32x1xf32> to vector<32x128xf32>
    %682 = arith.mulf %398, %681 : vector<32x128xf32>
    %c0_233 = arith.constant 0 : index
    %c119 = arith.constant 119 : index
    %683 = vector.load %arg2[%c0_233, %c119] : memref<32x202xf32, #tpu.memory_space<vmem>>, vector<32x1xf32>
    %684 = vector.broadcast %683 : vector<32x1xf32> to vector<32x128xf32>
    %685 = arith.addf %682, %684 : vector<32x128xf32>
    %cst_234 = arith.constant 0.000000e+00 : f32
    %686 = vector.broadcast %cst_234 : f32 to vector<32x128xf32>
    %687 = arith.maximumf %685, %686 : vector<32x128xf32>
    %c0_235 = arith.constant 0 : index
    %c183 = arith.constant 183 : index
    %688 = vector.load %arg2[%c0_235, %c183] : memref<32x202xf32, #tpu.memory_space<vmem>>, vector<32x1xf32>
    %689 = vector.broadcast %688 : vector<32x1xf32> to vector<32x128xf32>
    %690 = arith.mulf %687, %689 : vector<32x128xf32>
    %691 = arith.addf %679, %690 : vector<32x128xf32>
    %c0_236 = arith.constant 0 : index
    %c56 = arith.constant 56 : index
    %692 = vector.load %arg2[%c0_236, %c56] : memref<32x202xf32, #tpu.memory_space<vmem>>, vector<32x1xf32>
    %693 = vector.broadcast %692 : vector<32x1xf32> to vector<32x128xf32>
    %694 = arith.mulf %398, %693 : vector<32x128xf32>
    %c0_237 = arith.constant 0 : index
    %c120 = arith.constant 120 : index
    %695 = vector.load %arg2[%c0_237, %c120] : memref<32x202xf32, #tpu.memory_space<vmem>>, vector<32x1xf32>
    %696 = vector.broadcast %695 : vector<32x1xf32> to vector<32x128xf32>
    %697 = arith.addf %694, %696 : vector<32x128xf32>
    %cst_238 = arith.constant 0.000000e+00 : f32
    %698 = vector.broadcast %cst_238 : f32 to vector<32x128xf32>
    %699 = arith.maximumf %697, %698 : vector<32x128xf32>
    %c0_239 = arith.constant 0 : index
    %c184 = arith.constant 184 : index
    %700 = vector.load %arg2[%c0_239, %c184] : memref<32x202xf32, #tpu.memory_space<vmem>>, vector<32x1xf32>
    %701 = vector.broadcast %700 : vector<32x1xf32> to vector<32x128xf32>
    %702 = arith.mulf %699, %701 : vector<32x128xf32>
    %703 = arith.addf %691, %702 : vector<32x128xf32>
    %c0_240 = arith.constant 0 : index
    %c57 = arith.constant 57 : index
    %704 = vector.load %arg2[%c0_240, %c57] : memref<32x202xf32, #tpu.memory_space<vmem>>, vector<32x1xf32>
    %705 = vector.broadcast %704 : vector<32x1xf32> to vector<32x128xf32>
    %706 = arith.mulf %398, %705 : vector<32x128xf32>
    %c0_241 = arith.constant 0 : index
    %c121 = arith.constant 121 : index
    %707 = vector.load %arg2[%c0_241, %c121] : memref<32x202xf32, #tpu.memory_space<vmem>>, vector<32x1xf32>
    %708 = vector.broadcast %707 : vector<32x1xf32> to vector<32x128xf32>
    %709 = arith.addf %706, %708 : vector<32x128xf32>
    %cst_242 = arith.constant 0.000000e+00 : f32
    %710 = vector.broadcast %cst_242 : f32 to vector<32x128xf32>
    %711 = arith.maximumf %709, %710 : vector<32x128xf32>
    %c0_243 = arith.constant 0 : index
    %c185 = arith.constant 185 : index
    %712 = vector.load %arg2[%c0_243, %c185] : memref<32x202xf32, #tpu.memory_space<vmem>>, vector<32x1xf32>
    %713 = vector.broadcast %712 : vector<32x1xf32> to vector<32x128xf32>
    %714 = arith.mulf %711, %713 : vector<32x128xf32>
    %715 = arith.addf %703, %714 : vector<32x128xf32>
    %c0_244 = arith.constant 0 : index
    %c58 = arith.constant 58 : index
    %716 = vector.load %arg2[%c0_244, %c58] : memref<32x202xf32, #tpu.memory_space<vmem>>, vector<32x1xf32>
    %717 = vector.broadcast %716 : vector<32x1xf32> to vector<32x128xf32>
    %718 = arith.mulf %398, %717 : vector<32x128xf32>
    %c0_245 = arith.constant 0 : index
    %c122 = arith.constant 122 : index
    %719 = vector.load %arg2[%c0_245, %c122] : memref<32x202xf32, #tpu.memory_space<vmem>>, vector<32x1xf32>
    %720 = vector.broadcast %719 : vector<32x1xf32> to vector<32x128xf32>
    %721 = arith.addf %718, %720 : vector<32x128xf32>
    %cst_246 = arith.constant 0.000000e+00 : f32
    %722 = vector.broadcast %cst_246 : f32 to vector<32x128xf32>
    %723 = arith.maximumf %721, %722 : vector<32x128xf32>
    %c0_247 = arith.constant 0 : index
    %c186 = arith.constant 186 : index
    %724 = vector.load %arg2[%c0_247, %c186] : memref<32x202xf32, #tpu.memory_space<vmem>>, vector<32x1xf32>
    %725 = vector.broadcast %724 : vector<32x1xf32> to vector<32x128xf32>
    %726 = arith.mulf %723, %725 : vector<32x128xf32>
    %727 = arith.addf %715, %726 : vector<32x128xf32>
    %c0_248 = arith.constant 0 : index
    %c59 = arith.constant 59 : index
    %728 = vector.load %arg2[%c0_248, %c59] : memref<32x202xf32, #tpu.memory_space<vmem>>, vector<32x1xf32>
    %729 = vector.broadcast %728 : vector<32x1xf32> to vector<32x128xf32>
    %730 = arith.mulf %398, %729 : vector<32x128xf32>
    %c0_249 = arith.constant 0 : index
    %c123 = arith.constant 123 : index
    %731 = vector.load %arg2[%c0_249, %c123] : memref<32x202xf32, #tpu.memory_space<vmem>>, vector<32x1xf32>
    %732 = vector.broadcast %731 : vector<32x1xf32> to vector<32x128xf32>
    %733 = arith.addf %730, %732 : vector<32x128xf32>
    %cst_250 = arith.constant 0.000000e+00 : f32
    %734 = vector.broadcast %cst_250 : f32 to vector<32x128xf32>
    %735 = arith.maximumf %733, %734 : vector<32x128xf32>
    %c0_251 = arith.constant 0 : index
    %c187 = arith.constant 187 : index
    %736 = vector.load %arg2[%c0_251, %c187] : memref<32x202xf32, #tpu.memory_space<vmem>>, vector<32x1xf32>
    %737 = vector.broadcast %736 : vector<32x1xf32> to vector<32x128xf32>
    %738 = arith.mulf %735, %737 : vector<32x128xf32>
    %739 = arith.addf %727, %738 : vector<32x128xf32>
    %c0_252 = arith.constant 0 : index
    %c60 = arith.constant 60 : index
    %740 = vector.load %arg2[%c0_252, %c60] : memref<32x202xf32, #tpu.memory_space<vmem>>, vector<32x1xf32>
    %741 = vector.broadcast %740 : vector<32x1xf32> to vector<32x128xf32>
    %742 = arith.mulf %398, %741 : vector<32x128xf32>
    %c0_253 = arith.constant 0 : index
    %c124 = arith.constant 124 : index
    %743 = vector.load %arg2[%c0_253, %c124] : memref<32x202xf32, #tpu.memory_space<vmem>>, vector<32x1xf32>
    %744 = vector.broadcast %743 : vector<32x1xf32> to vector<32x128xf32>
    %745 = arith.addf %742, %744 : vector<32x128xf32>
    %cst_254 = arith.constant 0.000000e+00 : f32
    %746 = vector.broadcast %cst_254 : f32 to vector<32x128xf32>
    %747 = arith.maximumf %745, %746 : vector<32x128xf32>
    %c0_255 = arith.constant 0 : index
    %c188 = arith.constant 188 : index
    %748 = vector.load %arg2[%c0_255, %c188] : memref<32x202xf32, #tpu.memory_space<vmem>>, vector<32x1xf32>
    %749 = vector.broadcast %748 : vector<32x1xf32> to vector<32x128xf32>
    %750 = arith.mulf %747, %749 : vector<32x128xf32>
    %751 = arith.addf %739, %750 : vector<32x128xf32>
    %c0_256 = arith.constant 0 : index
    %c61 = arith.constant 61 : index
    %752 = vector.load %arg2[%c0_256, %c61] : memref<32x202xf32, #tpu.memory_space<vmem>>, vector<32x1xf32>
    %753 = vector.broadcast %752 : vector<32x1xf32> to vector<32x128xf32>
    %754 = arith.mulf %398, %753 : vector<32x128xf32>
    %c0_257 = arith.constant 0 : index
    %c125 = arith.constant 125 : index
    %755 = vector.load %arg2[%c0_257, %c125] : memref<32x202xf32, #tpu.memory_space<vmem>>, vector<32x1xf32>
    %756 = vector.broadcast %755 : vector<32x1xf32> to vector<32x128xf32>
    %757 = arith.addf %754, %756 : vector<32x128xf32>
    %cst_258 = arith.constant 0.000000e+00 : f32
    %758 = vector.broadcast %cst_258 : f32 to vector<32x128xf32>
    %759 = arith.maximumf %757, %758 : vector<32x128xf32>
    %c0_259 = arith.constant 0 : index
    %c189 = arith.constant 189 : index
    %760 = vector.load %arg2[%c0_259, %c189] : memref<32x202xf32, #tpu.memory_space<vmem>>, vector<32x1xf32>
    %761 = vector.broadcast %760 : vector<32x1xf32> to vector<32x128xf32>
    %762 = arith.mulf %759, %761 : vector<32x128xf32>
    %763 = arith.addf %751, %762 : vector<32x128xf32>
    %c0_260 = arith.constant 0 : index
    %c62 = arith.constant 62 : index
    %764 = vector.load %arg2[%c0_260, %c62] : memref<32x202xf32, #tpu.memory_space<vmem>>, vector<32x1xf32>
    %765 = vector.broadcast %764 : vector<32x1xf32> to vector<32x128xf32>
    %766 = arith.mulf %398, %765 : vector<32x128xf32>
    %c0_261 = arith.constant 0 : index
    %c126 = arith.constant 126 : index
    %767 = vector.load %arg2[%c0_261, %c126] : memref<32x202xf32, #tpu.memory_space<vmem>>, vector<32x1xf32>
    %768 = vector.broadcast %767 : vector<32x1xf32> to vector<32x128xf32>
    %769 = arith.addf %766, %768 : vector<32x128xf32>
    %cst_262 = arith.constant 0.000000e+00 : f32
    %770 = vector.broadcast %cst_262 : f32 to vector<32x128xf32>
    %771 = arith.maximumf %769, %770 : vector<32x128xf32>
    %c0_263 = arith.constant 0 : index
    %c190 = arith.constant 190 : index
    %772 = vector.load %arg2[%c0_263, %c190] : memref<32x202xf32, #tpu.memory_space<vmem>>, vector<32x1xf32>
    %773 = vector.broadcast %772 : vector<32x1xf32> to vector<32x128xf32>
    %774 = arith.mulf %771, %773 : vector<32x128xf32>
    %775 = arith.addf %763, %774 : vector<32x128xf32>
    %c0_264 = arith.constant 0 : index
    %c63 = arith.constant 63 : index
    %776 = vector.load %arg2[%c0_264, %c63] : memref<32x202xf32, #tpu.memory_space<vmem>>, vector<32x1xf32>
    %777 = vector.broadcast %776 : vector<32x1xf32> to vector<32x128xf32>
    %778 = arith.mulf %398, %777 : vector<32x128xf32>
    %c0_265 = arith.constant 0 : index
    %c127 = arith.constant 127 : index
    %779 = vector.load %arg2[%c0_265, %c127] : memref<32x202xf32, #tpu.memory_space<vmem>>, vector<32x1xf32>
    %780 = vector.broadcast %779 : vector<32x1xf32> to vector<32x128xf32>
    %781 = arith.addf %778, %780 : vector<32x128xf32>
    %cst_266 = arith.constant 0.000000e+00 : f32
    %782 = vector.broadcast %cst_266 : f32 to vector<32x128xf32>
    %783 = arith.maximumf %781, %782 : vector<32x128xf32>
    %c0_267 = arith.constant 0 : index
    %c191 = arith.constant 191 : index
    %784 = vector.load %arg2[%c0_267, %c191] : memref<32x202xf32, #tpu.memory_space<vmem>>, vector<32x1xf32>
    %785 = vector.broadcast %784 : vector<32x1xf32> to vector<32x128xf32>
    %786 = arith.mulf %783, %785 : vector<32x128xf32>
    %787 = arith.addf %775, %786 : vector<32x128xf32>
    %c0_268 = arith.constant 0 : index
    %c195 = arith.constant 195 : index
    %788 = vector.load %arg2[%c0_268, %c195] : memref<32x202xf32, #tpu.memory_space<vmem>>, vector<32x1xf32>
    %789 = vector.broadcast %788 : vector<32x1xf32> to vector<32x128xf32>
    %790 = arith.addf %787, %789 : vector<32x128xf32>
    %791 = math.exp %594 : vector<32x128xf32>
    %792 = arith.mulf %1, %791 : vector<32x128xf32>
    %793 = arith.addf %792, %790 : vector<32x128xf32>
    %c0_269 = arith.constant 0 : index
    %c196 = arith.constant 196 : index
    %794 = vector.load %arg2[%c0_269, %c196] : memref<32x202xf32, #tpu.memory_space<vmem>>, vector<32x1xf32>
    %c0_270 = arith.constant 0 : index
    %c197 = arith.constant 197 : index
    %795 = vector.load %arg2[%c0_270, %c197] : memref<32x202xf32, #tpu.memory_space<vmem>>, vector<32x1xf32>
    %c0_271 = arith.constant 0 : index
    %c198 = arith.constant 198 : index
    %796 = vector.load %arg2[%c0_271, %c198] : memref<32x202xf32, #tpu.memory_space<vmem>>, vector<32x1xf32>
    %c0_272 = arith.constant 0 : index
    %c199 = arith.constant 199 : index
    %797 = vector.load %arg2[%c0_272, %c199] : memref<32x202xf32, #tpu.memory_space<vmem>>, vector<32x1xf32>
    %c0_273 = arith.constant 0 : index
    %c200 = arith.constant 200 : index
    %798 = vector.load %arg2[%c0_273, %c200] : memref<32x202xf32, #tpu.memory_space<vmem>>, vector<32x1xf32>
    %c0_274 = arith.constant 0 : index
    %c201 = arith.constant 201 : index
    %799 = vector.load %arg2[%c0_274, %c201] : memref<32x202xf32, #tpu.memory_space<vmem>>, vector<32x1xf32>
    %800 = vector.broadcast %794 : vector<32x1xf32> to vector<32x128xf32>
    %801 = arith.mulf %800, %793 : vector<32x128xf32>
    %802 = vector.broadcast %795 : vector<32x1xf32> to vector<32x128xf32>
    %803 = arith.mulf %802, %398 : vector<32x128xf32>
    %804 = arith.addf %801, %803 : vector<32x128xf32>
    %805 = vector.broadcast %798 : vector<32x1xf32> to vector<32x128xf32>
    %806 = arith.addf %804, %805 : vector<32x128xf32>
    %c0_275 = arith.constant 0 : index
    %c0_276 = arith.constant 0 : index
    %c0_277 = arith.constant 0 : index
    %807 = vector.load %arg3[%c0_275, %c0_276, %c0_277] : memref<2x32x128xf32, #tpu.memory_space<vmem>>, vector<1x32x128xf32>
    %808 = vector.shape_cast %807 : vector<1x32x128xf32> to vector<32x128xf32>
    %809 = vector.shape_cast %806 : vector<32x128xf32> to vector<1x32x128xf32>
    tpu.vector_store %arg3[%c0_275, %c0_276, %c0_277], %809 {strides = array<i32>} : memref<2x32x128xf32, #tpu.memory_space<vmem>>, vector<1x32x128xf32>,
    %810 = vector.broadcast %796 : vector<32x1xf32> to vector<32x128xf32>
    %811 = arith.mulf %810, %793 : vector<32x128xf32>
    %812 = vector.broadcast %797 : vector<32x1xf32> to vector<32x128xf32>
    %813 = arith.mulf %812, %398 : vector<32x128xf32>
    %814 = arith.addf %811, %813 : vector<32x128xf32>
    %815 = vector.broadcast %799 : vector<32x1xf32> to vector<32x128xf32>
    %816 = arith.addf %814, %815 : vector<32x128xf32>
    %c1_278 = arith.constant 1 : index
    %c0_279 = arith.constant 0 : index
    %c0_280 = arith.constant 0 : index
    %817 = vector.load %arg3[%c1_278, %c0_279, %c0_280] : memref<2x32x128xf32, #tpu.memory_space<vmem>>, vector<1x32x128xf32>
    %818 = vector.shape_cast %817 : vector<1x32x128xf32> to vector<32x128xf32>
    %819 = vector.shape_cast %816 : vector<32x128xf32> to vector<1x32x128xf32>
    tpu.vector_store %arg3[%c1_278, %c0_279, %c0_280], %819 {strides = array<i32>} : memref<2x32x128xf32, #tpu.memory_space<vmem>>, vector<1x32x128xf32>,
    return
  }
  func.func @transform_0(%arg0: i32) -> (i32, i32, i32) {
    %c0_i32 = arith.constant 0 : i32
    %c0_i32_0 = arith.constant 0 : i32
    %c0_i32_1 = arith.constant 0 : i32
    return %c0_i32, %arg0, %c0_i32_0 : i32, i32, i32
  }
  func.func @transform_1(%arg0: i32) -> (i32, i32) {
    %c0_i32 = arith.constant 0 : i32
    %c0_i32_0 = arith.constant 0 : i32
    return %arg0, %c0_i32 : i32, i32
  }
  func.func @transform_2(%arg0: i32) -> (i32, i32, i32) {
    %c0_i32 = arith.constant 0 : i32
    %c0_i32_0 = arith.constant 0 : i32
    %c0_i32_1 = arith.constant 0 : i32
    return %c0_i32, %arg0, %c0_i32_0 : i32, i32, i32
  }
}

</mosaic_0001>

<llo_original>
// kernel: coordinate_transform.1
$region0: #{coordinate_transform.1}
  #allocation0 [shape = 'u32[]', space=smem, size = 0x4, offset = 0x4, fixed_abs, tag = 'smem constant byte address 0x4 - core index']
  #allocation1 [shape = 'u32[72,128]{1,0:T(1,128)}', space=vmem, size = 0x9000, scoped, tag = 'internal scratch']
  %s0 = inlined_call_operand.vmem [shape: f32[2,64,128], index: 0, kind: input, shape index: {}]
  %s1 = inlined_call_operand.vmem [shape: f32[64,202], index: 1, kind: input, shape index: {}]
  %s2 = inlined_call_operand.vmem [shape: f32[2,64,128], index: 2, kind: output, shape index: {}]
  %s3 = sld [smem:[#allocation0]]
  $region113: #{coordinate_transform.1} parent=0
    _
  %s5 = ssub.s32 1, %s3
  %s6 = scalar_select 0, %s5, %s3
  $region1: #{coordinate_transform.1} parent=0
    #allocation2 [shape = 'u8[65536]{0}', space=vmem, size = 0x10000, scoped, tag = 'input window, operand 0']
    #allocation3 [shape = 'u8[65536]{0}', space=vmem, size = 0x10000, scoped, tag = 'output window, operand 0']
    loop: start=0, step=1, limit=4
    $region2: #{coordinate_transform.1} parent=1 // loop_pre_header
      _
    $region3: #{coordinate_transform.1} parent=1 // loop_header
      %s8 = sphi 0, %s12
      %p9 = scmp.ge.s32.totalorder %s8, 4
      %s18 = sphi 0, %s20
      %s21 = sphi 0, %s18
      %s22 = sphi 0, %s21
      %s38 = sphi 0, %s22
      %s44 = sphi 0, %s46
      %s47 = sphi 0, %s44
      %s48 = sphi 0, %s47
      %s64 = sphi 0, %s48
      %s70 = sphi 0, %s72
      %s73 = sphi 0, %s70
      %s74 = sphi 0, %s73
      %s90 = sphi 0, %s74
    $region4: #{coordinate_transform.1} parent=1 // loop_header_branch
      %11 = sbr.rel (%p9) target = $region8
    $region5: #{coordinate_transform.1} parent=1 // loop_body
      %s13 = ssub.s32 %s8, 1
      %s14 = ssub.s32 %s8, 2
      %s15 = sadd.s32 %s8, 1
      %s16 = ssub.s32 %s8, %s15
      %p17 = scmp.eq.s32.totalorder %s16, 0
      %s19 = sadd.s32 %s18, 1
      %s20 = scalar_select %p17, %s18, %s19
      %p23 = pneg %p17
      %p24 = scmp.eq.s32.totalorder %s8, 1
      %p25 = por %p23, %p24
      %p26 = scmp.ne.s32.totalorder %s18, %s21
      %p27 = scmp.eq.s32.totalorder %s8, 0
      %p28 = por %p26, %p27
      %p29 = scmp.ne.s32.totalorder %s18, %s21
      %p30 = scmp.eq.s32.totalorder %s13, 1
      %p31 = por %p29, %p30
      %p32 = scmp.ne.s32.totalorder %s21, %s22
      %p33 = scmp.eq.s32.totalorder %s13, 0
      %p34 = por %p32, %p33
      %p35 = scmp.ne.s32.totalorder %s21, %s22
      %p36 = scmp.eq.s32.totalorder %s14, 1
      %p37 = por %p35, %p36
      %p39 = scmp.ne.s32.totalorder %s22, %s38
      %p40 = scmp.eq.s32.totalorder %s14, 0
      %p41 = por %p39, %p40
      %s42 = ssub.s32 %s8, %s15
      %p43 = scmp.eq.s32.totalorder %s42, 0
      %s45 = sadd.s32 %s44, 1
      %s46 = scalar_select %p43, %s44, %s45
      %p49 = pneg %p43
      %p50 = scmp.eq.s32.totalorder %s8, 1
      %p51 = por %p49, %p50
      %p52 = scmp.ne.s32.totalorder %s44, %s47
      %p53 = scmp.eq.s32.totalorder %s8, 0
      %p54 = por %p52, %p53
      %p55 = scmp.ne.s32.totalorder %s44, %s47
      %p56 = scmp.eq.s32.totalorder %s13, 1
      %p57 = por %p55, %p56
      %p58 = scmp.ne.s32.totalorder %s47, %s48
      %p59 = scmp.eq.s32.totalorder %s13, 0
      %p60 = por %p58, %p59
      %p61 = scmp.ne.s32.totalorder %s47, %s48
      %p62 = scmp.eq.s32.totalorder %s14, 1
      %p63 = por %p61, %p62
      %p65 = scmp.ne.s32.totalorder %s48, %s64
      %p66 = scmp.eq.s32.totalorder %s14, 0
      %p67 = por %p65, %p66
      %s68 = ssub.s32 %s8, %s15
      %p69 = scmp.eq.s32.totalorder %s68, 0
      %s71 = sadd.s32 %s70, 1
      %s72 = scalar_select %p69, %s70, %s71
      %p75 = pneg %p69
      %p76 = scmp.eq.s32.totalorder %s8, 1
      %p77 = por %p75, %p76
      %p78 = scmp.ne.s32.totalorder %s70, %s73
      %p79 = scmp.eq.s32.totalorder %s8, 0
      %p80 = por %p78, %p79
      %p81 = scmp.ne.s32.totalorder %s70, %s73
      %p82 = scmp.eq.s32.totalorder %s13, 1
      %p83 = por %p81, %p82
      %p84 = scmp.ne.s32.totalorder %s73, %s74
      %p85 = scmp.eq.s32.totalorder %s13, 0
      %p86 = por %p84, %p85
      %p87 = scmp.ne.s32.totalorder %s73, %s74
      %p88 = scmp.eq.s32.totalorder %s14, 1
      %p89 = por %p87, %p88
      %p91 = scmp.ne.s32.totalorder %s74, %s90
      %p92 = scmp.eq.s32.totalorder %s14, 0
      %p93 = por %p91, %p92
      %p94 = scmp.le.s32.totalorder 1, %s8
      %p95 = scmp.lt.s32.totalorder %s8, 3
      %p96 = pnand %p94, %p95
      %p97 = pneg %p96
      // Predicated region
      $region9: #{coordinate_transform.1} parent=5 // pred_check
        _
      $region10: #{coordinate_transform.1} parent=5 // pred_check_branch
        %99 = sbr.rel (%p96) target = $region12
      $region11: #{coordinate_transform.1} parent=5 // pred_region
        %s100 = ssub.s32 %s8, 1
      $region12: #{coordinate_transform.1} parent=5 // pred_fallthru
        _
      %p101 = scmp.lt.s32.totalorder %s8, 2
      // Predicated region
      $region13: #{coordinate_transform.1} parent=5 // pred_check
        %p102 = pneg %p101
      $region14: #{coordinate_transform.1} parent=5 // pred_check_branch
        %104 = sbr.rel (%p102) target = $region16
      $region15: #{coordinate_transform.1} parent=5 // pred_region
        // Predicated region
        $region17: #{coordinate_transform.1} parent=15 // pred_check
          %p105 = pneg %p28
        $region18: #{coordinate_transform.1} parent=15 // pred_check_branch
          %107 = sbr.rel (%p105) target = $region20
        $region19: #{coordinate_transform.1} parent=15 // pred_region
          %s108 = sand.u32 %s18, 1
          %s109 = sand.u32 %s18, 1
          %s110 = smul.addr %s109, 64
          %s111 = scalar_lea.vmem [#allocation2], %s110
          %s112 = smul.u32 4, %s8
          %s113 = smul.addr %s112, 8
          %s114 = scalar_lea.vmem %s0, %s113
          // Predicated region
          $region21: #{coordinate_transform.1} parent=19 // pred_check
            _
          $region22: #{coordinate_transform.1} parent=19 // pred_check_branch
            %116 = sbr.rel (0) target = $region24
          $region23: #{coordinate_transform.1} parent=19 // pred_region
            // Predicated region
            $region25: #{coordinate_transform.1} parent=23 // pred_check
              _
            $region26: #{coordinate_transform.1} parent=23 // pred_check_branch
              %118 = sbr.rel (0) target = $region28
            $region27: #{coordinate_transform.1} parent=23 // pred_region
              // Predicated region
              $region40: #{coordinate_transform.1} parent=27 // pred_check
                _
              $region41: #{coordinate_transform.1} parent=27 // pred_check_branch
                %148 = sbr.rel (0) target = $region43
              $region42: #{coordinate_transform.1} parent=27 // pred_region
                loop: start=0, step=1, limit=1
                $region44: #{coordinate_transform.1} parent=42 // loop_pre_header
                  _
                $region45: #{coordinate_transform.1} parent=42 // loop_header
                  %s150 = sphi 0, %s154
                  %p151 = scmp.ge.s32.totalorder %s150, 1
                  %s155 = sphi %s114, %s114
                  %s156 = sphi %s111, %s111
                $region46: #{coordinate_transform.1} parent=42 // loop_header_branch
                  %153 = sbr.rel (%p151) target = $region50
                $region47: #{coordinate_transform.1} parent=42 // loop_body
                  %v157 = vld [vmem:[%s155] sm:$0xff]
                  %158 = vst [vmem:[%s156] sm:$0xff] %v157
                  %v159 = vld [vmem:[%s155 + $0x8] sm:$0xff]
                  %160 = vst [vmem:[%s156 + $0x8] sm:$0xff] %v159
                  %v161 = vld [vmem:[%s155 + $0x10] sm:$0xff]
                  %162 = vst [vmem:[%s156 + $0x10] sm:$0xff] %v161
                  %v163 = vld [vmem:[%s155 + $0x18] sm:$0xff]
                  %164 = vst [vmem:[%s156 + $0x18] sm:$0xff] %v163
                  %v165 = vld [vmem:[%s155 + $0x40] sm:$0xff]
                  %166 = vst [vmem:[%s156 + $0x20] sm:$0xff] %v165
                  %v167 = vld [vmem:[%s155 + $0x48] sm:$0xff]
                  %168 = vst [vmem:[%s156 + $0x28] sm:$0xff] %v167
                  %v169 = vld [vmem:[%s155 + $0x50] sm:$0xff]
                  %170 = vst [vmem:[%s156 + $0x30] sm:$0xff] %v169
                  %v171 = vld [vmem:[%s155 + $0x58] sm:$0xff]
                  %172 = vst [vmem:[%s156 + $0x38] sm:$0xff] %v171
                $region48: #{coordinate_transform.1} parent=42 // loop_footer
                  %s154 = sadd.s32 1, %s150
                $region49: #{coordinate_transform.1} parent=42 // loop_footer_branch
                  %149 = sbr.rel target = $region45
                $region50: #{coordinate_transform.1} parent=42 // loop_exit
                  _
              $region43: #{coordinate_transform.1} parent=27 // pred_fallthru
                _
              // Predicated region
              $region51: #{coordinate_transform.1} parent=27 // pred_check
                _
              $region52: #{coordinate_transform.1} parent=27 // pred_check_branch
                %174 = sbr.rel target = $region54
              $region53: #{coordinate_transform.1} parent=27 // pred_region
                _
              $region54: #{coordinate_transform.1} parent=27 // pred_fallthru
                _
            $region28: #{coordinate_transform.1} parent=23 // pred_fallthru
              _
            // Predicated region
            $region29: #{coordinate_transform.1} parent=23 // pred_check
              _
            $region30: #{coordinate_transform.1} parent=23 // pred_check_branch
              %120 = sbr.rel target = $region32
            $region31: #{coordinate_transform.1} parent=23 // pred_region
              %s122 = ssub.s32 256, 1
              loop: start=0, step=1, limit=1
              $region33: #{coordinate_transform.1} parent=31 // loop_pre_header
                _
              $region34: #{coordinate_transform.1} parent=31 // loop_header
                %s124 = sphi 0, %s128
                %p125 = scmp.ge.s32.totalorder %s124, 1
                %s129 = sphi %s114, %s114
                %s130 = sphi %s111, %s111
              $region35: #{coordinate_transform.1} parent=31 // loop_header_branch
                %127 = sbr.rel (%p125) target = $region39
              $region36: #{coordinate_transform.1} parent=31 // loop_body
                %v131 = vld [vmem:[%s129] sm:%s122]
                %132 = vst [vmem:[%s130] sm:%s122] %v131
                %v133 = vld [vmem:[%s129 + $0x8] sm:%s122]
                %134 = vst [vmem:[%s130 + $0x8] sm:%s122] %v133
                %v135 = vld [vmem:[%s129 + $0x10] sm:%s122]
                %136 = vst [vmem:[%s130 + $0x10] sm:%s122] %v135
                %v137 = vld [vmem:[%s129 + $0x18] sm:%s122]
                %138 = vst [vmem:[%s130 + $0x18] sm:%s122] %v137
                %v139 = vld [vmem:[%s129 + $0x40] sm:%s122]
                %140 = vst [vmem:[%s130 + $0x20] sm:%s122] %v139
                %v141 = vld [vmem:[%s129 + $0x48] sm:%s122]
                %142 = vst [vmem:[%s130 + $0x28] sm:%s122] %v141
                %v143 = vld [vmem:[%s129 + $0x50] sm:%s122]
                %144 = vst [vmem:[%s130 + $0x30] sm:%s122] %v143
                %v145 = vld [vmem:[%s129 + $0x58] sm:%s122]
                %146 = vst [vmem:[%s130 + $0x38] sm:%s122] %v145
              $region37: #{coordinate_transform.1} parent=31 // loop_footer
                %s128 = sadd.s32 1, %s124
              $region38: #{coordinate_transform.1} parent=31 // loop_footer_branch
                %123 = sbr.rel target = $region34
              $region39: #{coordinate_transform.1} parent=31 // loop_exit
                _
            $region32: #{coordinate_transform.1} parent=23 // pred_fallthru
              _
          $region24: #{coordinate_transform.1} parent=19 // pred_fallthru
            _
          %175 = vnop
        $region20: #{coordinate_transform.1} parent=15 // pred_fallthru
          _
        // Predicated region
        $region55: #{coordinate_transform.1} parent=15 // pred_check
          %p176 = pneg %p54
        $region56: #{coordinate_transform.1} parent=15 // pred_check_branch
          %178 = sbr.rel (%p176) target = $region58
        $region57: #{coordinate_transform.1} parent=15 // pred_region
          %s179 = smul.u32 4, %s8
          %p180 = scmp.lt.s32.totalorder %s179, 7
          %s181 = scalar_select %p180, %s179, 7
          %s182 = smul.addr %s181, 2
          %s183 = smul.addr %s182, 8
          %s184 = scalar_lea.vmem %s1, %s183
          %s185 = smul.u32 4, %s8
        $region58: #{coordinate_transform.1} parent=15 // pred_fallthru
          _
      $region16: #{coordinate_transform.1} parent=5 // pred_fallthru
        _
      %p186 = scmp.le.s32.totalorder 1, %s8
      %p187 = scmp.lt.s32.totalorder %s8, 3
      %p188 = pnand %p186, %p187
      %p189 = pneg %p188
      // Predicated region
      $region59: #{coordinate_transform.1} parent=5 // pred_check
        _
      $region60: #{coordinate_transform.1} parent=5 // pred_check_branch
        %191 = sbr.rel (%p188) target = $region62
      $region61: #{coordinate_transform.1} parent=5 // pred_region
        %s192 = ssub.s32 %s8, 1
        %s193 = sand.u32 %s21, 1
        %s194 = sand.u32 %s21, 1
        %s195 = smul.addr %s194, 64
        %s196 = scalar_lea.vmem [#allocation2], %s195
        // Predicated region
        $region63: #{coordinate_transform.1} parent=61 // pred_check
          %p197 = pneg %p34
        $region64: #{coordinate_transform.1} parent=61 // pred_check_branch
          %199 = sbr.rel (%p197) target = $region66
        $region65: #{coordinate_transform.1} parent=61 // pred_region
          _
        $region66: #{coordinate_transform.1} parent=61 // pred_fallthru
          _
        %s200 = sand.u32 %s21, 1
        %s201 = sand.u32 %s21, 1
        %s202 = smul.addr %s201, 64
        %s203 = scalar_lea.vmem [#allocation2], %s202
        %p204 = pneg %p34
        %p205 = pneg %p31
        %s206 = smul.u32 4, %s13
        %p207 = scmp.lt.s32.totalorder %s206, 7
        %s208 = scalar_select %p207, %s206, 7
        %s209 = smul.addr %s208, 2
        %s210 = smul.addr %s209, 8
        %s211 = scalar_lea.vmem %s1, %s210
        %p212 = pneg %p60
        %p213 = pneg %p57
        %p214 = pneg %p86
        %p215 = pneg %p83
        %s216 = sand.u32 %s73, 1
        %s217 = sand.u32 %s73, 1
        %s218 = smul.addr %s217, 64
        %s219 = scalar_lea.vmem [#allocation3], %s218
        %s220 = smul.u32 4, %s13
        %s221 = smul.u32 4, %s13
        %p222 = scmp.lt.s32.totalorder %s221, 7
        %s223 = scalar_select %p222, %s221, 7
        %s224 = smul.addr %s223, 2
        %s225 = smul.addr %s224, 8
        %s226 = scalar_lea.vmem %s1, %s225
        %s227 = smul.u32 4, %s13
        %s228 = smul.u32 4, %s13
        %v229 = vld [vmem:[%s196] sm:$0xff]
        %v230 = vld [vmem:[%s196 + $0x8] sm:$0xff]
        %v231 = vld [vmem:[%s196 + $0x10] sm:$0xff]
        %v232 = vld [vmem:[%s196 + $0x18] sm:$0xff]
        %s233 = scalar_lea.vmem %s196, 32 [#allocation2]
        %v234 = vld [vmem:[%s233] sm:$0xff]
        %v235 = vld [vmem:[%s233 + $0x8] sm:$0xff]
        %v236 = vld [vmem:[%s233 + $0x10] sm:$0xff]
        %v237 = vld [vmem:[%s233 + $0x18] sm:$0xff]
        %v238 = vld [vmem:[%s226] sm:$0xff]
        %v239 = vld [vmem:[%s226 + $0x10] sm:$0xff]
        %v240 = vld [vmem:[%s226 + $0x20] sm:$0xff]
        %v241 = vld [vmem:[%s226 + $0x30] sm:$0xff]
        %243 = vset.pattern.permute.xlu0 0
        %244 = vperm.xlu0 %243, %v238
        %v245 = vpop.permute.xlu0 %244
        %248 = vset.pattern.permute.xlu0 0
        %249 = vperm.xlu0 %248, %v239
        %v250 = vpop.permute.xlu0 %249
        %253 = vset.pattern.permute.xlu0 0
        %254 = vperm.xlu0 %253, %v240
        %v255 = vpop.permute.xlu0 %254
        %258 = vset.pattern.permute.xlu0 0
        %259 = vperm.xlu0 %258, %v241
        %v260 = vpop.permute.xlu0 %259
        %v262 = vmul.f32 %v229, %v245
        %v263 = vmul.f32 %v230, %v250
        %v264 = vmul.f32 %v231, %v255
        %v265 = vmul.f32 %v232, %v260
        %266 = vset.pattern.permute.xlu0 64
        %267 = vperm.xlu0 %266, %v238
        %v268 = vpop.permute.xlu0 %267
        %270 = vset.pattern.permute.xlu0 64
        %271 = vperm.xlu0 %270, %v239
        %v272 = vpop.permute.xlu0 %271
        %274 = vset.pattern.permute.xlu0 64
        %275 = vperm.xlu0 %274, %v240
        %v276 = vpop.permute.xlu0 %275
        %278 = vset.pattern.permute.xlu0 64
        %279 = vperm.xlu0 %278, %v241
        %v280 = vpop.permute.xlu0 %279
        %v282 = vadd.f32 %v262, %v268
        %v283 = vadd.f32 %v263, %v272
        %v284 = vadd.f32 %v264, %v276
        %v285 = vadd.f32 %v265, %v280
        %v286 = vmax.f32 %v282, 0.0
        %v287 = vmax.f32 %v283, 0.0
        %v288 = vmax.f32 %v284, 0.0
        %v289 = vmax.f32 %v285, 0.0
        %v290 = vld [vmem:[%s226 + $0x8] sm:$0xff]
        %v291 = vld [vmem:[%s226 + $0x18] sm:$0xff]
        %v292 = vld [vmem:[%s226 + $0x28] sm:$0xff]
        %v293 = vld [vmem:[%s226 + $0x38] sm:$0xff]
        %295 = vset.pattern.permute.xlu0 0
        %296 = vperm.xlu0 %295, %v290
        %v297 = vpop.permute.xlu0 %296
        %300 = vset.pattern.permute.xlu0 0
        %301 = vperm.xlu0 %300, %v291
        %v302 = vpop.permute.xlu0 %301
        %305 = vset.pattern.permute.xlu0 0
        %306 = vperm.xlu0 %305, %v292
        %v307 = vpop.permute.xlu0 %306
        %310 = vset.pattern.permute.xlu0 0
        %311 = vperm.xlu0 %310, %v293
        %v312 = vpop.permute.xlu0 %311
        %v314 = vmul.f32 %v286, %v297
        %v315 = vmul.f32 %v287, %v302
        %v316 = vmul.f32 %v288, %v307
        %v317 = vmul.f32 %v289, %v312
        %v318 = vadd.f32 %v314, 0.0
        %v319 = vadd.f32 %v315, 0.0
        %v320 = vadd.f32 %v316, 0.0
        %v321 = vadd.f32 %v317, 0.0
        %322 = vset.pattern.permute.xlu0 1
        %323 = vperm.xlu0 %322, %v238
        %v324 = vpop.permute.xlu0 %323
        %326 = vset.pattern.permute.xlu0 1
        %327 = vperm.xlu0 %326, %v239
        %v328 = vpop.permute.xlu0 %327
        %330 = vset.pattern.permute.xlu0 1
        %331 = vperm.xlu0 %330, %v240
        %v332 = vpop.permute.xlu0 %331
        %334 = vset.pattern.permute.xlu0 1
        %335 = vperm.xlu0 %334, %v241
        %v336 = vpop.permute.xlu0 %335
        %v338 = vmul.f32 %v229, %v324
        %v339 = vmul.f32 %v230, %v328
        %v340 = vmul.f32 %v231, %v332
        %v341 = vmul.f32 %v232, %v336
        %342 = vset.pattern.permute.xlu0 65
        %343 = vperm.xlu0 %342, %v238
        %v344 = vpop.permute.xlu0 %343
        %346 = vset.pattern.permute.xlu0 65
        %347 = vperm.xlu0 %346, %v239
        %v348 = vpop.permute.xlu0 %347
        %350 = vset.pattern.permute.xlu0 65
        %351 = vperm.xlu0 %350, %v240
        %v352 = vpop.permute.xlu0 %351
        %354 = vset.pattern.permute.xlu0 65
        %355 = vperm.xlu0 %354, %v241
        %v356 = vpop.permute.xlu0 %355
        %v358 = vadd.f32 %v338, %v344
        %v359 = vadd.f32 %v339, %v348
        %v360 = vadd.f32 %v340, %v352
        %v361 = vadd.f32 %v341, %v356
        %v362 = vmax.f32 %v358, 0.0
        %v363 = vmax.f32 %v359, 0.0
        %v364 = vmax.f32 %v360, 0.0
        %v365 = vmax.f32 %v361, 0.0
        %366 = vset.pattern.permute.xlu0 1
        %367 = vperm.xlu0 %366, %v290
        %v368 = vpop.permute.xlu0 %367
        %370 = vset.pattern.permute.xlu0 1
        %371 = vperm.xlu0 %370, %v291
        %v372 = vpop.permute.xlu0 %371
        %374 = vset.pattern.permute.xlu0 1
        %375 = vperm.xlu0 %374, %v292
        %v376 = vpop.permute.xlu0 %375
        %378 = vset.pattern.permute.xlu0 1
        %379 = vperm.xlu0 %378, %v293
        %v380 = vpop.permute.xlu0 %379
        %v382 = vmul.f32 %v362, %v368
        %v383 = vmul.f32 %v363, %v372
        %v384 = vmul.f32 %v364, %v376
        %v385 = vmul.f32 %v365, %v380
        %v386 = vadd.f32 %v318, %v382
        %v387 = vadd.f32 %v319, %v383
        %v388 = vadd.f32 %v320, %v384
        %v389 = vadd.f32 %v321, %v385
        %390 = vset.pattern.permute.xlu0 2
        %391 = vperm.xlu0 %390, %v238
        %v392 = vpop.permute.xlu0 %391
        %394 = vset.pattern.permute.xlu0 2
        %395 = vperm.xlu0 %394, %v239
        %v396 = vpop.permute.xlu0 %395
        %398 = vset.pattern.permute.xlu0 2
        %399 = vperm.xlu0 %398, %v240
        %v400 = vpop.permute.xlu0 %399
        %402 = vset.pattern.permute.xlu0 2
        %403 = vperm.xlu0 %402, %v241
        %v404 = vpop.permute.xlu0 %403
        %v406 = vmul.f32 %v229, %v392
        %v407 = vmul.f32 %v230, %v396
        %v408 = vmul.f32 %v231, %v400
        %v409 = vmul.f32 %v232, %v404
        %410 = vset.pattern.permute.xlu0 66
        %411 = vperm.xlu0 %410, %v238
        %v412 = vpop.permute.xlu0 %411
        %414 = vset.pattern.permute.xlu0 66
        %415 = vperm.xlu0 %414, %v239
        %v416 = vpop.permute.xlu0 %415
        %418 = vset.pattern.permute.xlu0 66
        %419 = vperm.xlu0 %418, %v240
        %v420 = vpop.permute.xlu0 %419
        %422 = vset.pattern.permute.xlu0 66
        %423 = vperm.xlu0 %422, %v241
        %v424 = vpop.permute.xlu0 %423
        %v426 = vadd.f32 %v406, %v412
        %v427 = vadd.f32 %v407, %v416
        %v428 = vadd.f32 %v408, %v420
        %v429 = vadd.f32 %v409, %v424
        %v430 = vmax.f32 %v426, 0.0
        %v431 = vmax.f32 %v427, 0.0
        %v432 = vmax.f32 %v428, 0.0
        %v433 = vmax.f32 %v429, 0.0
        %434 = vset.pattern.permute.xlu0 2
        %435 = vperm.xlu0 %434, %v290
        %v436 = vpop.permute.xlu0 %435
        %438 = vset.pattern.permute.xlu0 2
        %439 = vperm.xlu0 %438, %v291
        %v440 = vpop.permute.xlu0 %439
        %442 = vset.pattern.permute.xlu0 2
        %443 = vperm.xlu0 %442, %v292
        %v444 = vpop.permute.xlu0 %443
        %446 = vset.pattern.permute.xlu0 2
        %447 = vperm.xlu0 %446, %v293
        %v448 = vpop.permute.xlu0 %447
        %v450 = vmul.f32 %v430, %v436
        %v451 = vmul.f32 %v431, %v440
        %v452 = vmul.f32 %v432, %v444
        %v453 = vmul.f32 %v433, %v448
        %v454 = vadd.f32 %v386, %v450
        %v455 = vadd.f32 %v387, %v451
        %v456 = vadd.f32 %v388, %v452
        %v457 = vadd.f32 %v389, %v453
        %458 = vset.pattern.permute.xlu0 3
        %459 = vperm.xlu0 %458, %v238
        %v460 = vpop.permute.xlu0 %459
        %462 = vset.pattern.permute.xlu0 3
        %463 = vperm.xlu0 %462, %v239
        %v464 = vpop.permute.xlu0 %463
        %466 = vset.pattern.permute.xlu0 3
        %467 = vperm.xlu0 %466, %v240
        %v468 = vpop.permute.xlu0 %467
        %470 = vset.pattern.permute.xlu0 3
        %471 = vperm.xlu0 %470, %v241
        %v472 = vpop.permute.xlu0 %471
        %v474 = vmul.f32 %v229, %v460
        %v475 = vmul.f32 %v230, %v464
        %v476 = vmul.f32 %v231, %v468
        %v477 = vmul.f32 %v232, %v472
        %478 = vset.pattern.permute.xlu0 67
        %479 = vperm.xlu0 %478, %v238
        %v480 = vpop.permute.xlu0 %479
        %482 = vset.pattern.permute.xlu0 67
        %483 = vperm.xlu0 %482, %v239
        %v484 = vpop.permute.xlu0 %483
        %486 = vset.pattern.permute.xlu0 67
        %487 = vperm.xlu0 %486, %v240
        %v488 = vpop.permute.xlu0 %487
        %490 = vset.pattern.permute.xlu0 67
        %491 = vperm.xlu0 %490, %v241
        %v492 = vpop.permute.xlu0 %491
        %v494 = vadd.f32 %v474, %v480
        %v495 = vadd.f32 %v475, %v484
        %v496 = vadd.f32 %v476, %v488
        %v497 = vadd.f32 %v477, %v492
        %v498 = vmax.f32 %v494, 0.0
        %v499 = vmax.f32 %v495, 0.0
        %v500 = vmax.f32 %v496, 0.0
        %v501 = vmax.f32 %v497, 0.0
        %502 = vset.pattern.permute.xlu0 3
        %503 = vperm.xlu0 %502, %v290
        %v504 = vpop.permute.xlu0 %503
        %506 = vset.pattern.permute.xlu0 3
        %507 = vperm.xlu0 %506, %v291
        %v508 = vpop.permute.xlu0 %507
        %510 = vset.pattern.permute.xlu0 3
        %511 = vperm.xlu0 %510, %v292
        %v512 = vpop.permute.xlu0 %511
        %514 = vset.pattern.permute.xlu0 3
        %515 = vperm.xlu0 %514, %v293
        %v516 = vpop.permute.xlu0 %515
        %v518 = vmul.f32 %v498, %v504
        %v519 = vmul.f32 %v499, %v508
        %v520 = vmul.f32 %v500, %v512
        %v521 = vmul.f32 %v501, %v516
        %v522 = vadd.f32 %v454, %v518
        %v523 = vadd.f32 %v455, %v519
        %v524 = vadd.f32 %v456, %v520
        %v525 = vadd.f32 %v457, %v521
        %526 = vset.pattern.permute.xlu0 4
        %527 = vperm.xlu0 %526, %v238
        %v528 = vpop.permute.xlu0 %527
        %530 = vset.pattern.permute.xlu0 4
        %531 = vperm.xlu0 %530, %v239
        %v532 = vpop.permute.xlu0 %531
        %534 = vset.pattern.permute.xlu0 4
        %535 = vperm.xlu0 %534, %v240
        %v536 = vpop.permute.xlu0 %535
        %538 = vset.pattern.permute.xlu0 4
        %539 = vperm.xlu0 %538, %v241
        %v540 = vpop.permute.xlu0 %539
        %v542 = vmul.f32 %v229, %v528
        %v543 = vmul.f32 %v230, %v532
        %v544 = vmul.f32 %v231, %v536
        %v545 = vmul.f32 %v232, %v540
        %546 = vset.pattern.permute.xlu0 68
        %547 = vperm.xlu0 %546, %v238
        %v548 = vpop.permute.xlu0 %547
        %550 = vset.pattern.permute.xlu0 68
        %551 = vperm.xlu0 %550, %v239
        %v552 = vpop.permute.xlu0 %551
        %554 = vset.pattern.permute.xlu0 68
        %555 = vperm.xlu0 %554, %v240
        %v556 = vpop.permute.xlu0 %555
        %558 = vset.pattern.permute.xlu0 68
        %559 = vperm.xlu0 %558, %v241
        %v560 = vpop.permute.xlu0 %559
        %v562 = vadd.f32 %v542, %v548
        %v563 = vadd.f32 %v543, %v552
        %v564 = vadd.f32 %v544, %v556
        %v565 = vadd.f32 %v545, %v560
        %v566 = vmax.f32 %v562, 0.0
        %v567 = vmax.f32 %v563, 0.0
        %v568 = vmax.f32 %v564, 0.0
        %v569 = vmax.f32 %v565, 0.0
        %570 = vset.pattern.permute.xlu0 4
        %571 = vperm.xlu0 %570, %v290
        %v572 = vpop.permute.xlu0 %571
        %574 = vset.pattern.permute.xlu0 4
        %575 = vperm.xlu0 %574, %v291
        %v576 = vpop.permute.xlu0 %575
        %578 = vset.pattern.permute.xlu0 4
        %579 = vperm.xlu0 %578, %v292
        %v580 = vpop.permute.xlu0 %579
        %582 = vset.pattern.permute.xlu0 4
        %583 = vperm.xlu0 %582, %v293
        %v584 = vpop.permute.xlu0 %583
        %v586 = vmul.f32 %v566, %v572
        %v587 = vmul.f32 %v567, %v576
        %v588 = vmul.f32 %v568, %v580
        %v589 = vmul.f32 %v569, %v584
        %v590 = vadd.f32 %v522, %v586
        %v591 = vadd.f32 %v523, %v587
        %v592 = vadd.f32 %v524, %v588
        %v593 = vadd.f32 %v525, %v589
        %594 = vset.pattern.permute.xlu0 5
        %595 = vperm.xlu0 %594, %v238
        %v596 = vpop.permute.xlu0 %595
        %598 = vset.pattern.permute.xlu0 5
        %599 = vperm.xlu0 %598, %v239
        %v600 = vpop.permute.xlu0 %599
        %602 = vset.pattern.permute.xlu0 5
        %603 = vperm.xlu0 %602, %v240
        %v604 = vpop.permute.xlu0 %603
        %606 = vset.pattern.permute.xlu0 5
        %607 = vperm.xlu0 %606, %v241
        %v608 = vpop.permute.xlu0 %607
        %v610 = vmul.f32 %v229, %v596
        %v611 = vmul.f32 %v230, %v600
        %v612 = vmul.f32 %v231, %v604
        %v613 = vmul.f32 %v232, %v608
        %614 = vset.pattern.permute.xlu0 69
        %615 = vperm.xlu0 %614, %v238
        %v616 = vpop.permute.xlu0 %615
        %618 = vset.pattern.permute.xlu0 69
        %619 = vperm.xlu0 %618, %v239
        %v620 = vpop.permute.xlu0 %619
        %622 = vset.pattern.permute.xlu0 69
        %623 = vperm.xlu0 %622, %v240
        %v624 = vpop.permute.xlu0 %623
        %626 = vset.pattern.permute.xlu0 69
        %627 = vperm.xlu0 %626, %v241
        %v628 = vpop.permute.xlu0 %627
        %v630 = vadd.f32 %v610, %v616
        %v631 = vadd.f32 %v611, %v620
        %v632 = vadd.f32 %v612, %v624
        %v633 = vadd.f32 %v613, %v628
        %v634 = vmax.f32 %v630, 0.0
        %v635 = vmax.f32 %v631, 0.0
        %v636 = vmax.f32 %v632, 0.0
        %v637 = vmax.f32 %v633, 0.0
        %638 = vset.pattern.permute.xlu0 5
        %639 = vperm.xlu0 %638, %v290
        %v640 = vpop.permute.xlu0 %639
        %642 = vset.pattern.permute.xlu0 5
        %643 = vperm.xlu0 %642, %v291
        %v644 = vpop.permute.xlu0 %643
        %646 = vset.pattern.permute.xlu0 5
        %647 = vperm.xlu0 %646, %v292
        %v648 = vpop.permute.xlu0 %647
        %650 = vset.pattern.permute.xlu0 5
        %651 = vperm.xlu0 %650, %v293
        %v652 = vpop.permute.xlu0 %651
        %v654 = vmul.f32 %v634, %v640
        %v655 = vmul.f32 %v635, %v644
        %v656 = vmul.f32 %v636, %v648
        %v657 = vmul.f32 %v637, %v652
        %v658 = vadd.f32 %v590, %v654
        %v659 = vadd.f32 %v591, %v655
        %v660 = vadd.f32 %v592, %v656
        %v661 = vadd.f32 %v593, %v657
        %662 = vset.pattern.permute.xlu0 6
        %663 = vperm.xlu0 %662, %v238
        %v664 = vpop.permute.xlu0 %663
        %666 = vset.pattern.permute.xlu0 6
        %667 = vperm.xlu0 %666, %v239
        %v668 = vpop.permute.xlu0 %667
        %670 = vset.pattern.permute.xlu0 6
        %671 = vperm.xlu0 %670, %v240
        %v672 = vpop.permute.xlu0 %671
        %674 = vset.pattern.permute.xlu0 6
        %675 = vperm.xlu0 %674, %v241
        %v676 = vpop.permute.xlu0 %675
        %v678 = vmul.f32 %v229, %v664
        %v679 = vmul.f32 %v230, %v668
        %v680 = vmul.f32 %v231, %v672
        %v681 = vmul.f32 %v232, %v676
        %682 = vset.pattern.permute.xlu0 70
        %683 = vperm.xlu0 %682, %v238
        %v684 = vpop.permute.xlu0 %683
        %686 = vset.pattern.permute.xlu0 70
        %687 = vperm.xlu0 %686, %v239
        %v688 = vpop.permute.xlu0 %687
        %690 = vset.pattern.permute.xlu0 70
        %691 = vperm.xlu0 %690, %v240
        %v692 = vpop.permute.xlu0 %691
        %694 = vset.pattern.permute.xlu0 70
        %695 = vperm.xlu0 %694, %v241
        %v696 = vpop.permute.xlu0 %695
        %v698 = vadd.f32 %v678, %v684
        %v699 = vadd.f32 %v679, %v688
        %v700 = vadd.f32 %v680, %v692
        %v701 = vadd.f32 %v681, %v696
        %v702 = vmax.f32 %v698, 0.0
        %v703 = vmax.f32 %v699, 0.0
        %v704 = vmax.f32 %v700, 0.0
        %v705 = vmax.f32 %v701, 0.0
        %706 = vset.pattern.permute.xlu0 6
        %707 = vperm.xlu0 %706, %v290
        %v708 = vpop.permute.xlu0 %707
        %710 = vset.pattern.permute.xlu0 6
        %711 = vperm.xlu0 %710, %v291
        %v712 = vpop.permute.xlu0 %711
        %714 = vset.pattern.permute.xlu0 6
        %715 = vperm.xlu0 %714, %v292
        %v716 = vpop.permute.xlu0 %715
        %718 = vset.pattern.permute.xlu0 6
        %719 = vperm.xlu0 %718, %v293
        %v720 = vpop.permute.xlu0 %719
        %v722 = vmul.f32 %v702, %v708
        %v723 = vmul.f32 %v703, %v712
        %v724 = vmul.f32 %v704, %v716
        %v725 = vmul.f32 %v705, %v720
        %v726 = vadd.f32 %v658, %v722
        %v727 = vadd.f32 %v659, %v723
        %v728 = vadd.f32 %v660, %v724
        %v729 = vadd.f32 %v661, %v725
        %730 = vset.pattern.permute.xlu0 7
        %731 = vperm.xlu0 %730, %v238
        %v732 = vpop.permute.xlu0 %731
        %734 = vset.pattern.permute.xlu0 7
        %735 = vperm.xlu0 %734, %v239
        %v736 = vpop.permute.xlu0 %735
        %738 = vset.pattern.permute.xlu0 7
        %739 = vperm.xlu0 %738, %v240
        %v740 = vpop.permute.xlu0 %739
        %742 = vset.pattern.permute.xlu0 7
        %743 = vperm.xlu0 %742, %v241
        %v744 = vpop.permute.xlu0 %743
        %v746 = vmul.f32 %v229, %v732
        %v747 = vmul.f32 %v230, %v736
        %v748 = vmul.f32 %v231, %v740
        %v749 = vmul.f32 %v232, %v744
        %750 = vset.pattern.permute.xlu0 71
        %751 = vperm.xlu0 %750, %v238
        %v752 = vpop.permute.xlu0 %751
        %754 = vset.pattern.permute.xlu0 71
        %755 = vperm.xlu0 %754, %v239
        %v756 = vpop.permute.xlu0 %755
        %758 = vset.pattern.permute.xlu0 71
        %759 = vperm.xlu0 %758, %v240
        %v760 = vpop.permute.xlu0 %759
        %762 = vset.pattern.permute.xlu0 71
        %763 = vperm.xlu0 %762, %v241
        %v764 = vpop.permute.xlu0 %763
        %v766 = vadd.f32 %v746, %v752
        %v767 = vadd.f32 %v747, %v756
        %v768 = vadd.f32 %v748, %v760
        %v769 = vadd.f32 %v749, %v764
        %v770 = vmax.f32 %v766, 0.0
        %v771 = vmax.f32 %v767, 0.0
        %v772 = vmax.f32 %v768, 0.0
        %v773 = vmax.f32 %v769, 0.0
        %774 = vset.pattern.permute.xlu0 7
        %775 = vperm.xlu0 %774, %v290
        %v776 = vpop.permute.xlu0 %775
        %778 = vset.pattern.permute.xlu0 7
        %779 = vperm.xlu0 %778, %v291
        %v780 = vpop.permute.xlu0 %779
        %782 = vset.pattern.permute.xlu0 7
        %783 = vperm.xlu0 %782, %v292
        %v784 = vpop.permute.xlu0 %783
        %786 = vset.pattern.permute.xlu0 7
        %787 = vperm.xlu0 %786, %v293
        %v788 = vpop.permute.xlu0 %787
        %v790 = vmul.f32 %v770, %v776
        %v791 = vmul.f32 %v771, %v780
        %v792 = vmul.f32 %v772, %v784
        %v793 = vmul.f32 %v773, %v788
        %v794 = vadd.f32 %v726, %v790
        %v795 = vadd.f32 %v727, %v791
        %v796 = vadd.f32 %v728, %v792
        %v797 = vadd.f32 %v729, %v793
        %798 = vset.pattern.permute.xlu0 8
        %799 = vperm.xlu0 %798, %v238
        %v800 = vpop.permute.xlu0 %799
        %802 = vset.pattern.permute.xlu0 8
        %803 = vperm.xlu0 %802, %v239
        %v804 = vpop.permute.xlu0 %803
        %806 = vset.pattern.permute.xlu0 8
        %807 = vperm.xlu0 %806, %v240
        %v808 = vpop.permute.xlu0 %807
        %810 = vset.pattern.permute.xlu0 8
        %811 = vperm.xlu0 %810, %v241
        %v812 = vpop.permute.xlu0 %811
        %v814 = vmul.f32 %v229, %v800
        %v815 = vmul.f32 %v230, %v804
        %v816 = vmul.f32 %v231, %v808
        %v817 = vmul.f32 %v232, %v812
        %818 = vset.pattern.permute.xlu0 72
        %819 = vperm.xlu0 %818, %v238
        %v820 = vpop.permute.xlu0 %819
        %822 = vset.pattern.permute.xlu0 72
        %823 = vperm.xlu0 %822, %v239
        %v824 = vpop.permute.xlu0 %823
        %826 = vset.pattern.permute.xlu0 72
        %827 = vperm.xlu0 %826, %v240
        %v828 = vpop.permute.xlu0 %827
        %830 = vset.pattern.permute.xlu0 72
        %831 = vperm.xlu0 %830, %v241
        %v832 = vpop.permute.xlu0 %831
        %v834 = vadd.f32 %v814, %v820
        %v835 = vadd.f32 %v815, %v824
        %v836 = vadd.f32 %v816, %v828
        %v837 = vadd.f32 %v817, %v832
        %v838 = vmax.f32 %v834, 0.0
        %v839 = vmax.f32 %v835, 0.0
        %v840 = vmax.f32 %v836, 0.0
        %v841 = vmax.f32 %v837, 0.0
        %842 = vset.pattern.permute.xlu0 8
        %843 = vperm.xlu0 %842, %v290
        %v844 = vpop.permute.xlu0 %843
        %846 = vset.pattern.permute.xlu0 8
        %847 = vperm.xlu0 %846, %v291
        %v848 = vpop.permute.xlu0 %847
        %850 = vset.pattern.permute.xlu0 8
        %851 = vperm.xlu0 %850, %v292
        %v852 = vpop.permute.xlu0 %851
        %854 = vset.pattern.permute.xlu0 8
        %855 = vperm.xlu0 %854, %v293
        %v856 = vpop.permute.xlu0 %855
        %v858 = vmul.f32 %v838, %v844
        %v859 = vmul.f32 %v839, %v848
        %v860 = vmul.f32 %v840, %v852
        %v861 = vmul.f32 %v841, %v856
        %v862 = vadd.f32 %v794, %v858
        %v863 = vadd.f32 %v795, %v859
        %v864 = vadd.f32 %v796, %v860
        %v865 = vadd.f32 %v797, %v861
        %866 = vset.pattern.permute.xlu0 9
        %867 = vperm.xlu0 %866, %v238
        %v868 = vpop.permute.xlu0 %867
        %870 = vset.pattern.permute.xlu0 9
        %871 = vperm.xlu0 %870, %v239
        %v872 = vpop.permute.xlu0 %871
        %874 = vset.pattern.permute.xlu0 9
        %875 = vperm.xlu0 %874, %v240
        %v876 = vpop.permute.xlu0 %875
        %878 = vset.pattern.permute.xlu0 9
        %879 = vperm.xlu0 %878, %v241
        %v880 = vpop.permute.xlu0 %879
        %v882 = vmul.f32 %v229, %v868
        %v883 = vmul.f32 %v230, %v872
        %v884 = vmul.f32 %v231, %v876
        %v885 = vmul.f32 %v232, %v880
        %886 = vset.pattern.permute.xlu0 73
        %887 = vperm.xlu0 %886, %v238
        %v888 = vpop.permute.xlu0 %887
        %890 = vset.pattern.permute.xlu0 73
        %891 = vperm.xlu0 %890, %v239
        %v892 = vpop.permute.xlu0 %891
        %894 = vset.pattern.permute.xlu0 73
        %895 = vperm.xlu0 %894, %v240
        %v896 = vpop.permute.xlu0 %895
        %898 = vset.pattern.permute.xlu0 73
        %899 = vperm.xlu0 %898, %v241
        %v900 = vpop.permute.xlu0 %899
        %v902 = vadd.f32 %v882, %v888
        %v903 = vadd.f32 %v883, %v892
        %v904 = vadd.f32 %v884, %v896
        %v905 = vadd.f32 %v885, %v900
        %v906 = vmax.f32 %v902, 0.0
        %v907 = vmax.f32 %v903, 0.0
        %v908 = vmax.f32 %v904, 0.0
        %v909 = vmax.f32 %v905, 0.0
        %910 = vset.pattern.permute.xlu0 9
        %911 = vperm.xlu0 %910, %v290
        %v912 = vpop.permute.xlu0 %911
        %914 = vset.pattern.permute.xlu0 9
        %915 = vperm.xlu0 %914, %v291
        %v916 = vpop.permute.xlu0 %915
        %918 = vset.pattern.permute.xlu0 9
        %919 = vperm.xlu0 %918, %v292
        %v920 = vpop.permute.xlu0 %919
        %922 = vset.pattern.permute.xlu0 9
        %923 = vperm.xlu0 %922, %v293
        %v924 = vpop.permute.xlu0 %923
        %v926 = vmul.f32 %v906, %v912
        %v927 = vmul.f32 %v907, %v916
        %v928 = vmul.f32 %v908, %v920
        %v929 = vmul.f32 %v909, %v924
        %v930 = vadd.f32 %v862, %v926
        %v931 = vadd.f32 %v863, %v927
        %v932 = vadd.f32 %v864, %v928
        %v933 = vadd.f32 %v865, %v929
        %934 = vset.pattern.permute.xlu0 10
        %935 = vperm.xlu0 %934, %v238
        %v936 = vpop.permute.xlu0 %935
        %938 = vset.pattern.permute.xlu0 10
        %939 = vperm.xlu0 %938, %v239
        %v940 = vpop.permute.xlu0 %939
        %942 = vset.pattern.permute.xlu0 10
        %943 = vperm.xlu0 %942, %v240
        %v944 = vpop.permute.xlu0 %943
        %946 = vset.pattern.permute.xlu0 10
        %947 = vperm.xlu0 %946, %v241
        %v948 = vpop.permute.xlu0 %947
        %v950 = vmul.f32 %v229, %v936
        %v951 = vmul.f32 %v230, %v940
        %v952 = vmul.f32 %v231, %v944
        %v953 = vmul.f32 %v232, %v948
        %954 = vset.pattern.permute.xlu0 74
        %955 = vperm.xlu0 %954, %v238
        %v956 = vpop.permute.xlu0 %955
        %958 = vset.pattern.permute.xlu0 74
        %959 = vperm.xlu0 %958, %v239
        %v960 = vpop.permute.xlu0 %959
        %962 = vset.pattern.permute.xlu0 74
        %963 = vperm.xlu0 %962, %v240
        %v964 = vpop.permute.xlu0 %963
        %966 = vset.pattern.permute.xlu0 74
        %967 = vperm.xlu0 %966, %v241
        %v968 = vpop.permute.xlu0 %967
        %v970 = vadd.f32 %v950, %v956
        %v971 = vadd.f32 %v951, %v960
        %v972 = vadd.f32 %v952, %v964
        %v973 = vadd.f32 %v953, %v968
        %v974 = vmax.f32 %v970, 0.0
        %v975 = vmax.f32 %v971, 0.0
        %v976 = vmax.f32 %v972, 0.0
        %v977 = vmax.f32 %v973, 0.0
        %978 = vset.pattern.permute.xlu0 10
        %979 = vperm.xlu0 %978, %v290
        %v980 = vpop.permute.xlu0 %979
        %982 = vset.pattern.permute.xlu0 10
        %983 = vperm.xlu0 %982, %v291
        %v984 = vpop.permute.xlu0 %983
        %986 = vset.pattern.permute.xlu0 10
        %987 = vperm.xlu0 %986, %v292
        %v988 = vpop.permute.xlu0 %987
        %990 = vset.pattern.permute.xlu0 10
        %991 = vperm.xlu0 %990, %v293
        %v992 = vpop.permute.xlu0 %991
        %v994 = vmul.f32 %v974, %v980
        %v995 = vmul.f32 %v975, %v984
        %v996 = vmul.f32 %v976, %v988
        %v997 = vmul.f32 %v977, %v992
        %v998 = vadd.f32 %v930, %v994
        %v999 = vadd.f32 %v931, %v995
        %v1000 = vadd.f32 %v932, %v996
        %v1001 = vadd.f32 %v933, %v997
        %1002 = vset.pattern.permute.xlu0 11
        %1003 = vperm.xlu0 %1002, %v238
        %v1004 = vpop.permute.xlu0 %1003
        %1006 = vset.pattern.permute.xlu0 11
        %1007 = vperm.xlu0 %1006, %v239
        %v1008 = vpop.permute.xlu0 %1007
        %1010 = vset.pattern.permute.xlu0 11
        %1011 = vperm.xlu0 %1010, %v240
        %v1012 = vpop.permute.xlu0 %1011
        %1014 = vset.pattern.permute.xlu0 11
        %1015 = vperm.xlu0 %1014, %v241
        %v1016 = vpop.permute.xlu0 %1015
        %v1018 = vmul.f32 %v229, %v1004
        %v1019 = vmul.f32 %v230, %v1008
        %v1020 = vmul.f32 %v231, %v1012
        %v1021 = vmul.f32 %v232, %v1016
        %1022 = vset.pattern.permute.xlu0 75
        %1023 = vperm.xlu0 %1022, %v238
        %v1024 = vpop.permute.xlu0 %1023
        %1026 = vset.pattern.permute.xlu0 75
        %1027 = vperm.xlu0 %1026, %v239
        %v1028 = vpop.permute.xlu0 %1027
        %1030 = vset.pattern.permute.xlu0 75
        %1031 = vperm.xlu0 %1030, %v240
        %v1032 = vpop.permute.xlu0 %1031
        %1034 = vset.pattern.permute.xlu0 75
        %1035 = vperm.xlu0 %1034, %v241
        %v1036 = vpop.permute.xlu0 %1035
        %v1038 = vadd.f32 %v1018, %v1024
        %v1039 = vadd.f32 %v1019, %v1028
        %v1040 = vadd.f32 %v1020, %v1032
        %v1041 = vadd.f32 %v1021, %v1036
        %v1042 = vmax.f32 %v1038, 0.0
        %v1043 = vmax.f32 %v1039, 0.0
        %v1044 = vmax.f32 %v1040, 0.0
        %v1045 = vmax.f32 %v1041, 0.0
        %1046 = vset.pattern.permute.xlu0 11
        %1047 = vperm.xlu0 %1046, %v290
        %v1048 = vpop.permute.xlu0 %1047
        %1050 = vset.pattern.permute.xlu0 11
        %1051 = vperm.xlu0 %1050, %v291
        %v1052 = vpop.permute.xlu0 %1051
        %1054 = vset.pattern.permute.xlu0 11
        %1055 = vperm.xlu0 %1054, %v292
        %v1056 = vpop.permute.xlu0 %1055
        %1058 = vset.pattern.permute.xlu0 11
        %1059 = vperm.xlu0 %1058, %v293
        %v1060 = vpop.permute.xlu0 %1059
        %v1062 = vmul.f32 %v1042, %v1048
        %v1063 = vmul.f32 %v1043, %v1052
        %v1064 = vmul.f32 %v1044, %v1056
        %v1065 = vmul.f32 %v1045, %v1060
        %v1066 = vadd.f32 %v998, %v1062
        %v1067 = vadd.f32 %v999, %v1063
        %v1068 = vadd.f32 %v1000, %v1064
        %v1069 = vadd.f32 %v1001, %v1065
        %1070 = vset.pattern.permute.xlu0 12
        %1071 = vperm.xlu0 %1070, %v238
        %v1072 = vpop.permute.xlu0 %1071
        %1074 = vset.pattern.permute.xlu0 12
        %1075 = vperm.xlu0 %1074, %v239
        %v1076 = vpop.permute.xlu0 %1075
        %1078 = vset.pattern.permute.xlu0 12
        %1079 = vperm.xlu0 %1078, %v240
        %v1080 = vpop.permute.xlu0 %1079
        %1082 = vset.pattern.permute.xlu0 12
        %1083 = vperm.xlu0 %1082, %v241
        %v1084 = vpop.permute.xlu0 %1083
        %v1086 = vmul.f32 %v229, %v1072
        %v1087 = vmul.f32 %v230, %v1076
        %v1088 = vmul.f32 %v231, %v1080
        %v1089 = vmul.f32 %v232, %v1084
        %1090 = vset.pattern.permute.xlu0 76
        %1091 = vperm.xlu0 %1090, %v238
        %v1092 = vpop.permute.xlu0 %1091
        %1094 = vset.pattern.permute.xlu0 76
        %1095 = vperm.xlu0 %1094, %v239
        %v1096 = vpop.permute.xlu0 %1095
        %1098 = vset.pattern.permute.xlu0 76
        %1099 = vperm.xlu0 %1098, %v240
        %v1100 = vpop.permute.xlu0 %1099
        %1102 = vset.pattern.permute.xlu0 76
        %1103 = vperm.xlu0 %1102, %v241
        %v1104 = vpop.permute.xlu0 %1103
        %v1106 = vadd.f32 %v1086, %v1092
        %v1107 = vadd.f32 %v1087, %v1096
        %v1108 = vadd.f32 %v1088, %v1100
        %v1109 = vadd.f32 %v1089, %v1104
        %v1110 = vmax.f32 %v1106, 0.0
        %v1111 = vmax.f32 %v1107, 0.0
        %v1112 = vmax.f32 %v1108, 0.0
        %v1113 = vmax.f32 %v1109, 0.0
        %1114 = vset.pattern.permute.xlu0 12
        %1115 = vperm.xlu0 %1114, %v290
        %v1116 = vpop.permute.xlu0 %1115
        %1118 = vset.pattern.permute.xlu0 12
        %1119 = vperm.xlu0 %1118, %v291
        %v1120 = vpop.permute.xlu0 %1119
        %1122 = vset.pattern.permute.xlu0 12
        %1123 = vperm.xlu0 %1122, %v292
        %v1124 = vpop.permute.xlu0 %1123
        %1126 = vset.pattern.permute.xlu0 12
        %1127 = vperm.xlu0 %1126, %v293
        %v1128 = vpop.permute.xlu0 %1127
        %v1130 = vmul.f32 %v1110, %v1116
        %v1131 = vmul.f32 %v1111, %v1120
        %v1132 = vmul.f32 %v1112, %v1124
        %v1133 = vmul.f32 %v1113, %v1128
        %v1134 = vadd.f32 %v1066, %v1130
        %v1135 = vadd.f32 %v1067, %v1131
        %v1136 = vadd.f32 %v1068, %v1132
        %v1137 = vadd.f32 %v1069, %v1133
        %1138 = vset.pattern.permute.xlu0 13
        %1139 = vperm.xlu0 %1138, %v238
        %v1140 = vpop.permute.xlu0 %1139
        %1142 = vset.pattern.permute.xlu0 13
        %1143 = vperm.xlu0 %1142, %v239
        %v1144 = vpop.permute.xlu0 %1143
        %1146 = vset.pattern.permute.xlu0 13
        %1147 = vperm.xlu0 %1146, %v240
        %v1148 = vpop.permute.xlu0 %1147
        %1150 = vset.pattern.permute.xlu0 13
        %1151 = vperm.xlu0 %1150, %v241
        %v1152 = vpop.permute.xlu0 %1151
        %v1154 = vmul.f32 %v229, %v1140
        %v1155 = vmul.f32 %v230, %v1144
        %v1156 = vmul.f32 %v231, %v1148
        %v1157 = vmul.f32 %v232, %v1152
        %1158 = vset.pattern.permute.xlu0 77
        %1159 = vperm.xlu0 %1158, %v238
        %v1160 = vpop.permute.xlu0 %1159
        %1162 = vset.pattern.permute.xlu0 77
        %1163 = vperm.xlu0 %1162, %v239
        %v1164 = vpop.permute.xlu0 %1163
        %1166 = vset.pattern.permute.xlu0 77
        %1167 = vperm.xlu0 %1166, %v240
        %v1168 = vpop.permute.xlu0 %1167
        %1170 = vset.pattern.permute.xlu0 77
        %1171 = vperm.xlu0 %1170, %v241
        %v1172 = vpop.permute.xlu0 %1171
        %v1174 = vadd.f32 %v1154, %v1160
        %v1175 = vadd.f32 %v1155, %v1164
        %v1176 = vadd.f32 %v1156, %v1168
        %v1177 = vadd.f32 %v1157, %v1172
        %v1178 = vmax.f32 %v1174, 0.0
        %v1179 = vmax.f32 %v1175, 0.0
        %v1180 = vmax.f32 %v1176, 0.0
        %v1181 = vmax.f32 %v1177, 0.0
        %1182 = vset.pattern.permute.xlu0 13
        %1183 = vperm.xlu0 %1182, %v290
        %v1184 = vpop.permute.xlu0 %1183
        %1186 = vset.pattern.permute.xlu0 13
        %1187 = vperm.xlu0 %1186, %v291
        %v1188 = vpop.permute.xlu0 %1187
        %1190 = vset.pattern.permute.xlu0 13
        %1191 = vperm.xlu0 %1190, %v292
        %v1192 = vpop.permute.xlu0 %1191
        %1194 = vset.pattern.permute.xlu0 13
        %1195 = vperm.xlu0 %1194, %v293
        %v1196 = vpop.permute.xlu0 %1195
        %v1198 = vmul.f32 %v1178, %v1184
        %v1199 = vmul.f32 %v1179, %v1188
        %v1200 = vmul.f32 %v1180, %v1192
        %v1201 = vmul.f32 %v1181, %v1196
        %v1202 = vadd.f32 %v1134, %v1198
        %v1203 = vadd.f32 %v1135, %v1199
        %v1204 = vadd.f32 %v1136, %v1200
        %v1205 = vadd.f32 %v1137, %v1201
        %1206 = vset.pattern.permute.xlu0 14
        %1207 = vperm.xlu0 %1206, %v238
        %v1208 = vpop.permute.xlu0 %1207
        %1210 = vset.pattern.permute.xlu0 14
        %1211 = vperm.xlu0 %1210, %v239
        %v1212 = vpop.permute.xlu0 %1211
        %1214 = vset.pattern.permute.xlu0 14
        %1215 = vperm.xlu0 %1214, %v240
        %v1216 = vpop.permute.xlu0 %1215
        %1218 = vset.pattern.permute.xlu0 14
        %1219 = vperm.xlu0 %1218, %v241
        %v1220 = vpop.permute.xlu0 %1219
        %v1222 = vmul.f32 %v229, %v1208
        %v1223 = vmul.f32 %v230, %v1212
        %v1224 = vmul.f32 %v231, %v1216
        %v1225 = vmul.f32 %v232, %v1220
        %1226 = vset.pattern.permute.xlu0 78
        %1227 = vperm.xlu0 %1226, %v238
        %v1228 = vpop.permute.xlu0 %1227
        %1230 = vset.pattern.permute.xlu0 78
        %1231 = vperm.xlu0 %1230, %v239
        %v1232 = vpop.permute.xlu0 %1231
        %1234 = vset.pattern.permute.xlu0 78
        %1235 = vperm.xlu0 %1234, %v240
        %v1236 = vpop.permute.xlu0 %1235
        %1238 = vset.pattern.permute.xlu0 78
        %1239 = vperm.xlu0 %1238, %v241
        %v1240 = vpop.permute.xlu0 %1239
        %v1242 = vadd.f32 %v1222, %v1228
        %v1243 = vadd.f32 %v1223, %v1232
        %v1244 = vadd.f32 %v1224, %v1236
        %v1245 = vadd.f32 %v1225, %v1240
        %v1246 = vmax.f32 %v1242, 0.0
        %v1247 = vmax.f32 %v1243, 0.0
        %v1248 = vmax.f32 %v1244, 0.0
        %v1249 = vmax.f32 %v1245, 0.0
        %1250 = vset.pattern.permute.xlu0 14
        %1251 = vperm.xlu0 %1250, %v290
        %v1252 = vpop.permute.xlu0 %1251
        %1254 = vset.pattern.permute.xlu0 14
        %1255 = vperm.xlu0 %1254, %v291
        %v1256 = vpop.permute.xlu0 %1255
        %1258 = vset.pattern.permute.xlu0 14
        %1259 = vperm.xlu0 %1258, %v292
        %v1260 = vpop.permute.xlu0 %1259
        %1262 = vset.pattern.permute.xlu0 14
        %1263 = vperm.xlu0 %1262, %v293
        %v1264 = vpop.permute.xlu0 %1263
        %v1266 = vmul.f32 %v1246, %v1252
        %v1267 = vmul.f32 %v1247, %v1256
        %v1268 = vmul.f32 %v1248, %v1260
        %v1269 = vmul.f32 %v1249, %v1264
        %v1270 = vadd.f32 %v1202, %v1266
        %v1271 = vadd.f32 %v1203, %v1267
        %v1272 = vadd.f32 %v1204, %v1268
        %v1273 = vadd.f32 %v1205, %v1269
        %1274 = vset.pattern.permute.xlu0 15
        %1275 = vperm.xlu0 %1274, %v238
        %v1276 = vpop.permute.xlu0 %1275
        %1278 = vset.pattern.permute.xlu0 15
        %1279 = vperm.xlu0 %1278, %v239
        %v1280 = vpop.permute.xlu0 %1279
        %1282 = vset.pattern.permute.xlu0 15
        %1283 = vperm.xlu0 %1282, %v240
        %v1284 = vpop.permute.xlu0 %1283
        %1286 = vset.pattern.permute.xlu0 15
        %1287 = vperm.xlu0 %1286, %v241
        %v1288 = vpop.permute.xlu0 %1287
        %v1290 = vmul.f32 %v229, %v1276
        %v1291 = vmul.f32 %v230, %v1280
        %v1292 = vmul.f32 %v231, %v1284
        %v1293 = vmul.f32 %v232, %v1288
        %1294 = vset.pattern.permute.xlu0 79
        %1295 = vperm.xlu0 %1294, %v238
        %v1296 = vpop.permute.xlu0 %1295
        %1298 = vset.pattern.permute.xlu0 79
        %1299 = vperm.xlu0 %1298, %v239
        %v1300 = vpop.permute.xlu0 %1299
        %1302 = vset.pattern.permute.xlu0 79
        %1303 = vperm.xlu0 %1302, %v240
        %v1304 = vpop.permute.xlu0 %1303
        %1306 = vset.pattern.permute.xlu0 79
        %1307 = vperm.xlu0 %1306, %v241
        %v1308 = vpop.permute.xlu0 %1307
        %v1310 = vadd.f32 %v1290, %v1296
        %v1311 = vadd.f32 %v1291, %v1300
        %v1312 = vadd.f32 %v1292, %v1304
        %v1313 = vadd.f32 %v1293, %v1308
        %v1314 = vmax.f32 %v1310, 0.0
        %v1315 = vmax.f32 %v1311, 0.0
        %v1316 = vmax.f32 %v1312, 0.0
        %v1317 = vmax.f32 %v1313, 0.0
        %1318 = vset.pattern.permute.xlu0 15
        %1319 = vperm.xlu0 %1318, %v290
        %v1320 = vpop.permute.xlu0 %1319
        %1322 = vset.pattern.permute.xlu0 15
        %1323 = vperm.xlu0 %1322, %v291
        %v1324 = vpop.permute.xlu0 %1323
        %1326 = vset.pattern.permute.xlu0 15
        %1327 = vperm.xlu0 %1326, %v292
        %v1328 = vpop.permute.xlu0 %1327
        %1330 = vset.pattern.permute.xlu0 15
        %1331 = vperm.xlu0 %1330, %v293
        %v1332 = vpop.permute.xlu0 %1331
        %v1334 = vmul.f32 %v1314, %v1320
        %v1335 = vmul.f32 %v1315, %v1324
        %v1336 = vmul.f32 %v1316, %v1328
        %v1337 = vmul.f32 %v1317, %v1332
        %v1338 = vadd.f32 %v1270, %v1334
        %v1339 = vadd.f32 %v1271, %v1335
        %v1340 = vadd.f32 %v1272, %v1336
        %v1341 = vadd.f32 %v1273, %v1337
        %1342 = vset.pattern.permute.xlu0 64
        %1343 = vperm.xlu0 %1342, %v290
        %v1344 = vpop.permute.xlu0 %1343
        %1346 = vset.pattern.permute.xlu0 64
        %1347 = vperm.xlu0 %1346, %v291
        %v1348 = vpop.permute.xlu0 %1347
        %1350 = vset.pattern.permute.xlu0 64
        %1351 = vperm.xlu0 %1350, %v292
        %v1352 = vpop.permute.xlu0 %1351
        %1354 = vset.pattern.permute.xlu0 64
        %1355 = vperm.xlu0 %1354, %v293
        %v1356 = vpop.permute.xlu0 %1355
        %v1358 = vadd.f32 %v1338, %v1344
        %v1359 = vadd.f32 %v1339, %v1348
        %v1360 = vadd.f32 %v1340, %v1352
        %v1361 = vadd.f32 %v1341, %v1356
        %1362 = vset.pattern.permute.xlu0 16
        %1363 = vperm.xlu0 %1362, %v238
        %v1364 = vpop.permute.xlu0 %1363
        %1366 = vset.pattern.permute.xlu0 16
        %1367 = vperm.xlu0 %1366, %v239
        %v1368 = vpop.permute.xlu0 %1367
        %1370 = vset.pattern.permute.xlu0 16
        %1371 = vperm.xlu0 %1370, %v240
        %v1372 = vpop.permute.xlu0 %1371
        %1374 = vset.pattern.permute.xlu0 16
        %1375 = vperm.xlu0 %1374, %v241
        %v1376 = vpop.permute.xlu0 %1375
        %v1378 = vmul.f32 %v229, %v1364
        %v1379 = vmul.f32 %v230, %v1368
        %v1380 = vmul.f32 %v231, %v1372
        %v1381 = vmul.f32 %v232, %v1376
        %1382 = vset.pattern.permute.xlu0 80
        %1383 = vperm.xlu0 %1382, %v238
        %v1384 = vpop.permute.xlu0 %1383
        %1386 = vset.pattern.permute.xlu0 80
        %1387 = vperm.xlu0 %1386, %v239
        %v1388 = vpop.permute.xlu0 %1387
        %1390 = vset.pattern.permute.xlu0 80
        %1391 = vperm.xlu0 %1390, %v240
        %v1392 = vpop.permute.xlu0 %1391
        %1394 = vset.pattern.permute.xlu0 80
        %1395 = vperm.xlu0 %1394, %v241
        %v1396 = vpop.permute.xlu0 %1395
        %v1398 = vadd.f32 %v1378, %v1384
        %v1399 = vadd.f32 %v1379, %v1388
        %v1400 = vadd.f32 %v1380, %v1392
        %v1401 = vadd.f32 %v1381, %v1396
        %v1402 = vmax.f32 %v1398, 0.0
        %v1403 = vmax.f32 %v1399, 0.0
        %v1404 = vmax.f32 %v1400, 0.0
        %v1405 = vmax.f32 %v1401, 0.0
        %1406 = vset.pattern.permute.xlu0 16
        %1407 = vperm.xlu0 %1406, %v290
        %v1408 = vpop.permute.xlu0 %1407
        %1410 = vset.pattern.permute.xlu0 16
        %1411 = vperm.xlu0 %1410, %v291
        %v1412 = vpop.permute.xlu0 %1411
        %1414 = vset.pattern.permute.xlu0 16
        %1415 = vperm.xlu0 %1414, %v292
        %v1416 = vpop.permute.xlu0 %1415
        %1418 = vset.pattern.permute.xlu0 16
        %1419 = vperm.xlu0 %1418, %v293
        %v1420 = vpop.permute.xlu0 %1419
        %v1422 = vmul.f32 %v1402, %v1408
        %v1423 = vmul.f32 %v1403, %v1412
        %v1424 = vmul.f32 %v1404, %v1416
        %v1425 = vmul.f32 %v1405, %v1420
        %v1426 = vadd.f32 %v1422, 0.0
        %v1427 = vadd.f32 %v1423, 0.0
        %v1428 = vadd.f32 %v1424, 0.0
        %v1429 = vadd.f32 %v1425, 0.0
        %1430 = vset.pattern.permute.xlu0 17
        %1431 = vperm.xlu0 %1430, %v238
        %v1432 = vpop.permute.xlu0 %1431
        %1434 = vset.pattern.permute.xlu0 17
        %1435 = vperm.xlu0 %1434, %v239
        %v1436 = vpop.permute.xlu0 %1435
        %1438 = vset.pattern.permute.xlu0 17
        %1439 = vperm.xlu0 %1438, %v240
        %v1440 = vpop.permute.xlu0 %1439
        %1442 = vset.pattern.permute.xlu0 17
        %1443 = vperm.xlu0 %1442, %v241
        %v1444 = vpop.permute.xlu0 %1443
        %v1446 = vmul.f32 %v229, %v1432
        %v1447 = vmul.f32 %v230, %v1436
        %v1448 = vmul.f32 %v231, %v1440
        %v1449 = vmul.f32 %v232, %v1444
        %1450 = vset.pattern.permute.xlu0 81
        %1451 = vperm.xlu0 %1450, %v238
        %v1452 = vpop.permute.xlu0 %1451
        %1454 = vset.pattern.permute.xlu0 81
        %1455 = vperm.xlu0 %1454, %v239
        %v1456 = vpop.permute.xlu0 %1455
        %1458 = vset.pattern.permute.xlu0 81
        %1459 = vperm.xlu0 %1458, %v240
        %v1460 = vpop.permute.xlu0 %1459
        %1462 = vset.pattern.permute.xlu0 81
        %1463 = vperm.xlu0 %1462, %v241
        %v1464 = vpop.permute.xlu0 %1463
        %v1466 = vadd.f32 %v1446, %v1452
        %v1467 = vadd.f32 %v1447, %v1456
        %v1468 = vadd.f32 %v1448, %v1460
        %v1469 = vadd.f32 %v1449, %v1464
        %v1470 = vmax.f32 %v1466, 0.0
        %v1471 = vmax.f32 %v1467, 0.0
        %v1472 = vmax.f32 %v1468, 0.0
        %v1473 = vmax.f32 %v1469, 0.0
        %1474 = vset.pattern.permute.xlu0 17
        %1475 = vperm.xlu0 %1474, %v290
        %v1476 = vpop.permute.xlu0 %1475
        %1478 = vset.pattern.permute.xlu0 17
        %1479 = vperm.xlu0 %1478, %v291
        %v1480 = vpop.permute.xlu0 %1479
        %1482 = vset.pattern.permute.xlu0 17
        %1483 = vperm.xlu0 %1482, %v292
        %v1484 = vpop.permute.xlu0 %1483
        %1486 = vset.pattern.permute.xlu0 17
        %1487 = vperm.xlu0 %1486, %v293
        %v1488 = vpop.permute.xlu0 %1487
        %v1490 = vmul.f32 %v1470, %v1476
        %v1491 = vmul.f32 %v1471, %v1480
        %v1492 = vmul.f32 %v1472, %v1484
        %v1493 = vmul.f32 %v1473, %v1488
        %v1494 = vadd.f32 %v1426, %v1490
        %v1495 = vadd.f32 %v1427, %v1491
        %v1496 = vadd.f32 %v1428, %v1492
        %v1497 = vadd.f32 %v1429, %v1493
        %1498 = vset.pattern.permute.xlu0 18
        %1499 = vperm.xlu0 %1498, %v238
        %v1500 = vpop.permute.xlu0 %1499
        %1502 = vset.pattern.permute.xlu0 18
        %1503 = vperm.xlu0 %1502, %v239
        %v1504 = vpop.permute.xlu0 %1503
        %1506 = vset.pattern.permute.xlu0 18
        %1507 = vperm.xlu0 %1506, %v240
        %v1508 = vpop.permute.xlu0 %1507
        %1510 = vset.pattern.permute.xlu0 18
        %1511 = vperm.xlu0 %1510, %v241
        %v1512 = vpop.permute.xlu0 %1511
        %v1514 = vmul.f32 %v229, %v1500
        %v1515 = vmul.f32 %v230, %v1504
        %v1516 = vmul.f32 %v231, %v1508
        %v1517 = vmul.f32 %v232, %v1512
        %1518 = vset.pattern.permute.xlu0 82
        %1519 = vperm.xlu0 %1518, %v238
        %v1520 = vpop.permute.xlu0 %1519
        %1522 = vset.pattern.permute.xlu0 82
        %1523 = vperm.xlu0 %1522, %v239
        %v1524 = vpop.permute.xlu0 %1523
        %1526 = vset.pattern.permute.xlu0 82
        %1527 = vperm.xlu0 %1526, %v240
        %v1528 = vpop.permute.xlu0 %1527
        %1530 = vset.pattern.permute.xlu0 82
        %1531 = vperm.xlu0 %1530, %v241
        %v1532 = vpop.permute.xlu0 %1531
        %v1534 = vadd.f32 %v1514, %v1520
        %v1535 = vadd.f32 %v1515, %v1524
        %v1536 = vadd.f32 %v1516, %v1528
        %v1537 = vadd.f32 %v1517, %v1532
        %v1538 = vmax.f32 %v1534, 0.0
        %v1539 = vmax.f32 %v1535, 0.0
        %v1540 = vmax.f32 %v1536, 0.0
        %v1541 = vmax.f32 %v1537, 0.0
        %1542 = vset.pattern.permute.xlu0 18
        %1543 = vperm.xlu0 %1542, %v290
        %v1544 = vpop.permute.xlu0 %1543
        %1546 = vset.pattern.permute.xlu0 18
        %1547 = vperm.xlu0 %1546, %v291
        %v1548 = vpop.permute.xlu0 %1547
        %1550 = vset.pattern.permute.xlu0 18
        %1551 = vperm.xlu0 %1550, %v292
        %v1552 = vpop.permute.xlu0 %1551
        %1554 = vset.pattern.permute.xlu0 18
        %1555 = vperm.xlu0 %1554, %v293
        %v1556 = vpop.permute.xlu0 %1555
        %v1558 = vmul.f32 %v1538, %v1544
        %v1559 = vmul.f32 %v1539, %v1548
        %v1560 = vmul.f32 %v1540, %v1552
        %v1561 = vmul.f32 %v1541, %v1556
        %v1562 = vadd.f32 %v1494, %v1558
        %v1563 = vadd.f32 %v1495, %v1559
        %v1564 = vadd.f32 %v1496, %v1560
        %v1565 = vadd.f32 %v1497, %v1561
        %1566 = vset.pattern.permute.xlu0 19
        %1567 = vperm.xlu0 %1566, %v238
        %v1568 = vpop.permute.xlu0 %1567
        %1570 = vset.pattern.permute.xlu0 19
        %1571 = vperm.xlu0 %1570, %v239
        %v1572 = vpop.permute.xlu0 %1571
        %1574 = vset.pattern.permute.xlu0 19
        %1575 = vperm.xlu0 %1574, %v240
        %v1576 = vpop.permute.xlu0 %1575
        %1578 = vset.pattern.permute.xlu0 19
        %1579 = vperm.xlu0 %1578, %v241
        %v1580 = vpop.permute.xlu0 %1579
        %v1582 = vmul.f32 %v229, %v1568
        %v1583 = vmul.f32 %v230, %v1572
        %v1584 = vmul.f32 %v231, %v1576
        %v1585 = vmul.f32 %v232, %v1580
        %1586 = vset.pattern.permute.xlu0 83
        %1587 = vperm.xlu0 %1586, %v238
        %v1588 = vpop.permute.xlu0 %1587
        %1590 = vset.pattern.permute.xlu0 83
        %1591 = vperm.xlu0 %1590, %v239
        %v1592 = vpop.permute.xlu0 %1591
        %1594 = vset.pattern.permute.xlu0 83
        %1595 = vperm.xlu0 %1594, %v240
        %v1596 = vpop.permute.xlu0 %1595
        %1598 = vset.pattern.permute.xlu0 83
        %1599 = vperm.xlu0 %1598, %v241
        %v1600 = vpop.permute.xlu0 %1599
        %v1602 = vadd.f32 %v1582, %v1588
        %v1603 = vadd.f32 %v1583, %v1592
        %v1604 = vadd.f32 %v1584, %v1596
        %v1605 = vadd.f32 %v1585, %v1600
        %v1606 = vmax.f32 %v1602, 0.0
        %v1607 = vmax.f32 %v1603, 0.0
        %v1608 = vmax.f32 %v1604, 0.0
        %v1609 = vmax.f32 %v1605, 0.0
        %1610 = vset.pattern.permute.xlu0 19
        %1611 = vperm.xlu0 %1610, %v290
        %v1612 = vpop.permute.xlu0 %1611
        %1614 = vset.pattern.permute.xlu0 19
        %1615 = vperm.xlu0 %1614, %v291
        %v1616 = vpop.permute.xlu0 %1615
        %1618 = vset.pattern.permute.xlu0 19
        %1619 = vperm.xlu0 %1618, %v292
        %v1620 = vpop.permute.xlu0 %1619
        %1622 = vset.pattern.permute.xlu0 19
        %1623 = vperm.xlu0 %1622, %v293
        %v1624 = vpop.permute.xlu0 %1623
        %v1626 = vmul.f32 %v1606, %v1612
        %v1627 = vmul.f32 %v1607, %v1616
        %v1628 = vmul.f32 %v1608, %v1620
        %v1629 = vmul.f32 %v1609, %v1624
        %v1630 = vadd.f32 %v1562, %v1626
        %v1631 = vadd.f32 %v1563, %v1627
        %v1632 = vadd.f32 %v1564, %v1628
        %v1633 = vadd.f32 %v1565, %v1629
        %1634 = vset.pattern.permute.xlu0 20
        %1635 = vperm.xlu0 %1634, %v238
        %v1636 = vpop.permute.xlu0 %1635
        %1638 = vset.pattern.permute.xlu0 20
        %1639 = vperm.xlu0 %1638, %v239
        %v1640 = vpop.permute.xlu0 %1639
        %1642 = vset.pattern.permute.xlu0 20
        %1643 = vperm.xlu0 %1642, %v240
        %v1644 = vpop.permute.xlu0 %1643
        %1646 = vset.pattern.permute.xlu0 20
        %1647 = vperm.xlu0 %1646, %v241
        %v1648 = vpop.permute.xlu0 %1647
        %v1650 = vmul.f32 %v229, %v1636
        %v1651 = vmul.f32 %v230, %v1640
        %v1652 = vmul.f32 %v231, %v1644
        %v1653 = vmul.f32 %v232, %v1648
        %1654 = vset.pattern.permute.xlu0 84
        %1655 = vperm.xlu0 %1654, %v238
        %v1656 = vpop.permute.xlu0 %1655
        %1658 = vset.pattern.permute.xlu0 84
        %1659 = vperm.xlu0 %1658, %v239
        %v1660 = vpop.permute.xlu0 %1659
        %1662 = vset.pattern.permute.xlu0 84
        %1663 = vperm.xlu0 %1662, %v240
        %v1664 = vpop.permute.xlu0 %1663
        %1666 = vset.pattern.permute.xlu0 84
        %1667 = vperm.xlu0 %1666, %v241
        %v1668 = vpop.permute.xlu0 %1667
        %v1670 = vadd.f32 %v1650, %v1656
        %v1671 = vadd.f32 %v1651, %v1660
        %v1672 = vadd.f32 %v1652, %v1664
        %v1673 = vadd.f32 %v1653, %v1668
        %v1674 = vmax.f32 %v1670, 0.0
        %v1675 = vmax.f32 %v1671, 0.0
        %v1676 = vmax.f32 %v1672, 0.0
        %v1677 = vmax.f32 %v1673, 0.0
        %1678 = vset.pattern.permute.xlu0 20
        %1679 = vperm.xlu0 %1678, %v290
        %v1680 = vpop.permute.xlu0 %1679
        %1682 = vset.pattern.permute.xlu0 20
        %1683 = vperm.xlu0 %1682, %v291
        %v1684 = vpop.permute.xlu0 %1683
        %1686 = vset.pattern.permute.xlu0 20
        %1687 = vperm.xlu0 %1686, %v292
        %v1688 = vpop.permute.xlu0 %1687
        %1690 = vset.pattern.permute.xlu0 20
        %1691 = vperm.xlu0 %1690, %v293
        %v1692 = vpop.permute.xlu0 %1691
        %v1694 = vmul.f32 %v1674, %v1680
        %v1695 = vmul.f32 %v1675, %v1684
        %v1696 = vmul.f32 %v1676, %v1688
        %v1697 = vmul.f32 %v1677, %v1692
        %v1698 = vadd.f32 %v1630, %v1694
        %v1699 = vadd.f32 %v1631, %v1695
        %v1700 = vadd.f32 %v1632, %v1696
        %v1701 = vadd.f32 %v1633, %v1697
        %1702 = vset.pattern.permute.xlu0 21
        %1703 = vperm.xlu0 %1702, %v238
        %v1704 = vpop.permute.xlu0 %1703
        %1706 = vset.pattern.permute.xlu0 21
        %1707 = vperm.xlu0 %1706, %v239
        %v1708 = vpop.permute.xlu0 %1707
        %1710 = vset.pattern.permute.xlu0 21
        %1711 = vperm.xlu0 %1710, %v240
        %v1712 = vpop.permute.xlu0 %1711
        %1714 = vset.pattern.permute.xlu0 21
        %1715 = vperm.xlu0 %1714, %v241
        %v1716 = vpop.permute.xlu0 %1715
        %v1718 = vmul.f32 %v229, %v1704
        %v1719 = vmul.f32 %v230, %v1708
        %v1720 = vmul.f32 %v231, %v1712
        %v1721 = vmul.f32 %v232, %v1716
        %1722 = vset.pattern.permute.xlu0 85
        %1723 = vperm.xlu0 %1722, %v238
        %v1724 = vpop.permute.xlu0 %1723
        %1726 = vset.pattern.permute.xlu0 85
        %1727 = vperm.xlu0 %1726, %v239
        %v1728 = vpop.permute.xlu0 %1727
        %1730 = vset.pattern.permute.xlu0 85
        %1731 = vperm.xlu0 %1730, %v240
        %v1732 = vpop.permute.xlu0 %1731
        %1734 = vset.pattern.permute.xlu0 85
        %1735 = vperm.xlu0 %1734, %v241
        %v1736 = vpop.permute.xlu0 %1735
        %v1738 = vadd.f32 %v1718, %v1724
        %v1739 = vadd.f32 %v1719, %v1728
        %v1740 = vadd.f32 %v1720, %v1732
        %v1741 = vadd.f32 %v1721, %v1736
        %v1742 = vmax.f32 %v1738, 0.0
        %v1743 = vmax.f32 %v1739, 0.0
        %v1744 = vmax.f32 %v1740, 0.0
        %v1745 = vmax.f32 %v1741, 0.0
        %1746 = vset.pattern.permute.xlu0 21
        %1747 = vperm.xlu0 %1746, %v290
        %v1748 = vpop.permute.xlu0 %1747
        %1750 = vset.pattern.permute.xlu0 21
        %1751 = vperm.xlu0 %1750, %v291
        %v1752 = vpop.permute.xlu0 %1751
        %1754 = vset.pattern.permute.xlu0 21
        %1755 = vperm.xlu0 %1754, %v292
        %v1756 = vpop.permute.xlu0 %1755
        %1758 = vset.pattern.permute.xlu0 21
        %1759 = vperm.xlu0 %1758, %v293
        %v1760 = vpop.permute.xlu0 %1759
        %v1762 = vmul.f32 %v1742, %v1748
        %v1763 = vmul.f32 %v1743, %v1752
        %v1764 = vmul.f32 %v1744, %v1756
        %v1765 = vmul.f32 %v1745, %v1760
        %v1766 = vadd.f32 %v1698, %v1762
        %v1767 = vadd.f32 %v1699, %v1763
        %v1768 = vadd.f32 %v1700, %v1764
        %v1769 = vadd.f32 %v1701, %v1765
        %1770 = vset.pattern.permute.xlu0 22
        %1771 = vperm.xlu0 %1770, %v238
        %v1772 = vpop.permute.xlu0 %1771
        %1774 = vset.pattern.permute.xlu0 22
        %1775 = vperm.xlu0 %1774, %v239
        %v1776 = vpop.permute.xlu0 %1775
        %1778 = vset.pattern.permute.xlu0 22
        %1779 = vperm.xlu0 %1778, %v240
        %v1780 = vpop.permute.xlu0 %1779
        %1782 = vset.pattern.permute.xlu0 22
        %1783 = vperm.xlu0 %1782, %v241
        %v1784 = vpop.permute.xlu0 %1783
        %v1786 = vmul.f32 %v229, %v1772
        %v1787 = vmul.f32 %v230, %v1776
        %v1788 = vmul.f32 %v231, %v1780
        %v1789 = vmul.f32 %v232, %v1784
        %1790 = vset.pattern.permute.xlu0 86
        %1791 = vperm.xlu0 %1790, %v238
        %v1792 = vpop.permute.xlu0 %1791
        %1794 = vset.pattern.permute.xlu0 86
        %1795 = vperm.xlu0 %1794, %v239
        %v1796 = vpop.permute.xlu0 %1795
        %1798 = vset.pattern.permute.xlu0 86
        %1799 = vperm.xlu0 %1798, %v240
        %v1800 = vpop.permute.xlu0 %1799
        %1802 = vset.pattern.permute.xlu0 86
        %1803 = vperm.xlu0 %1802, %v241
        %v1804 = vpop.permute.xlu0 %1803
        %v1806 = vadd.f32 %v1786, %v1792
        %v1807 = vadd.f32 %v1787, %v1796
        %v1808 = vadd.f32 %v1788, %v1800
        %v1809 = vadd.f32 %v1789, %v1804
        %v1810 = vmax.f32 %v1806, 0.0
        %v1811 = vmax.f32 %v1807, 0.0
        %v1812 = vmax.f32 %v1808, 0.0
        %v1813 = vmax.f32 %v1809, 0.0
        %1814 = vset.pattern.permute.xlu0 22
        %1815 = vperm.xlu0 %1814, %v290
        %v1816 = vpop.permute.xlu0 %1815
        %1818 = vset.pattern.permute.xlu0 22
        %1819 = vperm.xlu0 %1818, %v291
        %v1820 = vpop.permute.xlu0 %1819
        %1822 = vset.pattern.permute.xlu0 22
        %1823 = vperm.xlu0 %1822, %v292
        %v1824 = vpop.permute.xlu0 %1823
        %1826 = vset.pattern.permute.xlu0 22
        %1827 = vperm.xlu0 %1826, %v293
        %v1828 = vpop.permute.xlu0 %1827
        %v1830 = vmul.f32 %v1810, %v1816
        %v1831 = vmul.f32 %v1811, %v1820
        %v1832 = vmul.f32 %v1812, %v1824
        %v1833 = vmul.f32 %v1813, %v1828
        %v1834 = vadd.f32 %v1766, %v1830
        %v1835 = vadd.f32 %v1767, %v1831
        %v1836 = vadd.f32 %v1768, %v1832
        %v1837 = vadd.f32 %v1769, %v1833
        %1838 = vset.pattern.permute.xlu0 23
        %1839 = vperm.xlu0 %1838, %v238
        %v1840 = vpop.permute.xlu0 %1839
        %1842 = vset.pattern.permute.xlu0 23
        %1843 = vperm.xlu0 %1842, %v239
        %v1844 = vpop.permute.xlu0 %1843
        %1846 = vset.pattern.permute.xlu0 23
        %1847 = vperm.xlu0 %1846, %v240
        %v1848 = vpop.permute.xlu0 %1847
        %1850 = vset.pattern.permute.xlu0 23
        %1851 = vperm.xlu0 %1850, %v241
        %v1852 = vpop.permute.xlu0 %1851
        %v1854 = vmul.f32 %v229, %v1840
        %v1855 = vmul.f32 %v230, %v1844
        %v1856 = vmul.f32 %v231, %v1848
        %v1857 = vmul.f32 %v232, %v1852
        %1858 = vset.pattern.permute.xlu0 87
        %1859 = vperm.xlu0 %1858, %v238
        %v1860 = vpop.permute.xlu0 %1859
        %1862 = vset.pattern.permute.xlu0 87
        %1863 = vperm.xlu0 %1862, %v239
        %v1864 = vpop.permute.xlu0 %1863
        %1866 = vset.pattern.permute.xlu0 87
        %1867 = vperm.xlu0 %1866, %v240
        %v1868 = vpop.permute.xlu0 %1867
        %1870 = vset.pattern.permute.xlu0 87
        %1871 = vperm.xlu0 %1870, %v241
        %v1872 = vpop.permute.xlu0 %1871
        %v1874 = vadd.f32 %v1854, %v1860
        %v1875 = vadd.f32 %v1855, %v1864
        %v1876 = vadd.f32 %v1856, %v1868
        %v1877 = vadd.f32 %v1857, %v1872
        %v1878 = vmax.f32 %v1874, 0.0
        %v1879 = vmax.f32 %v1875, 0.0
        %v1880 = vmax.f32 %v1876, 0.0
        %v1881 = vmax.f32 %v1877, 0.0
        %1882 = vset.pattern.permute.xlu0 23
        %1883 = vperm.xlu0 %1882, %v290
        %v1884 = vpop.permute.xlu0 %1883
        %1886 = vset.pattern.permute.xlu0 23
        %1887 = vperm.xlu0 %1886, %v291
        %v1888 = vpop.permute.xlu0 %1887
        %1890 = vset.pattern.permute.xlu0 23
        %1891 = vperm.xlu0 %1890, %v292
        %v1892 = vpop.permute.xlu0 %1891
        %1894 = vset.pattern.permute.xlu0 23
        %1895 = vperm.xlu0 %1894, %v293
        %v1896 = vpop.permute.xlu0 %1895
        %v1898 = vmul.f32 %v1878, %v1884
        %v1899 = vmul.f32 %v1879, %v1888
        %v1900 = vmul.f32 %v1880, %v1892
        %v1901 = vmul.f32 %v1881, %v1896
        %v1902 = vadd.f32 %v1834, %v1898
        %v1903 = vadd.f32 %v1835, %v1899
        %v1904 = vadd.f32 %v1836, %v1900
        %v1905 = vadd.f32 %v1837, %v1901
        %1906 = vset.pattern.permute.xlu0 24
        %1907 = vperm.xlu0 %1906, %v238
        %v1908 = vpop.permute.xlu0 %1907
        %1910 = vset.pattern.permute.xlu0 24
        %1911 = vperm.xlu0 %1910, %v239
        %v1912 = vpop.permute.xlu0 %1911
        %1914 = vset.pattern.permute.xlu0 24
        %1915 = vperm.xlu0 %1914, %v240
        %v1916 = vpop.permute.xlu0 %1915
        %1918 = vset.pattern.permute.xlu0 24
        %1919 = vperm.xlu0 %1918, %v241
        %v1920 = vpop.permute.xlu0 %1919
        %v1922 = vmul.f32 %v229, %v1908
        %v1923 = vmul.f32 %v230, %v1912
        %v1924 = vmul.f32 %v231, %v1916
        %v1925 = vmul.f32 %v232, %v1920
        %1926 = vset.pattern.permute.xlu0 88
        %1927 = vperm.xlu0 %1926, %v238
        %v1928 = vpop.permute.xlu0 %1927
        %1930 = vset.pattern.permute.xlu0 88
        %1931 = vperm.xlu0 %1930, %v239
        %v1932 = vpop.permute.xlu0 %1931
        %1934 = vset.pattern.permute.xlu0 88
        %1935 = vperm.xlu0 %1934, %v240
        %v1936 = vpop.permute.xlu0 %1935
        %1938 = vset.pattern.permute.xlu0 88
        %1939 = vperm.xlu0 %1938, %v241
        %v1940 = vpop.permute.xlu0 %1939
        %v1942 = vadd.f32 %v1922, %v1928
        %v1943 = vadd.f32 %v1923, %v1932
        %v1944 = vadd.f32 %v1924, %v1936
        %v1945 = vadd.f32 %v1925, %v1940
        %v1946 = vmax.f32 %v1942, 0.0
        %v1947 = vmax.f32 %v1943, 0.0
        %v1948 = vmax.f32 %v1944, 0.0
        %v1949 = vmax.f32 %v1945, 0.0
        %1950 = vset.pattern.permute.xlu0 24
        %1951 = vperm.xlu0 %1950, %v290
        %v1952 = vpop.permute.xlu0 %1951
        %1954 = vset.pattern.permute.xlu0 24
        %1955 = vperm.xlu0 %1954, %v291
        %v1956 = vpop.permute.xlu0 %1955
        %1958 = vset.pattern.permute.xlu0 24
        %1959 = vperm.xlu0 %1958, %v292
        %v1960 = vpop.permute.xlu0 %1959
        %1962 = vset.pattern.permute.xlu0 24
        %1963 = vperm.xlu0 %1962, %v293
        %v1964 = vpop.permute.xlu0 %1963
        %v1966 = vmul.f32 %v1946, %v1952
        %v1967 = vmul.f32 %v1947, %v1956
        %v1968 = vmul.f32 %v1948, %v1960
        %v1969 = vmul.f32 %v1949, %v1964
        %v1970 = vadd.f32 %v1902, %v1966
        %v1971 = vadd.f32 %v1903, %v1967
        %v1972 = vadd.f32 %v1904, %v1968
        %v1973 = vadd.f32 %v1905, %v1969
        %1974 = vset.pattern.permute.xlu0 25
        %1975 = vperm.xlu0 %1974, %v238
        %v1976 = vpop.permute.xlu0 %1975
        %1978 = vset.pattern.permute.xlu0 25
        %1979 = vperm.xlu0 %1978, %v239
        %v1980 = vpop.permute.xlu0 %1979
        %1982 = vset.pattern.permute.xlu0 25
        %1983 = vperm.xlu0 %1982, %v240
        %v1984 = vpop.permute.xlu0 %1983
        %1986 = vset.pattern.permute.xlu0 25
        %1987 = vperm.xlu0 %1986, %v241
        %v1988 = vpop.permute.xlu0 %1987
        %v1990 = vmul.f32 %v229, %v1976
        %v1991 = vmul.f32 %v230, %v1980
        %v1992 = vmul.f32 %v231, %v1984
        %v1993 = vmul.f32 %v232, %v1988
        %1994 = vset.pattern.permute.xlu0 89
        %1995 = vperm.xlu0 %1994, %v238
        %v1996 = vpop.permute.xlu0 %1995
        %1998 = vset.pattern.permute.xlu0 89
        %1999 = vperm.xlu0 %1998, %v239
        %v2000 = vpop.permute.xlu0 %1999
        %2002 = vset.pattern.permute.xlu0 89
        %2003 = vperm.xlu0 %2002, %v240
        %v2004 = vpop.permute.xlu0 %2003
        %2006 = vset.pattern.permute.xlu0 89
        %2007 = vperm.xlu0 %2006, %v241
        %v2008 = vpop.permute.xlu0 %2007
        %v2010 = vadd.f32 %v1990, %v1996
        %v2011 = vadd.f32 %v1991, %v2000
        %v2012 = vadd.f32 %v1992, %v2004
        %v2013 = vadd.f32 %v1993, %v2008
        %v2014 = vmax.f32 %v2010, 0.0
        %v2015 = vmax.f32 %v2011, 0.0
        %v2016 = vmax.f32 %v2012, 0.0
        %v2017 = vmax.f32 %v2013, 0.0
        %2018 = vset.pattern.permute.xlu0 25
        %2019 = vperm.xlu0 %2018, %v290
        %v2020 = vpop.permute.xlu0 %2019
        %2022 = vset.pattern.permute.xlu0 25
        %2023 = vperm.xlu0 %2022, %v291
        %v2024 = vpop.permute.xlu0 %2023
        %2026 = vset.pattern.permute.xlu0 25
        %2027 = vperm.xlu0 %2026, %v292
        %v2028 = vpop.permute.xlu0 %2027
        %2030 = vset.pattern.permute.xlu0 25
        %2031 = vperm.xlu0 %2030, %v293
        %v2032 = vpop.permute.xlu0 %2031
        %v2034 = vmul.f32 %v2014, %v2020
        %v2035 = vmul.f32 %v2015, %v2024
        %v2036 = vmul.f32 %v2016, %v2028
        %v2037 = vmul.f32 %v2017, %v2032
        %v2038 = vadd.f32 %v1970, %v2034
        %v2039 = vadd.f32 %v1971, %v2035
        %v2040 = vadd.f32 %v1972, %v2036
        %v2041 = vadd.f32 %v1973, %v2037
        %2042 = vset.pattern.permute.xlu0 26
        %2043 = vperm.xlu0 %2042, %v238
        %v2044 = vpop.permute.xlu0 %2043
        %2046 = vset.pattern.permute.xlu0 26
        %2047 = vperm.xlu0 %2046, %v239
        %v2048 = vpop.permute.xlu0 %2047
        %2050 = vset.pattern.permute.xlu0 26
        %2051 = vperm.xlu0 %2050, %v240
        %v2052 = vpop.permute.xlu0 %2051
        %2054 = vset.pattern.permute.xlu0 26
        %2055 = vperm.xlu0 %2054, %v241
        %v2056 = vpop.permute.xlu0 %2055
        %v2058 = vmul.f32 %v229, %v2044
        %v2059 = vmul.f32 %v230, %v2048
        %v2060 = vmul.f32 %v231, %v2052
        %v2061 = vmul.f32 %v232, %v2056
        %2062 = vset.pattern.permute.xlu0 90
        %2063 = vperm.xlu0 %2062, %v238
        %v2064 = vpop.permute.xlu0 %2063
        %2066 = vset.pattern.permute.xlu0 90
        %2067 = vperm.xlu0 %2066, %v239
        %v2068 = vpop.permute.xlu0 %2067
        %2070 = vset.pattern.permute.xlu0 90
        %2071 = vperm.xlu0 %2070, %v240
        %v2072 = vpop.permute.xlu0 %2071
        %2074 = vset.pattern.permute.xlu0 90
        %2075 = vperm.xlu0 %2074, %v241
        %v2076 = vpop.permute.xlu0 %2075
        %v2078 = vadd.f32 %v2058, %v2064
        %v2079 = vadd.f32 %v2059, %v2068
        %v2080 = vadd.f32 %v2060, %v2072
        %v2081 = vadd.f32 %v2061, %v2076
        %v2082 = vmax.f32 %v2078, 0.0
        %v2083 = vmax.f32 %v2079, 0.0
        %v2084 = vmax.f32 %v2080, 0.0
        %v2085 = vmax.f32 %v2081, 0.0
        %2086 = vset.pattern.permute.xlu0 26
        %2087 = vperm.xlu0 %2086, %v290
        %v2088 = vpop.permute.xlu0 %2087
        %2090 = vset.pattern.permute.xlu0 26
        %2091 = vperm.xlu0 %2090, %v291
        %v2092 = vpop.permute.xlu0 %2091
        %2094 = vset.pattern.permute.xlu0 26
        %2095 = vperm.xlu0 %2094, %v292
        %v2096 = vpop.permute.xlu0 %2095
        %2098 = vset.pattern.permute.xlu0 26
        %2099 = vperm.xlu0 %2098, %v293
        %v2100 = vpop.permute.xlu0 %2099
        %v2102 = vmul.f32 %v2082, %v2088
        %v2103 = vmul.f32 %v2083, %v2092
        %v2104 = vmul.f32 %v2084, %v2096
        %v2105 = vmul.f32 %v2085, %v2100
        %v2106 = vadd.f32 %v2038, %v2102
        %v2107 = vadd.f32 %v2039, %v2103
        %v2108 = vadd.f32 %v2040, %v2104
        %v2109 = vadd.f32 %v2041, %v2105
        %2110 = vset.pattern.permute.xlu0 27
        %2111 = vperm.xlu0 %2110, %v238
        %v2112 = vpop.permute.xlu0 %2111
        %2114 = vset.pattern.permute.xlu0 27
        %2115 = vperm.xlu0 %2114, %v239
        %v2116 = vpop.permute.xlu0 %2115
        %2118 = vset.pattern.permute.xlu0 27
        %2119 = vperm.xlu0 %2118, %v240
        %v2120 = vpop.permute.xlu0 %2119
        %2122 = vset.pattern.permute.xlu0 27
        %2123 = vperm.xlu0 %2122, %v241
        %v2124 = vpop.permute.xlu0 %2123
        %v2126 = vmul.f32 %v229, %v2112
        %v2127 = vmul.f32 %v230, %v2116
        %v2128 = vmul.f32 %v231, %v2120
        %v2129 = vmul.f32 %v232, %v2124
        %2130 = vset.pattern.permute.xlu0 91
        %2131 = vperm.xlu0 %2130, %v238
        %v2132 = vpop.permute.xlu0 %2131
        %2134 = vset.pattern.permute.xlu0 91
        %2135 = vperm.xlu0 %2134, %v239
        %v2136 = vpop.permute.xlu0 %2135
        %2138 = vset.pattern.permute.xlu0 91
        %2139 = vperm.xlu0 %2138, %v240
        %v2140 = vpop.permute.xlu0 %2139
        %2142 = vset.pattern.permute.xlu0 91
        %2143 = vperm.xlu0 %2142, %v241
        %v2144 = vpop.permute.xlu0 %2143
        %v2146 = vadd.f32 %v2126, %v2132
        %v2147 = vadd.f32 %v2127, %v2136
        %v2148 = vadd.f32 %v2128, %v2140
        %v2149 = vadd.f32 %v2129, %v2144
        %v2150 = vmax.f32 %v2146, 0.0
        %v2151 = vmax.f32 %v2147, 0.0
        %v2152 = vmax.f32 %v2148, 0.0
        %v2153 = vmax.f32 %v2149, 0.0
        %2154 = vset.pattern.permute.xlu0 27
        %2155 = vperm.xlu0 %2154, %v290
        %v2156 = vpop.permute.xlu0 %2155
        %2158 = vset.pattern.permute.xlu0 27
        %2159 = vperm.xlu0 %2158, %v291
        %v2160 = vpop.permute.xlu0 %2159
        %2162 = vset.pattern.permute.xlu0 27
        %2163 = vperm.xlu0 %2162, %v292
        %v2164 = vpop.permute.xlu0 %2163
        %2166 = vset.pattern.permute.xlu0 27
        %2167 = vperm.xlu0 %2166, %v293
        %v2168 = vpop.permute.xlu0 %2167
        %v2170 = vmul.f32 %v2150, %v2156
        %v2171 = vmul.f32 %v2151, %v2160
        %v2172 = vmul.f32 %v2152, %v2164
        %v2173 = vmul.f32 %v2153, %v2168
        %v2174 = vadd.f32 %v2106, %v2170
        %v2175 = vadd.f32 %v2107, %v2171
        %v2176 = vadd.f32 %v2108, %v2172
        %v2177 = vadd.f32 %v2109, %v2173
        %2178 = vset.pattern.permute.xlu0 28
        %2179 = vperm.xlu0 %2178, %v238
        %v2180 = vpop.permute.xlu0 %2179
        %2182 = vset.pattern.permute.xlu0 28
        %2183 = vperm.xlu0 %2182, %v239
        %v2184 = vpop.permute.xlu0 %2183
        %2186 = vset.pattern.permute.xlu0 28
        %2187 = vperm.xlu0 %2186, %v240
        %v2188 = vpop.permute.xlu0 %2187
        %2190 = vset.pattern.permute.xlu0 28
        %2191 = vperm.xlu0 %2190, %v241
        %v2192 = vpop.permute.xlu0 %2191
        %v2194 = vmul.f32 %v229, %v2180
        %v2195 = vmul.f32 %v230, %v2184
        %v2196 = vmul.f32 %v231, %v2188
        %v2197 = vmul.f32 %v232, %v2192
        %2198 = vset.pattern.permute.xlu0 92
        %2199 = vperm.xlu0 %2198, %v238
        %v2200 = vpop.permute.xlu0 %2199
        %2202 = vset.pattern.permute.xlu0 92
        %2203 = vperm.xlu0 %2202, %v239
        %v2204 = vpop.permute.xlu0 %2203
        %2206 = vset.pattern.permute.xlu0 92
        %2207 = vperm.xlu0 %2206, %v240
        %v2208 = vpop.permute.xlu0 %2207
        %2210 = vset.pattern.permute.xlu0 92
        %2211 = vperm.xlu0 %2210, %v241
        %v2212 = vpop.permute.xlu0 %2211
        %v2214 = vadd.f32 %v2194, %v2200
        %v2215 = vadd.f32 %v2195, %v2204
        %v2216 = vadd.f32 %v2196, %v2208
        %v2217 = vadd.f32 %v2197, %v2212
        %v2218 = vmax.f32 %v2214, 0.0
        %v2219 = vmax.f32 %v2215, 0.0
        %v2220 = vmax.f32 %v2216, 0.0
        %v2221 = vmax.f32 %v2217, 0.0
        %2222 = vset.pattern.permute.xlu0 28
        %2223 = vperm.xlu0 %2222, %v290
        %v2224 = vpop.permute.xlu0 %2223
        %2226 = vset.pattern.permute.xlu0 28
        %2227 = vperm.xlu0 %2226, %v291
        %v2228 = vpop.permute.xlu0 %2227
        %2230 = vset.pattern.permute.xlu0 28
        %2231 = vperm.xlu0 %2230, %v292
        %v2232 = vpop.permute.xlu0 %2231
        %2234 = vset.pattern.permute.xlu0 28
        %2235 = vperm.xlu0 %2234, %v293
        %v2236 = vpop.permute.xlu0 %2235
        %v2238 = vmul.f32 %v2218, %v2224
        %v2239 = vmul.f32 %v2219, %v2228
        %v2240 = vmul.f32 %v2220, %v2232
        %v2241 = vmul.f32 %v2221, %v2236
        %v2242 = vadd.f32 %v2174, %v2238
        %v2243 = vadd.f32 %v2175, %v2239
        %v2244 = vadd.f32 %v2176, %v2240
        %v2245 = vadd.f32 %v2177, %v2241
        %2246 = vset.pattern.permute.xlu0 29
        %2247 = vperm.xlu0 %2246, %v238
        %v2248 = vpop.permute.xlu0 %2247
        %2250 = vset.pattern.permute.xlu0 29
        %2251 = vperm.xlu0 %2250, %v239
        %v2252 = vpop.permute.xlu0 %2251
        %2254 = vset.pattern.permute.xlu0 29
        %2255 = vperm.xlu0 %2254, %v240
        %v2256 = vpop.permute.xlu0 %2255
        %2258 = vset.pattern.permute.xlu0 29
        %2259 = vperm.xlu0 %2258, %v241
        %v2260 = vpop.permute.xlu0 %2259
        %v2262 = vmul.f32 %v229, %v2248
        %v2263 = vmul.f32 %v230, %v2252
        %v2264 = vmul.f32 %v231, %v2256
        %v2265 = vmul.f32 %v232, %v2260
        %2266 = vset.pattern.permute.xlu0 93
        %2267 = vperm.xlu0 %2266, %v238
        %v2268 = vpop.permute.xlu0 %2267
        %2270 = vset.pattern.permute.xlu0 93
        %2271 = vperm.xlu0 %2270, %v239
        %v2272 = vpop.permute.xlu0 %2271
        %2274 = vset.pattern.permute.xlu0 93
        %2275 = vperm.xlu0 %2274, %v240
        %v2276 = vpop.permute.xlu0 %2275
        %2278 = vset.pattern.permute.xlu0 93
        %2279 = vperm.xlu0 %2278, %v241
        %v2280 = vpop.permute.xlu0 %2279
        %v2282 = vadd.f32 %v2262, %v2268
        %v2283 = vadd.f32 %v2263, %v2272
        %v2284 = vadd.f32 %v2264, %v2276
        %v2285 = vadd.f32 %v2265, %v2280
        %v2286 = vmax.f32 %v2282, 0.0
        %v2287 = vmax.f32 %v2283, 0.0
        %v2288 = vmax.f32 %v2284, 0.0
        %v2289 = vmax.f32 %v2285, 0.0
        %2290 = vset.pattern.permute.xlu0 29
        %2291 = vperm.xlu0 %2290, %v290
        %v2292 = vpop.permute.xlu0 %2291
        %2294 = vset.pattern.permute.xlu0 29
        %2295 = vperm.xlu0 %2294, %v291
        %v2296 = vpop.permute.xlu0 %2295
        %2298 = vset.pattern.permute.xlu0 29
        %2299 = vperm.xlu0 %2298, %v292
        %v2300 = vpop.permute.xlu0 %2299
        %2302 = vset.pattern.permute.xlu0 29
        %2303 = vperm.xlu0 %2302, %v293
        %v2304 = vpop.permute.xlu0 %2303
        %v2306 = vmul.f32 %v2286, %v2292
        %v2307 = vmul.f32 %v2287, %v2296
        %v2308 = vmul.f32 %v2288, %v2300
        %v2309 = vmul.f32 %v2289, %v2304
        %v2310 = vadd.f32 %v2242, %v2306
        %v2311 = vadd.f32 %v2243, %v2307
        %v2312 = vadd.f32 %v2244, %v2308
        %v2313 = vadd.f32 %v2245, %v2309
        %2314 = vset.pattern.permute.xlu0 30
        %2315 = vperm.xlu0 %2314, %v238
        %v2316 = vpop.permute.xlu0 %2315
        %2318 = vset.pattern.permute.xlu0 30
        %2319 = vperm.xlu0 %2318, %v239
        %v2320 = vpop.permute.xlu0 %2319
        %2322 = vset.pattern.permute.xlu0 30
        %2323 = vperm.xlu0 %2322, %v240
        %v2324 = vpop.permute.xlu0 %2323
        %2326 = vset.pattern.permute.xlu0 30
        %2327 = vperm.xlu0 %2326, %v241
        %v2328 = vpop.permute.xlu0 %2327
        %v2330 = vmul.f32 %v229, %v2316
        %v2331 = vmul.f32 %v230, %v2320
        %v2332 = vmul.f32 %v231, %v2324
        %v2333 = vmul.f32 %v232, %v2328
        %2334 = vset.pattern.permute.xlu0 94
        %2335 = vperm.xlu0 %2334, %v238
        %v2336 = vpop.permute.xlu0 %2335
        %2338 = vset.pattern.permute.xlu0 94
        %2339 = vperm.xlu0 %2338, %v239
        %v2340 = vpop.permute.xlu0 %2339
        %2342 = vset.pattern.permute.xlu0 94
        %2343 = vperm.xlu0 %2342, %v240
        %v2344 = vpop.permute.xlu0 %2343
        %2346 = vset.pattern.permute.xlu0 94
        %2347 = vperm.xlu0 %2346, %v241
        %v2348 = vpop.permute.xlu0 %2347
        %v2350 = vadd.f32 %v2330, %v2336
        %v2351 = vadd.f32 %v2331, %v2340
        %v2352 = vadd.f32 %v2332, %v2344
        %v2353 = vadd.f32 %v2333, %v2348
        %v2354 = vmax.f32 %v2350, 0.0
        %v2355 = vmax.f32 %v2351, 0.0
        %v2356 = vmax.f32 %v2352, 0.0
        %v2357 = vmax.f32 %v2353, 0.0
        %2358 = vset.pattern.permute.xlu0 30
        %2359 = vperm.xlu0 %2358, %v290
        %v2360 = vpop.permute.xlu0 %2359
        %2362 = vset.pattern.permute.xlu0 30
        %2363 = vperm.xlu0 %2362, %v291
        %v2364 = vpop.permute.xlu0 %2363
        %2366 = vset.pattern.permute.xlu0 30
        %2367 = vperm.xlu0 %2366, %v292
        %v2368 = vpop.permute.xlu0 %2367
        %2370 = vset.pattern.permute.xlu0 30
        %2371 = vperm.xlu0 %2370, %v293
        %v2372 = vpop.permute.xlu0 %2371
        %v2374 = vmul.f32 %v2354, %v2360
        %v2375 = vmul.f32 %v2355, %v2364
        %v2376 = vmul.f32 %v2356, %v2368
        %v2377 = vmul.f32 %v2357, %v2372
        %v2378 = vadd.f32 %v2310, %v2374
        %v2379 = vadd.f32 %v2311, %v2375
        %v2380 = vadd.f32 %v2312, %v2376
        %v2381 = vadd.f32 %v2313, %v2377
        %2382 = vset.pattern.permute.xlu0 31
        %2383 = vperm.xlu0 %2382, %v238
        %v2384 = vpop.permute.xlu0 %2383
        %2386 = vset.pattern.permute.xlu0 31
        %2387 = vperm.xlu0 %2386, %v239
        %v2388 = vpop.permute.xlu0 %2387
        %2390 = vset.pattern.permute.xlu0 31
        %2391 = vperm.xlu0 %2390, %v240
        %v2392 = vpop.permute.xlu0 %2391
        %2394 = vset.pattern.permute.xlu0 31
        %2395 = vperm.xlu0 %2394, %v241
        %v2396 = vpop.permute.xlu0 %2395
        %v2398 = vmul.f32 %v229, %v2384
        %v2399 = vmul.f32 %v230, %v2388
        %v2400 = vmul.f32 %v231, %v2392
        %v2401 = vmul.f32 %v232, %v2396
        %2402 = vset.pattern.permute.xlu0 95
        %2403 = vperm.xlu0 %2402, %v238
        %v2404 = vpop.permute.xlu0 %2403
        %2406 = vset.pattern.permute.xlu0 95
        %2407 = vperm.xlu0 %2406, %v239
        %v2408 = vpop.permute.xlu0 %2407
        %2410 = vset.pattern.permute.xlu0 95
        %2411 = vperm.xlu0 %2410, %v240
        %v2412 = vpop.permute.xlu0 %2411
        %2414 = vset.pattern.permute.xlu0 95
        %2415 = vperm.xlu0 %2414, %v241
        %v2416 = vpop.permute.xlu0 %2415
        %v2418 = vadd.f32 %v2398, %v2404
        %v2419 = vadd.f32 %v2399, %v2408
        %v2420 = vadd.f32 %v2400, %v2412
        %v2421 = vadd.f32 %v2401, %v2416
        %v2422 = vmax.f32 %v2418, 0.0
        %v2423 = vmax.f32 %v2419, 0.0
        %v2424 = vmax.f32 %v2420, 0.0
        %v2425 = vmax.f32 %v2421, 0.0
        %2426 = vset.pattern.permute.xlu0 31
        %2427 = vperm.xlu0 %2426, %v290
        %v2428 = vpop.permute.xlu0 %2427
        %2430 = vset.pattern.permute.xlu0 31
        %2431 = vperm.xlu0 %2430, %v291
        %v2432 = vpop.permute.xlu0 %2431
        %2434 = vset.pattern.permute.xlu0 31
        %2435 = vperm.xlu0 %2434, %v292
        %v2436 = vpop.permute.xlu0 %2435
        %2438 = vset.pattern.permute.xlu0 31
        %2439 = vperm.xlu0 %2438, %v293
        %v2440 = vpop.permute.xlu0 %2439
        %v2442 = vmul.f32 %v2422, %v2428
        %v2443 = vmul.f32 %v2423, %v2432
        %v2444 = vmul.f32 %v2424, %v2436
        %v2445 = vmul.f32 %v2425, %v2440
        %v2446 = vadd.f32 %v2378, %v2442
        %v2447 = vadd.f32 %v2379, %v2443
        %v2448 = vadd.f32 %v2380, %v2444
        %v2449 = vadd.f32 %v2381, %v2445
        %2450 = vset.pattern.permute.xlu0 65
        %2451 = vperm.xlu0 %2450, %v290
        %v2452 = vpop.permute.xlu0 %2451
        %2454 = vset.pattern.permute.xlu0 65
        %2455 = vperm.xlu0 %2454, %v291
        %v2456 = vpop.permute.xlu0 %2455
        %2458 = vset.pattern.permute.xlu0 65
        %2459 = vperm.xlu0 %2458, %v292
        %v2460 = vpop.permute.xlu0 %2459
        %2462 = vset.pattern.permute.xlu0 65
        %2463 = vperm.xlu0 %2462, %v293
        %v2464 = vpop.permute.xlu0 %2463
        %v2466 = vadd.f32 %v2446, %v2452
        %v2467 = vadd.f32 %v2447, %v2456
        %v2468 = vadd.f32 %v2448, %v2460
        %v2469 = vadd.f32 %v2449, %v2464
        %v2470 = vmul.f32 %v1358, 1.442695
        %v2471 = vpow.pop %v2470
        %v2472 = vmul.f32 %v1359, 1.442695
        %v2473 = vpow.pop %v2472
        %v2474 = vmul.f32 %v1360, 1.442695
        %v2475 = vpow.pop %v2474
        %v2476 = vmul.f32 %v1361, 1.442695
        %v2477 = vpow.pop %v2476
        %v2478 = vmul.f32 %v234, %v2471
        %v2479 = vmul.f32 %v235, %v2473
        %v2480 = vmul.f32 %v236, %v2475
        %v2481 = vmul.f32 %v237, %v2477
        %v2482 = vadd.f32 %v2478, %v2466
        %v2483 = vadd.f32 %v2479, %v2467
        %v2484 = vadd.f32 %v2480, %v2468
        %v2485 = vadd.f32 %v2481, %v2469
        %2486 = vset.pattern.permute.xlu0 32
        %2487 = vperm.xlu0 %2486, %v238
        %v2488 = vpop.permute.xlu0 %2487
        %2490 = vset.pattern.permute.xlu0 32
        %2491 = vperm.xlu0 %2490, %v239
        %v2492 = vpop.permute.xlu0 %2491
        %2494 = vset.pattern.permute.xlu0 32
        %2495 = vperm.xlu0 %2494, %v240
        %v2496 = vpop.permute.xlu0 %2495
        %2498 = vset.pattern.permute.xlu0 32
        %2499 = vperm.xlu0 %2498, %v241
        %v2500 = vpop.permute.xlu0 %2499
        %v2502 = vmul.f32 %v2482, %v2488
        %v2503 = vmul.f32 %v2483, %v2492
        %v2504 = vmul.f32 %v2484, %v2496
        %v2505 = vmul.f32 %v2485, %v2500
        %2506 = vset.pattern.permute.xlu0 96
        %2507 = vperm.xlu0 %2506, %v238
        %v2508 = vpop.permute.xlu0 %2507
        %2510 = vset.pattern.permute.xlu0 96
        %2511 = vperm.xlu0 %2510, %v239
        %v2512 = vpop.permute.xlu0 %2511
        %2514 = vset.pattern.permute.xlu0 96
        %2515 = vperm.xlu0 %2514, %v240
        %v2516 = vpop.permute.xlu0 %2515
        %2518 = vset.pattern.permute.xlu0 96
        %2519 = vperm.xlu0 %2518, %v241
        %v2520 = vpop.permute.xlu0 %2519
        %v2522 = vadd.f32 %v2502, %v2508
        %v2523 = vadd.f32 %v2503, %v2512
        %v2524 = vadd.f32 %v2504, %v2516
        %v2525 = vadd.f32 %v2505, %v2520
        %v2526 = vmax.f32 %v2522, 0.0
        %v2527 = vmax.f32 %v2523, 0.0
        %v2528 = vmax.f32 %v2524, 0.0
        %v2529 = vmax.f32 %v2525, 0.0
        %2530 = vset.pattern.permute.xlu0 32
        %2531 = vperm.xlu0 %2530, %v290
        %v2532 = vpop.permute.xlu0 %2531
        %2534 = vset.pattern.permute.xlu0 32
        %2535 = vperm.xlu0 %2534, %v291
        %v2536 = vpop.permute.xlu0 %2535
        %2538 = vset.pattern.permute.xlu0 32
        %2539 = vperm.xlu0 %2538, %v292
        %v2540 = vpop.permute.xlu0 %2539
        %2542 = vset.pattern.permute.xlu0 32
        %2543 = vperm.xlu0 %2542, %v293
        %v2544 = vpop.permute.xlu0 %2543
        %v2546 = vmul.f32 %v2526, %v2532
        %v2547 = vmul.f32 %v2527, %v2536
        %v2548 = vmul.f32 %v2528, %v2540
        %v2549 = vmul.f32 %v2529, %v2544
        %v2550 = vadd.f32 %v2546, 0.0
        %v2551 = vadd.f32 %v2547, 0.0
        %v2552 = vadd.f32 %v2548, 0.0
        %v2553 = vadd.f32 %v2549, 0.0
        %2554 = vset.pattern.permute.xlu0 33
        %2555 = vperm.xlu0 %2554, %v238
        %v2556 = vpop.permute.xlu0 %2555
        %2558 = vset.pattern.permute.xlu0 33
        %2559 = vperm.xlu0 %2558, %v239
        %v2560 = vpop.permute.xlu0 %2559
        %2562 = vset.pattern.permute.xlu0 33
        %2563 = vperm.xlu0 %2562, %v240
        %v2564 = vpop.permute.xlu0 %2563
        %2566 = vset.pattern.permute.xlu0 33
        %2567 = vperm.xlu0 %2566, %v241
        %v2568 = vpop.permute.xlu0 %2567
        %v2570 = vmul.f32 %v2482, %v2556
        %v2571 = vmul.f32 %v2483, %v2560
        %v2572 = vmul.f32 %v2484, %v2564
        %v2573 = vmul.f32 %v2485, %v2568
        %2574 = vset.pattern.permute.xlu0 97
        %2575 = vperm.xlu0 %2574, %v238
        %v2576 = vpop.permute.xlu0 %2575
        %2578 = vset.pattern.permute.xlu0 97
        %2579 = vperm.xlu0 %2578, %v239
        %v2580 = vpop.permute.xlu0 %2579
        %2582 = vset.pattern.permute.xlu0 97
        %2583 = vperm.xlu0 %2582, %v240
        %v2584 = vpop.permute.xlu0 %2583
        %2586 = vset.pattern.permute.xlu0 97
        %2587 = vperm.xlu0 %2586, %v241
        %v2588 = vpop.permute.xlu0 %2587
        %v2590 = vadd.f32 %v2570, %v2576
        %v2591 = vadd.f32 %v2571, %v2580
        %v2592 = vadd.f32 %v2572, %v2584
        %v2593 = vadd.f32 %v2573, %v2588
        %v2594 = vmax.f32 %v2590, 0.0
        %v2595 = vmax.f32 %v2591, 0.0
        %v2596 = vmax.f32 %v2592, 0.0
        %v2597 = vmax.f32 %v2593, 0.0
        %2598 = vset.pattern.permute.xlu0 33
        %2599 = vperm.xlu0 %2598, %v290
        %v2600 = vpop.permute.xlu0 %2599
        %2602 = vset.pattern.permute.xlu0 33
        %2603 = vperm.xlu0 %2602, %v291
        %v2604 = vpop.permute.xlu0 %2603
        %2606 = vset.pattern.permute.xlu0 33
        %2607 = vperm.xlu0 %2606, %v292
        %v2608 = vpop.permute.xlu0 %2607
        %2610 = vset.pattern.permute.xlu0 33
        %2611 = vperm.xlu0 %2610, %v293
        %v2612 = vpop.permute.xlu0 %2611
        %v2614 = vmul.f32 %v2594, %v2600
        %v2615 = vmul.f32 %v2595, %v2604
        %v2616 = vmul.f32 %v2596, %v2608
        %v2617 = vmul.f32 %v2597, %v2612
        %v2618 = vadd.f32 %v2550, %v2614
        %v2619 = vadd.f32 %v2551, %v2615
        %v2620 = vadd.f32 %v2552, %v2616
        %v2621 = vadd.f32 %v2553, %v2617
        %2622 = vset.pattern.permute.xlu0 34
        %2623 = vperm.xlu0 %2622, %v238
        %v2624 = vpop.permute.xlu0 %2623
        %2626 = vset.pattern.permute.xlu0 34
        %2627 = vperm.xlu0 %2626, %v239
        %v2628 = vpop.permute.xlu0 %2627
        %2630 = vset.pattern.permute.xlu0 34
        %2631 = vperm.xlu0 %2630, %v240
        %v2632 = vpop.permute.xlu0 %2631
        %2634 = vset.pattern.permute.xlu0 34
        %2635 = vperm.xlu0 %2634, %v241
        %v2636 = vpop.permute.xlu0 %2635
        %v2638 = vmul.f32 %v2482, %v2624
        %v2639 = vmul.f32 %v2483, %v2628
        %v2640 = vmul.f32 %v2484, %v2632
        %v2641 = vmul.f32 %v2485, %v2636
        %2642 = vset.pattern.permute.xlu0 98
        %2643 = vperm.xlu0 %2642, %v238
        %v2644 = vpop.permute.xlu0 %2643
        %2646 = vset.pattern.permute.xlu0 98
        %2647 = vperm.xlu0 %2646, %v239
        %v2648 = vpop.permute.xlu0 %2647
        %2650 = vset.pattern.permute.xlu0 98
        %2651 = vperm.xlu0 %2650, %v240
        %v2652 = vpop.permute.xlu0 %2651
        %2654 = vset.pattern.permute.xlu0 98
        %2655 = vperm.xlu0 %2654, %v241
        %v2656 = vpop.permute.xlu0 %2655
        %v2658 = vadd.f32 %v2638, %v2644
        %v2659 = vadd.f32 %v2639, %v2648
        %v2660 = vadd.f32 %v2640, %v2652
        %v2661 = vadd.f32 %v2641, %v2656
        %v2662 = vmax.f32 %v2658, 0.0
        %v2663 = vmax.f32 %v2659, 0.0
        %v2664 = vmax.f32 %v2660, 0.0
        %v2665 = vmax.f32 %v2661, 0.0
        %2666 = vset.pattern.permute.xlu0 34
        %2667 = vperm.xlu0 %2666, %v290
        %v2668 = vpop.permute.xlu0 %2667
        %2670 = vset.pattern.permute.xlu0 34
        %2671 = vperm.xlu0 %2670, %v291
        %v2672 = vpop.permute.xlu0 %2671
        %2674 = vset.pattern.permute.xlu0 34
        %2675 = vperm.xlu0 %2674, %v292
        %v2676 = vpop.permute.xlu0 %2675
        %2678 = vset.pattern.permute.xlu0 34
        %2679 = vperm.xlu0 %2678, %v293
        %v2680 = vpop.permute.xlu0 %2679
        %v2682 = vmul.f32 %v2662, %v2668
        %v2683 = vmul.f32 %v2663, %v2672
        %v2684 = vmul.f32 %v2664, %v2676
        %v2685 = vmul.f32 %v2665, %v2680
        %v2686 = vadd.f32 %v2618, %v2682
        %v2687 = vadd.f32 %v2619, %v2683
        %v2688 = vadd.f32 %v2620, %v2684
        %v2689 = vadd.f32 %v2621, %v2685
        %2690 = vset.pattern.permute.xlu0 35
        %2691 = vperm.xlu0 %2690, %v238
        %v2692 = vpop.permute.xlu0 %2691
        %2694 = vset.pattern.permute.xlu0 35
        %2695 = vperm.xlu0 %2694, %v239
        %v2696 = vpop.permute.xlu0 %2695
        %2698 = vset.pattern.permute.xlu0 35
        %2699 = vperm.xlu0 %2698, %v240
        %v2700 = vpop.permute.xlu0 %2699
        %2702 = vset.pattern.permute.xlu0 35
        %2703 = vperm.xlu0 %2702, %v241
        %v2704 = vpop.permute.xlu0 %2703
        %v2706 = vmul.f32 %v2482, %v2692
        %v2707 = vmul.f32 %v2483, %v2696
        %v2708 = vmul.f32 %v2484, %v2700
        %v2709 = vmul.f32 %v2485, %v2704
        %2710 = vset.pattern.permute.xlu0 99
        %2711 = vperm.xlu0 %2710, %v238
        %v2712 = vpop.permute.xlu0 %2711
        %2714 = vset.pattern.permute.xlu0 99
        %2715 = vperm.xlu0 %2714, %v239
        %v2716 = vpop.permute.xlu0 %2715
        %2718 = vset.pattern.permute.xlu0 99
        %2719 = vperm.xlu0 %2718, %v240
        %v2720 = vpop.permute.xlu0 %2719
        %2722 = vset.pattern.permute.xlu0 99
        %2723 = vperm.xlu0 %2722, %v241
        %v2724 = vpop.permute.xlu0 %2723
        %v2726 = vadd.f32 %v2706, %v2712
        %v2727 = vadd.f32 %v2707, %v2716
        %v2728 = vadd.f32 %v2708, %v2720
        %v2729 = vadd.f32 %v2709, %v2724
        %v2730 = vmax.f32 %v2726, 0.0
        %v2731 = vmax.f32 %v2727, 0.0
        %v2732 = vmax.f32 %v2728, 0.0
        %v2733 = vmax.f32 %v2729, 0.0
        %2734 = vset.pattern.permute.xlu0 35
        %2735 = vperm.xlu0 %2734, %v290
        %v2736 = vpop.permute.xlu0 %2735
        %2738 = vset.pattern.permute.xlu0 35
        %2739 = vperm.xlu0 %2738, %v291
        %v2740 = vpop.permute.xlu0 %2739
        %2742 = vset.pattern.permute.xlu0 35
        %2743 = vperm.xlu0 %2742, %v292
        %v2744 = vpop.permute.xlu0 %2743
        %2746 = vset.pattern.permute.xlu0 35
        %2747 = vperm.xlu0 %2746, %v293
        %v2748 = vpop.permute.xlu0 %2747
        %v2750 = vmul.f32 %v2730, %v2736
        %v2751 = vmul.f32 %v2731, %v2740
        %v2752 = vmul.f32 %v2732, %v2744
        %v2753 = vmul.f32 %v2733, %v2748
        %v2754 = vadd.f32 %v2686, %v2750
        %v2755 = vadd.f32 %v2687, %v2751
        %v2756 = vadd.f32 %v2688, %v2752
        %v2757 = vadd.f32 %v2689, %v2753
        %2758 = vset.pattern.permute.xlu0 36
        %2759 = vperm.xlu0 %2758, %v238
        %v2760 = vpop.permute.xlu0 %2759
        %2762 = vset.pattern.permute.xlu0 36
        %2763 = vperm.xlu0 %2762, %v239
        %v2764 = vpop.permute.xlu0 %2763
        %2766 = vset.pattern.permute.xlu0 36
        %2767 = vperm.xlu0 %2766, %v240
        %v2768 = vpop.permute.xlu0 %2767
        %2770 = vset.pattern.permute.xlu0 36
        %2771 = vperm.xlu0 %2770, %v241
        %v2772 = vpop.permute.xlu0 %2771
        %v2774 = vmul.f32 %v2482, %v2760
        %v2775 = vmul.f32 %v2483, %v2764
        %v2776 = vmul.f32 %v2484, %v2768
        %v2777 = vmul.f32 %v2485, %v2772
        %2778 = vset.pattern.permute.xlu0 100
        %2779 = vperm.xlu0 %2778, %v238
        %v2780 = vpop.permute.xlu0 %2779
        %2782 = vset.pattern.permute.xlu0 100
        %2783 = vperm.xlu0 %2782, %v239
        %v2784 = vpop.permute.xlu0 %2783
        %2786 = vset.pattern.permute.xlu0 100
        %2787 = vperm.xlu0 %2786, %v240
        %v2788 = vpop.permute.xlu0 %2787
        %2790 = vset.pattern.permute.xlu0 100
        %2791 = vperm.xlu0 %2790, %v241
        %v2792 = vpop.permute.xlu0 %2791
        %v2794 = vadd.f32 %v2774, %v2780
        %v2795 = vadd.f32 %v2775, %v2784
        %v2796 = vadd.f32 %v2776, %v2788
        %v2797 = vadd.f32 %v2777, %v2792
        %v2798 = vmax.f32 %v2794, 0.0
        %v2799 = vmax.f32 %v2795, 0.0
        %v2800 = vmax.f32 %v2796, 0.0
        %v2801 = vmax.f32 %v2797, 0.0
        %2802 = vset.pattern.permute.xlu0 36
        %2803 = vperm.xlu0 %2802, %v290
        %v2804 = vpop.permute.xlu0 %2803
        %2806 = vset.pattern.permute.xlu0 36
        %2807 = vperm.xlu0 %2806, %v291
        %v2808 = vpop.permute.xlu0 %2807
        %2810 = vset.pattern.permute.xlu0 36
        %2811 = vperm.xlu0 %2810, %v292
        %v2812 = vpop.permute.xlu0 %2811
        %2814 = vset.pattern.permute.xlu0 36
        %2815 = vperm.xlu0 %2814, %v293
        %v2816 = vpop.permute.xlu0 %2815
        %v2818 = vmul.f32 %v2798, %v2804
        %v2819 = vmul.f32 %v2799, %v2808
        %v2820 = vmul.f32 %v2800, %v2812
        %v2821 = vmul.f32 %v2801, %v2816
        %v2822 = vadd.f32 %v2754, %v2818
        %v2823 = vadd.f32 %v2755, %v2819
        %v2824 = vadd.f32 %v2756, %v2820
        %v2825 = vadd.f32 %v2757, %v2821
        %2826 = vset.pattern.permute.xlu0 37
        %2827 = vperm.xlu0 %2826, %v238
        %v2828 = vpop.permute.xlu0 %2827
        %2830 = vset.pattern.permute.xlu0 37
        %2831 = vperm.xlu0 %2830, %v239
        %v2832 = vpop.permute.xlu0 %2831
        %2834 = vset.pattern.permute.xlu0 37
        %2835 = vperm.xlu0 %2834, %v240
        %v2836 = vpop.permute.xlu0 %2835
        %2838 = vset.pattern.permute.xlu0 37
        %2839 = vperm.xlu0 %2838, %v241
        %v2840 = vpop.permute.xlu0 %2839
        %v2842 = vmul.f32 %v2482, %v2828
        %v2843 = vmul.f32 %v2483, %v2832
        %v2844 = vmul.f32 %v2484, %v2836
        %v2845 = vmul.f32 %v2485, %v2840
        %2846 = vset.pattern.permute.xlu0 101
        %2847 = vperm.xlu0 %2846, %v238
        %v2848 = vpop.permute.xlu0 %2847
        %2850 = vset.pattern.permute.xlu0 101
        %2851 = vperm.xlu0 %2850, %v239
        %v2852 = vpop.permute.xlu0 %2851
        %2854 = vset.pattern.permute.xlu0 101
        %2855 = vperm.xlu0 %2854, %v240
        %v2856 = vpop.permute.xlu0 %2855
        %2858 = vset.pattern.permute.xlu0 101
        %2859 = vperm.xlu0 %2858, %v241
        %v2860 = vpop.permute.xlu0 %2859
        %v2862 = vadd.f32 %v2842, %v2848
        %v2863 = vadd.f32 %v2843, %v2852
        %v2864 = vadd.f32 %v2844, %v2856
        %v2865 = vadd.f32 %v2845, %v2860
        %v2866 = vmax.f32 %v2862, 0.0
        %v2867 = vmax.f32 %v2863, 0.0
        %v2868 = vmax.f32 %v2864, 0.0
        %v2869 = vmax.f32 %v2865, 0.0
        %2870 = vset.pattern.permute.xlu0 37
        %2871 = vperm.xlu0 %2870, %v290
        %v2872 = vpop.permute.xlu0 %2871
        %2874 = vset.pattern.permute.xlu0 37
        %2875 = vperm.xlu0 %2874, %v291
        %v2876 = vpop.permute.xlu0 %2875
        %2878 = vset.pattern.permute.xlu0 37
        %2879 = vperm.xlu0 %2878, %v292
        %v2880 = vpop.permute.xlu0 %2879
        %2882 = vset.pattern.permute.xlu0 37
        %2883 = vperm.xlu0 %2882, %v293
        %v2884 = vpop.permute.xlu0 %2883
        %v2886 = vmul.f32 %v2866, %v2872
        %v2887 = vmul.f32 %v2867, %v2876
        %v2888 = vmul.f32 %v2868, %v2880
        %v2889 = vmul.f32 %v2869, %v2884
        %v2890 = vadd.f32 %v2822, %v2886
        %v2891 = vadd.f32 %v2823, %v2887
        %v2892 = vadd.f32 %v2824, %v2888
        %v2893 = vadd.f32 %v2825, %v2889
        %2894 = vset.pattern.permute.xlu0 38
        %2895 = vperm.xlu0 %2894, %v238
        %v2896 = vpop.permute.xlu0 %2895
        %2898 = vset.pattern.permute.xlu0 38
        %2899 = vperm.xlu0 %2898, %v239
        %v2900 = vpop.permute.xlu0 %2899
        %2902 = vset.pattern.permute.xlu0 38
        %2903 = vperm.xlu0 %2902, %v240
        %v2904 = vpop.permute.xlu0 %2903
        %2906 = vset.pattern.permute.xlu0 38
        %2907 = vperm.xlu0 %2906, %v241
        %v2908 = vpop.permute.xlu0 %2907
        %v2910 = vmul.f32 %v2482, %v2896
        %v2911 = vmul.f32 %v2483, %v2900
        %v2912 = vmul.f32 %v2484, %v2904
        %v2913 = vmul.f32 %v2485, %v2908
        %2914 = vset.pattern.permute.xlu0 102
        %2915 = vperm.xlu0 %2914, %v238
        %v2916 = vpop.permute.xlu0 %2915
        %2918 = vset.pattern.permute.xlu0 102
        %2919 = vperm.xlu0 %2918, %v239
        %v2920 = vpop.permute.xlu0 %2919
        %2922 = vset.pattern.permute.xlu0 102
        %2923 = vperm.xlu0 %2922, %v240
        %v2924 = vpop.permute.xlu0 %2923
        %2926 = vset.pattern.permute.xlu0 102
        %2927 = vperm.xlu0 %2926, %v241
        %v2928 = vpop.permute.xlu0 %2927
        %v2930 = vadd.f32 %v2910, %v2916
        %v2931 = vadd.f32 %v2911, %v2920
        %v2932 = vadd.f32 %v2912, %v2924
        %v2933 = vadd.f32 %v2913, %v2928
        %v2934 = vmax.f32 %v2930, 0.0
        %v2935 = vmax.f32 %v2931, 0.0
        %v2936 = vmax.f32 %v2932, 0.0
        %v2937 = vmax.f32 %v2933, 0.0
        %2938 = vset.pattern.permute.xlu0 38
        %2939 = vperm.xlu0 %2938, %v290
        %v2940 = vpop.permute.xlu0 %2939
        %2942 = vset.pattern.permute.xlu0 38
        %2943 = vperm.xlu0 %2942, %v291
        %v2944 = vpop.permute.xlu0 %2943
        %2946 = vset.pattern.permute.xlu0 38
        %2947 = vperm.xlu0 %2946, %v292
        %v2948 = vpop.permute.xlu0 %2947
        %2950 = vset.pattern.permute.xlu0 38
        %2951 = vperm.xlu0 %2950, %v293
        %v2952 = vpop.permute.xlu0 %2951
        %v2954 = vmul.f32 %v2934, %v2940
        %v2955 = vmul.f32 %v2935, %v2944
        %v2956 = vmul.f32 %v2936, %v2948
        %v2957 = vmul.f32 %v2937, %v2952
        %v2958 = vadd.f32 %v2890, %v2954
        %v2959 = vadd.f32 %v2891, %v2955
        %v2960 = vadd.f32 %v2892, %v2956
        %v2961 = vadd.f32 %v2893, %v2957
        %2962 = vset.pattern.permute.xlu0 39
        %2963 = vperm.xlu0 %2962, %v238
        %v2964 = vpop.permute.xlu0 %2963
        %2966 = vset.pattern.permute.xlu0 39
        %2967 = vperm.xlu0 %2966, %v239
        %v2968 = vpop.permute.xlu0 %2967
        %2970 = vset.pattern.permute.xlu0 39
        %2971 = vperm.xlu0 %2970, %v240
        %v2972 = vpop.permute.xlu0 %2971
        %2974 = vset.pattern.permute.xlu0 39
        %2975 = vperm.xlu0 %2974, %v241
        %v2976 = vpop.permute.xlu0 %2975
        %v2978 = vmul.f32 %v2482, %v2964
        %v2979 = vmul.f32 %v2483, %v2968
        %v2980 = vmul.f32 %v2484, %v2972
        %v2981 = vmul.f32 %v2485, %v2976
        %2982 = vset.pattern.permute.xlu0 103
        %2983 = vperm.xlu0 %2982, %v238
        %v2984 = vpop.permute.xlu0 %2983
        %2986 = vset.pattern.permute.xlu0 103
        %2987 = vperm.xlu0 %2986, %v239
        %v2988 = vpop.permute.xlu0 %2987
        %2990 = vset.pattern.permute.xlu0 103
        %2991 = vperm.xlu0 %2990, %v240
        %v2992 = vpop.permute.xlu0 %2991
        %2994 = vset.pattern.permute.xlu0 103
        %2995 = vperm.xlu0 %2994, %v241
        %v2996 = vpop.permute.xlu0 %2995
        %v2998 = vadd.f32 %v2978, %v2984
        %v2999 = vadd.f32 %v2979, %v2988
        %v3000 = vadd.f32 %v2980, %v2992
        %v3001 = vadd.f32 %v2981, %v2996
        %v3002 = vmax.f32 %v2998, 0.0
        %v3003 = vmax.f32 %v2999, 0.0
        %v3004 = vmax.f32 %v3000, 0.0
        %v3005 = vmax.f32 %v3001, 0.0
        %3006 = vset.pattern.permute.xlu0 39
        %3007 = vperm.xlu0 %3006, %v290
        %v3008 = vpop.permute.xlu0 %3007
        %3010 = vset.pattern.permute.xlu0 39
        %3011 = vperm.xlu0 %3010, %v291
        %v3012 = vpop.permute.xlu0 %3011
        %3014 = vset.pattern.permute.xlu0 39
        %3015 = vperm.xlu0 %3014, %v292
        %v3016 = vpop.permute.xlu0 %3015
        %3018 = vset.pattern.permute.xlu0 39
        %3019 = vperm.xlu0 %3018, %v293
        %v3020 = vpop.permute.xlu0 %3019
        %v3022 = vmul.f32 %v3002, %v3008
        %v3023 = vmul.f32 %v3003, %v3012
        %v3024 = vmul.f32 %v3004, %v3016
        %v3025 = vmul.f32 %v3005, %v3020
        %v3026 = vadd.f32 %v2958, %v3022
        %v3027 = vadd.f32 %v2959, %v3023
        %v3028 = vadd.f32 %v2960, %v3024
        %v3029 = vadd.f32 %v2961, %v3025
        %3030 = vset.pattern.permute.xlu0 40
        %3031 = vperm.xlu0 %3030, %v238
        %v3032 = vpop.permute.xlu0 %3031
        %3034 = vset.pattern.permute.xlu0 40
        %3035 = vperm.xlu0 %3034, %v239
        %v3036 = vpop.permute.xlu0 %3035
        %3038 = vset.pattern.permute.xlu0 40
        %3039 = vperm.xlu0 %3038, %v240
        %v3040 = vpop.permute.xlu0 %3039
        %3042 = vset.pattern.permute.xlu0 40
        %3043 = vperm.xlu0 %3042, %v241
        %v3044 = vpop.permute.xlu0 %3043
        %v3046 = vmul.f32 %v2482, %v3032
        %v3047 = vmul.f32 %v2483, %v3036
        %v3048 = vmul.f32 %v2484, %v3040
        %v3049 = vmul.f32 %v2485, %v3044
        %3050 = vset.pattern.permute.xlu0 104
        %3051 = vperm.xlu0 %3050, %v238
        %v3052 = vpop.permute.xlu0 %3051
        %3054 = vset.pattern.permute.xlu0 104
        %3055 = vperm.xlu0 %3054, %v239
        %v3056 = vpop.permute.xlu0 %3055
        %3058 = vset.pattern.permute.xlu0 104
        %3059 = vperm.xlu0 %3058, %v240
        %v3060 = vpop.permute.xlu0 %3059
        %3062 = vset.pattern.permute.xlu0 104
        %3063 = vperm.xlu0 %3062, %v241
        %v3064 = vpop.permute.xlu0 %3063
        %v3066 = vadd.f32 %v3046, %v3052
        %v3067 = vadd.f32 %v3047, %v3056
        %v3068 = vadd.f32 %v3048, %v3060
        %v3069 = vadd.f32 %v3049, %v3064
        %v3070 = vmax.f32 %v3066, 0.0
        %v3071 = vmax.f32 %v3067, 0.0
        %v3072 = vmax.f32 %v3068, 0.0
        %v3073 = vmax.f32 %v3069, 0.0
        %3074 = vset.pattern.permute.xlu0 40
        %3075 = vperm.xlu0 %3074, %v290
        %v3076 = vpop.permute.xlu0 %3075
        %3078 = vset.pattern.permute.xlu0 40
        %3079 = vperm.xlu0 %3078, %v291
        %v3080 = vpop.permute.xlu0 %3079
        %3082 = vset.pattern.permute.xlu0 40
        %3083 = vperm.xlu0 %3082, %v292
        %v3084 = vpop.permute.xlu0 %3083
        %3086 = vset.pattern.permute.xlu0 40
        %3087 = vperm.xlu0 %3086, %v293
        %v3088 = vpop.permute.xlu0 %3087
        %v3090 = vmul.f32 %v3070, %v3076
        %v3091 = vmul.f32 %v3071, %v3080
        %v3092 = vmul.f32 %v3072, %v3084
        %v3093 = vmul.f32 %v3073, %v3088
        %v3094 = vadd.f32 %v3026, %v3090
        %v3095 = vadd.f32 %v3027, %v3091
        %v3096 = vadd.f32 %v3028, %v3092
        %v3097 = vadd.f32 %v3029, %v3093
        %3098 = vset.pattern.permute.xlu0 41
        %3099 = vperm.xlu0 %3098, %v238
        %v3100 = vpop.permute.xlu0 %3099
        %3102 = vset.pattern.permute.xlu0 41
        %3103 = vperm.xlu0 %3102, %v239
        %v3104 = vpop.permute.xlu0 %3103
        %3106 = vset.pattern.permute.xlu0 41
        %3107 = vperm.xlu0 %3106, %v240
        %v3108 = vpop.permute.xlu0 %3107
        %3110 = vset.pattern.permute.xlu0 41
        %3111 = vperm.xlu0 %3110, %v241
        %v3112 = vpop.permute.xlu0 %3111
        %v3114 = vmul.f32 %v2482, %v3100
        %v3115 = vmul.f32 %v2483, %v3104
        %v3116 = vmul.f32 %v2484, %v3108
        %v3117 = vmul.f32 %v2485, %v3112
        %3118 = vset.pattern.permute.xlu0 105
        %3119 = vperm.xlu0 %3118, %v238
        %v3120 = vpop.permute.xlu0 %3119
        %3122 = vset.pattern.permute.xlu0 105
        %3123 = vperm.xlu0 %3122, %v239
        %v3124 = vpop.permute.xlu0 %3123
        %3126 = vset.pattern.permute.xlu0 105
        %3127 = vperm.xlu0 %3126, %v240
        %v3128 = vpop.permute.xlu0 %3127
        %3130 = vset.pattern.permute.xlu0 105
        %3131 = vperm.xlu0 %3130, %v241
        %v3132 = vpop.permute.xlu0 %3131
        %v3134 = vadd.f32 %v3114, %v3120
        %v3135 = vadd.f32 %v3115, %v3124
        %v3136 = vadd.f32 %v3116, %v3128
        %v3137 = vadd.f32 %v3117, %v3132
        %v3138 = vmax.f32 %v3134, 0.0
        %v3139 = vmax.f32 %v3135, 0.0
        %v3140 = vmax.f32 %v3136, 0.0
        %v3141 = vmax.f32 %v3137, 0.0
        %3142 = vset.pattern.permute.xlu0 41
        %3143 = vperm.xlu0 %3142, %v290
        %v3144 = vpop.permute.xlu0 %3143
        %3146 = vset.pattern.permute.xlu0 41
        %3147 = vperm.xlu0 %3146, %v291
        %v3148 = vpop.permute.xlu0 %3147
        %3150 = vset.pattern.permute.xlu0 41
        %3151 = vperm.xlu0 %3150, %v292
        %v3152 = vpop.permute.xlu0 %3151
        %3154 = vset.pattern.permute.xlu0 41
        %3155 = vperm.xlu0 %3154, %v293
        %v3156 = vpop.permute.xlu0 %3155
        %v3158 = vmul.f32 %v3138, %v3144
        %v3159 = vmul.f32 %v3139, %v3148
        %v3160 = vmul.f32 %v3140, %v3152
        %v3161 = vmul.f32 %v3141, %v3156
        %v3162 = vadd.f32 %v3094, %v3158
        %v3163 = vadd.f32 %v3095, %v3159
        %v3164 = vadd.f32 %v3096, %v3160
        %v3165 = vadd.f32 %v3097, %v3161
        %3166 = vset.pattern.permute.xlu0 42
        %3167 = vperm.xlu0 %3166, %v238
        %v3168 = vpop.permute.xlu0 %3167
        %3170 = vset.pattern.permute.xlu0 42
        %3171 = vperm.xlu0 %3170, %v239
        %v3172 = vpop.permute.xlu0 %3171
        %3174 = vset.pattern.permute.xlu0 42
        %3175 = vperm.xlu0 %3174, %v240
        %v3176 = vpop.permute.xlu0 %3175
        %3178 = vset.pattern.permute.xlu0 42
        %3179 = vperm.xlu0 %3178, %v241
        %v3180 = vpop.permute.xlu0 %3179
        %v3182 = vmul.f32 %v2482, %v3168
        %v3183 = vmul.f32 %v2483, %v3172
        %v3184 = vmul.f32 %v2484, %v3176
        %v3185 = vmul.f32 %v2485, %v3180
        %3186 = vset.pattern.permute.xlu0 106
        %3187 = vperm.xlu0 %3186, %v238
        %v3188 = vpop.permute.xlu0 %3187
        %3190 = vset.pattern.permute.xlu0 106
        %3191 = vperm.xlu0 %3190, %v239
        %v3192 = vpop.permute.xlu0 %3191
        %3194 = vset.pattern.permute.xlu0 106
        %3195 = vperm.xlu0 %3194, %v240
        %v3196 = vpop.permute.xlu0 %3195
        %3198 = vset.pattern.permute.xlu0 106
        %3199 = vperm.xlu0 %3198, %v241
        %v3200 = vpop.permute.xlu0 %3199
        %v3202 = vadd.f32 %v3182, %v3188
        %v3203 = vadd.f32 %v3183, %v3192
        %v3204 = vadd.f32 %v3184, %v3196
        %v3205 = vadd.f32 %v3185, %v3200
        %v3206 = vmax.f32 %v3202, 0.0
        %v3207 = vmax.f32 %v3203, 0.0
        %v3208 = vmax.f32 %v3204, 0.0
        %v3209 = vmax.f32 %v3205, 0.0
        %3210 = vset.pattern.permute.xlu0 42
        %3211 = vperm.xlu0 %3210, %v290
        %v3212 = vpop.permute.xlu0 %3211
        %3214 = vset.pattern.permute.xlu0 42
        %3215 = vperm.xlu0 %3214, %v291
        %v3216 = vpop.permute.xlu0 %3215
        %3218 = vset.pattern.permute.xlu0 42
        %3219 = vperm.xlu0 %3218, %v292
        %v3220 = vpop.permute.xlu0 %3219
        %3222 = vset.pattern.permute.xlu0 42
        %3223 = vperm.xlu0 %3222, %v293
        %v3224 = vpop.permute.xlu0 %3223
        %v3226 = vmul.f32 %v3206, %v3212
        %v3227 = vmul.f32 %v3207, %v3216
        %v3228 = vmul.f32 %v3208, %v3220
        %v3229 = vmul.f32 %v3209, %v3224
        %v3230 = vadd.f32 %v3162, %v3226
        %v3231 = vadd.f32 %v3163, %v3227
        %v3232 = vadd.f32 %v3164, %v3228
        %v3233 = vadd.f32 %v3165, %v3229
        %3234 = vset.pattern.permute.xlu0 43
        %3235 = vperm.xlu0 %3234, %v238
        %v3236 = vpop.permute.xlu0 %3235
        %3238 = vset.pattern.permute.xlu0 43
        %3239 = vperm.xlu0 %3238, %v239
        %v3240 = vpop.permute.xlu0 %3239
        %3242 = vset.pattern.permute.xlu0 43
        %3243 = vperm.xlu0 %3242, %v240
        %v3244 = vpop.permute.xlu0 %3243
        %3246 = vset.pattern.permute.xlu0 43
        %3247 = vperm.xlu0 %3246, %v241
        %v3248 = vpop.permute.xlu0 %3247
        %v3250 = vmul.f32 %v2482, %v3236
        %v3251 = vmul.f32 %v2483, %v3240
        %v3252 = vmul.f32 %v2484, %v3244
        %v3253 = vmul.f32 %v2485, %v3248
        %3254 = vset.pattern.permute.xlu0 107
        %3255 = vperm.xlu0 %3254, %v238
        %v3256 = vpop.permute.xlu0 %3255
        %3258 = vset.pattern.permute.xlu0 107
        %3259 = vperm.xlu0 %3258, %v239
        %v3260 = vpop.permute.xlu0 %3259
        %3262 = vset.pattern.permute.xlu0 107
        %3263 = vperm.xlu0 %3262, %v240
        %v3264 = vpop.permute.xlu0 %3263
        %3266 = vset.pattern.permute.xlu0 107
        %3267 = vperm.xlu0 %3266, %v241
        %v3268 = vpop.permute.xlu0 %3267
        %v3270 = vadd.f32 %v3250, %v3256
        %v3271 = vadd.f32 %v3251, %v3260
        %v3272 = vadd.f32 %v3252, %v3264
        %v3273 = vadd.f32 %v3253, %v3268
        %v3274 = vmax.f32 %v3270, 0.0
        %v3275 = vmax.f32 %v3271, 0.0
        %v3276 = vmax.f32 %v3272, 0.0
        %v3277 = vmax.f32 %v3273, 0.0
        %3278 = vset.pattern.permute.xlu0 43
        %3279 = vperm.xlu0 %3278, %v290
        %v3280 = vpop.permute.xlu0 %3279
        %3282 = vset.pattern.permute.xlu0 43
        %3283 = vperm.xlu0 %3282, %v291
        %v3284 = vpop.permute.xlu0 %3283
        %3286 = vset.pattern.permute.xlu0 43
        %3287 = vperm.xlu0 %3286, %v292
        %v3288 = vpop.permute.xlu0 %3287
        %3290 = vset.pattern.permute.xlu0 43
        %3291 = vperm.xlu0 %3290, %v293
        %v3292 = vpop.permute.xlu0 %3291
        %v3294 = vmul.f32 %v3274, %v3280
        %v3295 = vmul.f32 %v3275, %v3284
        %v3296 = vmul.f32 %v3276, %v3288
        %v3297 = vmul.f32 %v3277, %v3292
        %v3298 = vadd.f32 %v3230, %v3294
        %v3299 = vadd.f32 %v3231, %v3295
        %v3300 = vadd.f32 %v3232, %v3296
        %v3301 = vadd.f32 %v3233, %v3297
        %3302 = vset.pattern.permute.xlu0 44
        %3303 = vperm.xlu0 %3302, %v238
        %v3304 = vpop.permute.xlu0 %3303
        %3306 = vset.pattern.permute.xlu0 44
        %3307 = vperm.xlu0 %3306, %v239
        %v3308 = vpop.permute.xlu0 %3307
        %3310 = vset.pattern.permute.xlu0 44
        %3311 = vperm.xlu0 %3310, %v240
        %v3312 = vpop.permute.xlu0 %3311
        %3314 = vset.pattern.permute.xlu0 44
        %3315 = vperm.xlu0 %3314, %v241
        %v3316 = vpop.permute.xlu0 %3315
        %v3318 = vmul.f32 %v2482, %v3304
        %v3319 = vmul.f32 %v2483, %v3308
        %v3320 = vmul.f32 %v2484, %v3312
        %v3321 = vmul.f32 %v2485, %v3316
        %3322 = vset.pattern.permute.xlu0 108
        %3323 = vperm.xlu0 %3322, %v238
        %v3324 = vpop.permute.xlu0 %3323
        %3326 = vset.pattern.permute.xlu0 108
        %3327 = vperm.xlu0 %3326, %v239
        %v3328 = vpop.permute.xlu0 %3327
        %3330 = vset.pattern.permute.xlu0 108
        %3331 = vperm.xlu0 %3330, %v240
        %v3332 = vpop.permute.xlu0 %3331
        %3334 = vset.pattern.permute.xlu0 108
        %3335 = vperm.xlu0 %3334, %v241
        %v3336 = vpop.permute.xlu0 %3335
        %v3338 = vadd.f32 %v3318, %v3324
        %v3339 = vadd.f32 %v3319, %v3328
        %v3340 = vadd.f32 %v3320, %v3332
        %v3341 = vadd.f32 %v3321, %v3336
        %v3342 = vmax.f32 %v3338, 0.0
        %v3343 = vmax.f32 %v3339, 0.0
        %v3344 = vmax.f32 %v3340, 0.0
        %v3345 = vmax.f32 %v3341, 0.0
        %3346 = vset.pattern.permute.xlu0 44
        %3347 = vperm.xlu0 %3346, %v290
        %v3348 = vpop.permute.xlu0 %3347
        %3350 = vset.pattern.permute.xlu0 44
        %3351 = vperm.xlu0 %3350, %v291
        %v3352 = vpop.permute.xlu0 %3351
        %3354 = vset.pattern.permute.xlu0 44
        %3355 = vperm.xlu0 %3354, %v292
        %v3356 = vpop.permute.xlu0 %3355
        %3358 = vset.pattern.permute.xlu0 44
        %3359 = vperm.xlu0 %3358, %v293
        %v3360 = vpop.permute.xlu0 %3359
        %v3362 = vmul.f32 %v3342, %v3348
        %v3363 = vmul.f32 %v3343, %v3352
        %v3364 = vmul.f32 %v3344, %v3356
        %v3365 = vmul.f32 %v3345, %v3360
        %v3366 = vadd.f32 %v3298, %v3362
        %v3367 = vadd.f32 %v3299, %v3363
        %v3368 = vadd.f32 %v3300, %v3364
        %v3369 = vadd.f32 %v3301, %v3365
        %3370 = vset.pattern.permute.xlu0 45
        %3371 = vperm.xlu0 %3370, %v238
        %v3372 = vpop.permute.xlu0 %3371
        %3374 = vset.pattern.permute.xlu0 45
        %3375 = vperm.xlu0 %3374, %v239
        %v3376 = vpop.permute.xlu0 %3375
        %3378 = vset.pattern.permute.xlu0 45
        %3379 = vperm.xlu0 %3378, %v240
        %v3380 = vpop.permute.xlu0 %3379
        %3382 = vset.pattern.permute.xlu0 45
        %3383 = vperm.xlu0 %3382, %v241
        %v3384 = vpop.permute.xlu0 %3383
        %v3386 = vmul.f32 %v2482, %v3372
        %v3387 = vmul.f32 %v2483, %v3376
        %v3388 = vmul.f32 %v2484, %v3380
        %v3389 = vmul.f32 %v2485, %v3384
        %3390 = vset.pattern.permute.xlu0 109
        %3391 = vperm.xlu0 %3390, %v238
        %v3392 = vpop.permute.xlu0 %3391
        %3394 = vset.pattern.permute.xlu0 109
        %3395 = vperm.xlu0 %3394, %v239
        %v3396 = vpop.permute.xlu0 %3395
        %3398 = vset.pattern.permute.xlu0 109
        %3399 = vperm.xlu0 %3398, %v240
        %v3400 = vpop.permute.xlu0 %3399
        %3402 = vset.pattern.permute.xlu0 109
        %3403 = vperm.xlu0 %3402, %v241
        %v3404 = vpop.permute.xlu0 %3403
        %v3406 = vadd.f32 %v3386, %v3392
        %v3407 = vadd.f32 %v3387, %v3396
        %v3408 = vadd.f32 %v3388, %v3400
        %v3409 = vadd.f32 %v3389, %v3404
        %v3410 = vmax.f32 %v3406, 0.0
        %v3411 = vmax.f32 %v3407, 0.0
        %v3412 = vmax.f32 %v3408, 0.0
        %v3413 = vmax.f32 %v3409, 0.0
        %3414 = vset.pattern.permute.xlu0 45
        %3415 = vperm.xlu0 %3414, %v290
        %v3416 = vpop.permute.xlu0 %3415
        %3418 = vset.pattern.permute.xlu0 45
        %3419 = vperm.xlu0 %3418, %v291
        %v3420 = vpop.permute.xlu0 %3419
        %3422 = vset.pattern.permute.xlu0 45
        %3423 = vperm.xlu0 %3422, %v292
        %v3424 = vpop.permute.xlu0 %3423
        %3426 = vset.pattern.permute.xlu0 45
        %3427 = vperm.xlu0 %3426, %v293
        %v3428 = vpop.permute.xlu0 %3427
        %v3430 = vmul.f32 %v3410, %v3416
        %v3431 = vmul.f32 %v3411, %v3420
        %v3432 = vmul.f32 %v3412, %v3424
        %v3433 = vmul.f32 %v3413, %v3428
        %v3434 = vadd.f32 %v3366, %v3430
        %v3435 = vadd.f32 %v3367, %v3431
        %v3436 = vadd.f32 %v3368, %v3432
        %v3437 = vadd.f32 %v3369, %v3433
        %3438 = vset.pattern.permute.xlu0 46
        %3439 = vperm.xlu0 %3438, %v238
        %v3440 = vpop.permute.xlu0 %3439
        %3442 = vset.pattern.permute.xlu0 46
        %3443 = vperm.xlu0 %3442, %v239
        %v3444 = vpop.permute.xlu0 %3443
        %3446 = vset.pattern.permute.xlu0 46
        %3447 = vperm.xlu0 %3446, %v240
        %v3448 = vpop.permute.xlu0 %3447
        %3450 = vset.pattern.permute.xlu0 46
        %3451 = vperm.xlu0 %3450, %v241
        %v3452 = vpop.permute.xlu0 %3451
        %v3454 = vmul.f32 %v2482, %v3440
        %v3455 = vmul.f32 %v2483, %v3444
        %v3456 = vmul.f32 %v2484, %v3448
        %v3457 = vmul.f32 %v2485, %v3452
        %3458 = vset.pattern.permute.xlu0 110
        %3459 = vperm.xlu0 %3458, %v238
        %v3460 = vpop.permute.xlu0 %3459
        %3462 = vset.pattern.permute.xlu0 110
        %3463 = vperm.xlu0 %3462, %v239
        %v3464 = vpop.permute.xlu0 %3463
        %3466 = vset.pattern.permute.xlu0 110
        %3467 = vperm.xlu0 %3466, %v240
        %v3468 = vpop.permute.xlu0 %3467
        %3470 = vset.pattern.permute.xlu0 110
        %3471 = vperm.xlu0 %3470, %v241
        %v3472 = vpop.permute.xlu0 %3471
        %v3474 = vadd.f32 %v3454, %v3460
        %v3475 = vadd.f32 %v3455, %v3464
        %v3476 = vadd.f32 %v3456, %v3468
        %v3477 = vadd.f32 %v3457, %v3472
        %v3478 = vmax.f32 %v3474, 0.0
        %v3479 = vmax.f32 %v3475, 0.0
        %v3480 = vmax.f32 %v3476, 0.0
        %v3481 = vmax.f32 %v3477, 0.0
        %3482 = vset.pattern.permute.xlu0 46
        %3483 = vperm.xlu0 %3482, %v290
        %v3484 = vpop.permute.xlu0 %3483
        %3486 = vset.pattern.permute.xlu0 46
        %3487 = vperm.xlu0 %3486, %v291
        %v3488 = vpop.permute.xlu0 %3487
        %3490 = vset.pattern.permute.xlu0 46
        %3491 = vperm.xlu0 %3490, %v292
        %v3492 = vpop.permute.xlu0 %3491
        %3494 = vset.pattern.permute.xlu0 46
        %3495 = vperm.xlu0 %3494, %v293
        %v3496 = vpop.permute.xlu0 %3495
        %v3498 = vmul.f32 %v3478, %v3484
        %v3499 = vmul.f32 %v3479, %v3488
        %v3500 = vmul.f32 %v3480, %v3492
        %v3501 = vmul.f32 %v3481, %v3496
        %v3502 = vadd.f32 %v3434, %v3498
        %v3503 = vadd.f32 %v3435, %v3499
        %v3504 = vadd.f32 %v3436, %v3500
        %v3505 = vadd.f32 %v3437, %v3501
        %3506 = vset.pattern.permute.xlu0 47
        %3507 = vperm.xlu0 %3506, %v238
        %v3508 = vpop.permute.xlu0 %3507
        %3510 = vset.pattern.permute.xlu0 47
        %3511 = vperm.xlu0 %3510, %v239
        %v3512 = vpop.permute.xlu0 %3511
        %3514 = vset.pattern.permute.xlu0 47
        %3515 = vperm.xlu0 %3514, %v240
        %v3516 = vpop.permute.xlu0 %3515
        %3518 = vset.pattern.permute.xlu0 47
        %3519 = vperm.xlu0 %3518, %v241
        %v3520 = vpop.permute.xlu0 %3519
        %v3522 = vmul.f32 %v2482, %v3508
        %v3523 = vmul.f32 %v2483, %v3512
        %v3524 = vmul.f32 %v2484, %v3516
        %v3525 = vmul.f32 %v2485, %v3520
        %3526 = vset.pattern.permute.xlu0 111
        %3527 = vperm.xlu0 %3526, %v238
        %v3528 = vpop.permute.xlu0 %3527
        %3530 = vset.pattern.permute.xlu0 111
        %3531 = vperm.xlu0 %3530, %v239
        %v3532 = vpop.permute.xlu0 %3531
        %3534 = vset.pattern.permute.xlu0 111
        %3535 = vperm.xlu0 %3534, %v240
        %v3536 = vpop.permute.xlu0 %3535
        %3538 = vset.pattern.permute.xlu0 111
        %3539 = vperm.xlu0 %3538, %v241
        %v3540 = vpop.permute.xlu0 %3539
        %v3542 = vadd.f32 %v3522, %v3528
        %v3543 = vadd.f32 %v3523, %v3532
        %v3544 = vadd.f32 %v3524, %v3536
        %v3545 = vadd.f32 %v3525, %v3540
        %v3546 = vmax.f32 %v3542, 0.0
        %v3547 = vmax.f32 %v3543, 0.0
        %v3548 = vmax.f32 %v3544, 0.0
        %v3549 = vmax.f32 %v3545, 0.0
        %3550 = vset.pattern.permute.xlu0 47
        %3551 = vperm.xlu0 %3550, %v290
        %v3552 = vpop.permute.xlu0 %3551
        %3554 = vset.pattern.permute.xlu0 47
        %3555 = vperm.xlu0 %3554, %v291
        %v3556 = vpop.permute.xlu0 %3555
        %3558 = vset.pattern.permute.xlu0 47
        %3559 = vperm.xlu0 %3558, %v292
        %v3560 = vpop.permute.xlu0 %3559
        %3562 = vset.pattern.permute.xlu0 47
        %3563 = vperm.xlu0 %3562, %v293
        %v3564 = vpop.permute.xlu0 %3563
        %v3566 = vmul.f32 %v3546, %v3552
        %v3567 = vmul.f32 %v3547, %v3556
        %v3568 = vmul.f32 %v3548, %v3560
        %v3569 = vmul.f32 %v3549, %v3564
        %v3570 = vadd.f32 %v3502, %v3566
        %v3571 = vadd.f32 %v3503, %v3567
        %v3572 = vadd.f32 %v3504, %v3568
        %v3573 = vadd.f32 %v3505, %v3569
        %3574 = vset.pattern.permute.xlu0 66
        %3575 = vperm.xlu0 %3574, %v290
        %v3576 = vpop.permute.xlu0 %3575
        %3578 = vset.pattern.permute.xlu0 66
        %3579 = vperm.xlu0 %3578, %v291
        %v3580 = vpop.permute.xlu0 %3579
        %3582 = vset.pattern.permute.xlu0 66
        %3583 = vperm.xlu0 %3582, %v292
        %v3584 = vpop.permute.xlu0 %3583
        %3586 = vset.pattern.permute.xlu0 66
        %3587 = vperm.xlu0 %3586, %v293
        %v3588 = vpop.permute.xlu0 %3587
        %v3590 = vadd.f32 %v3570, %v3576
        %v3591 = vadd.f32 %v3571, %v3580
        %v3592 = vadd.f32 %v3572, %v3584
        %v3593 = vadd.f32 %v3573, %v3588
        %3594 = vset.pattern.permute.xlu0 48
        %3595 = vperm.xlu0 %3594, %v238
        %v3596 = vpop.permute.xlu0 %3595
        %3598 = vset.pattern.permute.xlu0 48
        %3599 = vperm.xlu0 %3598, %v239
        %v3600 = vpop.permute.xlu0 %3599
        %3602 = vset.pattern.permute.xlu0 48
        %3603 = vperm.xlu0 %3602, %v240
        %v3604 = vpop.permute.xlu0 %3603
        %3606 = vset.pattern.permute.xlu0 48
        %3607 = vperm.xlu0 %3606, %v241
        %v3608 = vpop.permute.xlu0 %3607
        %v3610 = vmul.f32 %v2482, %v3596
        %v3611 = vmul.f32 %v2483, %v3600
        %v3612 = vmul.f32 %v2484, %v3604
        %v3613 = vmul.f32 %v2485, %v3608
        %3614 = vset.pattern.permute.xlu0 112
        %3615 = vperm.xlu0 %3614, %v238
        %v3616 = vpop.permute.xlu0 %3615
        %3618 = vset.pattern.permute.xlu0 112
        %3619 = vperm.xlu0 %3618, %v239
        %v3620 = vpop.permute.xlu0 %3619
        %3622 = vset.pattern.permute.xlu0 112
        %3623 = vperm.xlu0 %3622, %v240
        %v3624 = vpop.permute.xlu0 %3623
        %3626 = vset.pattern.permute.xlu0 112
        %3627 = vperm.xlu0 %3626, %v241
        %v3628 = vpop.permute.xlu0 %3627
        %v3630 = vadd.f32 %v3610, %v3616
        %v3631 = vadd.f32 %v3611, %v3620
        %v3632 = vadd.f32 %v3612, %v3624
        %v3633 = vadd.f32 %v3613, %v3628
        %v3634 = vmax.f32 %v3630, 0.0
        %v3635 = vmax.f32 %v3631, 0.0
        %v3636 = vmax.f32 %v3632, 0.0
        %v3637 = vmax.f32 %v3633, 0.0
        %3638 = vset.pattern.permute.xlu0 48
        %3639 = vperm.xlu0 %3638, %v290
        %v3640 = vpop.permute.xlu0 %3639
        %3642 = vset.pattern.permute.xlu0 48
        %3643 = vperm.xlu0 %3642, %v291
        %v3644 = vpop.permute.xlu0 %3643
        %3646 = vset.pattern.permute.xlu0 48
        %3647 = vperm.xlu0 %3646, %v292
        %v3648 = vpop.permute.xlu0 %3647
        %3650 = vset.pattern.permute.xlu0 48
        %3651 = vperm.xlu0 %3650, %v293
        %v3652 = vpop.permute.xlu0 %3651
        %v3654 = vmul.f32 %v3634, %v3640
        %v3655 = vmul.f32 %v3635, %v3644
        %v3656 = vmul.f32 %v3636, %v3648
        %v3657 = vmul.f32 %v3637, %v3652
        %v3658 = vadd.f32 %v3654, 0.0
        %v3659 = vadd.f32 %v3655, 0.0
        %v3660 = vadd.f32 %v3656, 0.0
        %v3661 = vadd.f32 %v3657, 0.0
        %3662 = vset.pattern.permute.xlu0 49
        %3663 = vperm.xlu0 %3662, %v238
        %v3664 = vpop.permute.xlu0 %3663
        %3666 = vset.pattern.permute.xlu0 49
        %3667 = vperm.xlu0 %3666, %v239
        %v3668 = vpop.permute.xlu0 %3667
        %3670 = vset.pattern.permute.xlu0 49
        %3671 = vperm.xlu0 %3670, %v240
        %v3672 = vpop.permute.xlu0 %3671
        %3674 = vset.pattern.permute.xlu0 49
        %3675 = vperm.xlu0 %3674, %v241
        %v3676 = vpop.permute.xlu0 %3675
        %v3678 = vmul.f32 %v2482, %v3664
        %v3679 = vmul.f32 %v2483, %v3668
        %v3680 = vmul.f32 %v2484, %v3672
        %v3681 = vmul.f32 %v2485, %v3676
        %3682 = vset.pattern.permute.xlu0 113
        %3683 = vperm.xlu0 %3682, %v238
        %v3684 = vpop.permute.xlu0 %3683
        %3686 = vset.pattern.permute.xlu0 113
        %3687 = vperm.xlu0 %3686, %v239
        %v3688 = vpop.permute.xlu0 %3687
        %3690 = vset.pattern.permute.xlu0 113
        %3691 = vperm.xlu0 %3690, %v240
        %v3692 = vpop.permute.xlu0 %3691
        %3694 = vset.pattern.permute.xlu0 113
        %3695 = vperm.xlu0 %3694, %v241
        %v3696 = vpop.permute.xlu0 %3695
        %v3698 = vadd.f32 %v3678, %v3684
        %v3699 = vadd.f32 %v3679, %v3688
        %v3700 = vadd.f32 %v3680, %v3692
        %v3701 = vadd.f32 %v3681, %v3696
        %v3702 = vmax.f32 %v3698, 0.0
        %v3703 = vmax.f32 %v3699, 0.0
        %v3704 = vmax.f32 %v3700, 0.0
        %v3705 = vmax.f32 %v3701, 0.0
        %3706 = vset.pattern.permute.xlu0 49
        %3707 = vperm.xlu0 %3706, %v290
        %v3708 = vpop.permute.xlu0 %3707
        %3710 = vset.pattern.permute.xlu0 49
        %3711 = vperm.xlu0 %3710, %v291
        %v3712 = vpop.permute.xlu0 %3711
        %3714 = vset.pattern.permute.xlu0 49
        %3715 = vperm.xlu0 %3714, %v292
        %v3716 = vpop.permute.xlu0 %3715
        %3718 = vset.pattern.permute.xlu0 49
        %3719 = vperm.xlu0 %3718, %v293
        %v3720 = vpop.permute.xlu0 %3719
        %v3722 = vmul.f32 %v3702, %v3708
        %v3723 = vmul.f32 %v3703, %v3712
        %v3724 = vmul.f32 %v3704, %v3716
        %v3725 = vmul.f32 %v3705, %v3720
        %v3726 = vadd.f32 %v3658, %v3722
        %v3727 = vadd.f32 %v3659, %v3723
        %v3728 = vadd.f32 %v3660, %v3724
        %v3729 = vadd.f32 %v3661, %v3725
        %3730 = vset.pattern.permute.xlu0 50
        %3731 = vperm.xlu0 %3730, %v238
        %v3732 = vpop.permute.xlu0 %3731
        %3734 = vset.pattern.permute.xlu0 50
        %3735 = vperm.xlu0 %3734, %v239
        %v3736 = vpop.permute.xlu0 %3735
        %3738 = vset.pattern.permute.xlu0 50
        %3739 = vperm.xlu0 %3738, %v240
        %v3740 = vpop.permute.xlu0 %3739
        %3742 = vset.pattern.permute.xlu0 50
        %3743 = vperm.xlu0 %3742, %v241
        %v3744 = vpop.permute.xlu0 %3743
        %v3746 = vmul.f32 %v2482, %v3732
        %v3747 = vmul.f32 %v2483, %v3736
        %v3748 = vmul.f32 %v2484, %v3740
        %v3749 = vmul.f32 %v2485, %v3744
        %3750 = vset.pattern.permute.xlu0 114
        %3751 = vperm.xlu0 %3750, %v238
        %v3752 = vpop.permute.xlu0 %3751
        %3754 = vset.pattern.permute.xlu0 114
        %3755 = vperm.xlu0 %3754, %v239
        %v3756 = vpop.permute.xlu0 %3755
        %3758 = vset.pattern.permute.xlu0 114
        %3759 = vperm.xlu0 %3758, %v240
        %v3760 = vpop.permute.xlu0 %3759
        %3762 = vset.pattern.permute.xlu0 114
        %3763 = vperm.xlu0 %3762, %v241
        %v3764 = vpop.permute.xlu0 %3763
        %v3766 = vadd.f32 %v3746, %v3752
        %v3767 = vadd.f32 %v3747, %v3756
        %v3768 = vadd.f32 %v3748, %v3760
        %v3769 = vadd.f32 %v3749, %v3764
        %v3770 = vmax.f32 %v3766, 0.0
        %v3771 = vmax.f32 %v3767, 0.0
        %v3772 = vmax.f32 %v3768, 0.0
        %v3773 = vmax.f32 %v3769, 0.0
        %3774 = vset.pattern.permute.xlu0 50
        %3775 = vperm.xlu0 %3774, %v290
        %v3776 = vpop.permute.xlu0 %3775
        %3778 = vset.pattern.permute.xlu0 50
        %3779 = vperm.xlu0 %3778, %v291
        %v3780 = vpop.permute.xlu0 %3779
        %3782 = vset.pattern.permute.xlu0 50
        %3783 = vperm.xlu0 %3782, %v292
        %v3784 = vpop.permute.xlu0 %3783
        %3786 = vset.pattern.permute.xlu0 50
        %3787 = vperm.xlu0 %3786, %v293
        %v3788 = vpop.permute.xlu0 %3787
        %v3790 = vmul.f32 %v3770, %v3776
        %v3791 = vmul.f32 %v3771, %v3780
        %v3792 = vmul.f32 %v3772, %v3784
        %v3793 = vmul.f32 %v3773, %v3788
        %v3794 = vadd.f32 %v3726, %v3790
        %v3795 = vadd.f32 %v3727, %v3791
        %v3796 = vadd.f32 %v3728, %v3792
        %v3797 = vadd.f32 %v3729, %v3793
        %3798 = vset.pattern.permute.xlu0 51
        %3799 = vperm.xlu0 %3798, %v238
        %v3800 = vpop.permute.xlu0 %3799
        %3802 = vset.pattern.permute.xlu0 51
        %3803 = vperm.xlu0 %3802, %v239
        %v3804 = vpop.permute.xlu0 %3803
        %3806 = vset.pattern.permute.xlu0 51
        %3807 = vperm.xlu0 %3806, %v240
        %v3808 = vpop.permute.xlu0 %3807
        %3810 = vset.pattern.permute.xlu0 51
        %3811 = vperm.xlu0 %3810, %v241
        %v3812 = vpop.permute.xlu0 %3811
        %v3814 = vmul.f32 %v2482, %v3800
        %v3815 = vmul.f32 %v2483, %v3804
        %v3816 = vmul.f32 %v2484, %v3808
        %v3817 = vmul.f32 %v2485, %v3812
        %3818 = vset.pattern.permute.xlu0 115
        %3819 = vperm.xlu0 %3818, %v238
        %v3820 = vpop.permute.xlu0 %3819
        %3822 = vset.pattern.permute.xlu0 115
        %3823 = vperm.xlu0 %3822, %v239
        %v3824 = vpop.permute.xlu0 %3823
        %3826 = vset.pattern.permute.xlu0 115
        %3827 = vperm.xlu0 %3826, %v240
        %v3828 = vpop.permute.xlu0 %3827
        %3830 = vset.pattern.permute.xlu0 115
        %3831 = vperm.xlu0 %3830, %v241
        %v3832 = vpop.permute.xlu0 %3831
        %v3834 = vadd.f32 %v3814, %v3820
        %v3835 = vadd.f32 %v3815, %v3824
        %v3836 = vadd.f32 %v3816, %v3828
        %v3837 = vadd.f32 %v3817, %v3832
        %v3838 = vmax.f32 %v3834, 0.0
        %v3839 = vmax.f32 %v3835, 0.0
        %v3840 = vmax.f32 %v3836, 0.0
        %v3841 = vmax.f32 %v3837, 0.0
        %3842 = vset.pattern.permute.xlu0 51
        %3843 = vperm.xlu0 %3842, %v290
        %v3844 = vpop.permute.xlu0 %3843
        %3846 = vset.pattern.permute.xlu0 51
        %3847 = vperm.xlu0 %3846, %v291
        %v3848 = vpop.permute.xlu0 %3847
        %3850 = vset.pattern.permute.xlu0 51
        %3851 = vperm.xlu0 %3850, %v292
        %v3852 = vpop.permute.xlu0 %3851
        %3854 = vset.pattern.permute.xlu0 51
        %3855 = vperm.xlu0 %3854, %v293
        %v3856 = vpop.permute.xlu0 %3855
        %v3858 = vmul.f32 %v3838, %v3844
        %v3859 = vmul.f32 %v3839, %v3848
        %v3860 = vmul.f32 %v3840, %v3852
        %v3861 = vmul.f32 %v3841, %v3856
        %v3862 = vadd.f32 %v3794, %v3858
        %v3863 = vadd.f32 %v3795, %v3859
        %v3864 = vadd.f32 %v3796, %v3860
        %v3865 = vadd.f32 %v3797, %v3861
        %3866 = vset.pattern.permute.xlu0 52
        %3867 = vperm.xlu0 %3866, %v238
        %v3868 = vpop.permute.xlu0 %3867
        %3870 = vset.pattern.permute.xlu0 52
        %3871 = vperm.xlu0 %3870, %v239
        %v3872 = vpop.permute.xlu0 %3871
        %3874 = vset.pattern.permute.xlu0 52
        %3875 = vperm.xlu0 %3874, %v240
        %v3876 = vpop.permute.xlu0 %3875
        %3878 = vset.pattern.permute.xlu0 52
        %3879 = vperm.xlu0 %3878, %v241
        %v3880 = vpop.permute.xlu0 %3879
        %v3882 = vmul.f32 %v2482, %v3868
        %v3883 = vmul.f32 %v2483, %v3872
        %v3884 = vmul.f32 %v2484, %v3876
        %v3885 = vmul.f32 %v2485, %v3880
        %3886 = vset.pattern.permute.xlu0 116
        %3887 = vperm.xlu0 %3886, %v238
        %v3888 = vpop.permute.xlu0 %3887
        %3890 = vset.pattern.permute.xlu0 116
        %3891 = vperm.xlu0 %3890, %v239
        %v3892 = vpop.permute.xlu0 %3891
        %3894 = vset.pattern.permute.xlu0 116
        %3895 = vperm.xlu0 %3894, %v240
        %v3896 = vpop.permute.xlu0 %3895
        %3898 = vset.pattern.permute.xlu0 116
        %3899 = vperm.xlu0 %3898, %v241
        %v3900 = vpop.permute.xlu0 %3899
        %v3902 = vadd.f32 %v3882, %v3888
        %v3903 = vadd.f32 %v3883, %v3892
        %v3904 = vadd.f32 %v3884, %v3896
        %v3905 = vadd.f32 %v3885, %v3900
        %v3906 = vmax.f32 %v3902, 0.0
        %v3907 = vmax.f32 %v3903, 0.0
        %v3908 = vmax.f32 %v3904, 0.0
        %v3909 = vmax.f32 %v3905, 0.0
        %3910 = vset.pattern.permute.xlu0 52
        %3911 = vperm.xlu0 %3910, %v290
        %v3912 = vpop.permute.xlu0 %3911
        %3914 = vset.pattern.permute.xlu0 52
        %3915 = vperm.xlu0 %3914, %v291
        %v3916 = vpop.permute.xlu0 %3915
        %3918 = vset.pattern.permute.xlu0 52
        %3919 = vperm.xlu0 %3918, %v292
        %v3920 = vpop.permute.xlu0 %3919
        %3922 = vset.pattern.permute.xlu0 52
        %3923 = vperm.xlu0 %3922, %v293
        %v3924 = vpop.permute.xlu0 %3923
        %v3926 = vmul.f32 %v3906, %v3912
        %v3927 = vmul.f32 %v3907, %v3916
        %v3928 = vmul.f32 %v3908, %v3920
        %v3929 = vmul.f32 %v3909, %v3924
        %v3930 = vadd.f32 %v3862, %v3926
        %v3931 = vadd.f32 %v3863, %v3927
        %v3932 = vadd.f32 %v3864, %v3928
        %v3933 = vadd.f32 %v3865, %v3929
        %3934 = vset.pattern.permute.xlu0 53
        %3935 = vperm.xlu0 %3934, %v238
        %v3936 = vpop.permute.xlu0 %3935
        %3938 = vset.pattern.permute.xlu0 53
        %3939 = vperm.xlu0 %3938, %v239
        %v3940 = vpop.permute.xlu0 %3939
        %3942 = vset.pattern.permute.xlu0 53
        %3943 = vperm.xlu0 %3942, %v240
        %v3944 = vpop.permute.xlu0 %3943
        %3946 = vset.pattern.permute.xlu0 53
        %3947 = vperm.xlu0 %3946, %v241
        %v3948 = vpop.permute.xlu0 %3947
        %v3950 = vmul.f32 %v2482, %v3936
        %v3951 = vmul.f32 %v2483, %v3940
        %v3952 = vmul.f32 %v2484, %v3944
        %v3953 = vmul.f32 %v2485, %v3948
        %3954 = vset.pattern.permute.xlu0 117
        %3955 = vperm.xlu0 %3954, %v238
        %v3956 = vpop.permute.xlu0 %3955
        %3958 = vset.pattern.permute.xlu0 117
        %3959 = vperm.xlu0 %3958, %v239
        %v3960 = vpop.permute.xlu0 %3959
        %3962 = vset.pattern.permute.xlu0 117
        %3963 = vperm.xlu0 %3962, %v240
        %v3964 = vpop.permute.xlu0 %3963
        %3966 = vset.pattern.permute.xlu0 117
        %3967 = vperm.xlu0 %3966, %v241
        %v3968 = vpop.permute.xlu0 %3967
        %v3970 = vadd.f32 %v3950, %v3956
        %v3971 = vadd.f32 %v3951, %v3960
        %v3972 = vadd.f32 %v3952, %v3964
        %v3973 = vadd.f32 %v3953, %v3968
        %v3974 = vmax.f32 %v3970, 0.0
        %v3975 = vmax.f32 %v3971, 0.0
        %v3976 = vmax.f32 %v3972, 0.0
        %v3977 = vmax.f32 %v3973, 0.0
        %3978 = vset.pattern.permute.xlu0 53
        %3979 = vperm.xlu0 %3978, %v290
        %v3980 = vpop.permute.xlu0 %3979
        %3982 = vset.pattern.permute.xlu0 53
        %3983 = vperm.xlu0 %3982, %v291
        %v3984 = vpop.permute.xlu0 %3983
        %3986 = vset.pattern.permute.xlu0 53
        %3987 = vperm.xlu0 %3986, %v292
        %v3988 = vpop.permute.xlu0 %3987
        %3990 = vset.pattern.permute.xlu0 53
        %3991 = vperm.xlu0 %3990, %v293
        %v3992 = vpop.permute.xlu0 %3991
        %v3994 = vmul.f32 %v3974, %v3980
        %v3995 = vmul.f32 %v3975, %v3984
        %v3996 = vmul.f32 %v3976, %v3988
        %v3997 = vmul.f32 %v3977, %v3992
        %v3998 = vadd.f32 %v3930, %v3994
        %v3999 = vadd.f32 %v3931, %v3995
        %v4000 = vadd.f32 %v3932, %v3996
        %v4001 = vadd.f32 %v3933, %v3997
        %4002 = vset.pattern.permute.xlu0 54
        %4003 = vperm.xlu0 %4002, %v238
        %v4004 = vpop.permute.xlu0 %4003
        %4006 = vset.pattern.permute.xlu0 54
        %4007 = vperm.xlu0 %4006, %v239
        %v4008 = vpop.permute.xlu0 %4007
        %4010 = vset.pattern.permute.xlu0 54
        %4011 = vperm.xlu0 %4010, %v240
        %v4012 = vpop.permute.xlu0 %4011
        %4014 = vset.pattern.permute.xlu0 54
        %4015 = vperm.xlu0 %4014, %v241
        %v4016 = vpop.permute.xlu0 %4015
        %v4018 = vmul.f32 %v2482, %v4004
        %v4019 = vmul.f32 %v2483, %v4008
        %v4020 = vmul.f32 %v2484, %v4012
        %v4021 = vmul.f32 %v2485, %v4016
        %4022 = vset.pattern.permute.xlu0 118
        %4023 = vperm.xlu0 %4022, %v238
        %v4024 = vpop.permute.xlu0 %4023
        %4026 = vset.pattern.permute.xlu0 118
        %4027 = vperm.xlu0 %4026, %v239
        %v4028 = vpop.permute.xlu0 %4027
        %4030 = vset.pattern.permute.xlu0 118
        %4031 = vperm.xlu0 %4030, %v240
        %v4032 = vpop.permute.xlu0 %4031
        %4034 = vset.pattern.permute.xlu0 118
        %4035 = vperm.xlu0 %4034, %v241
        %v4036 = vpop.permute.xlu0 %4035
        %v4038 = vadd.f32 %v4018, %v4024
        %v4039 = vadd.f32 %v4019, %v4028
        %v4040 = vadd.f32 %v4020, %v4032
        %v4041 = vadd.f32 %v4021, %v4036
        %v4042 = vmax.f32 %v4038, 0.0
        %v4043 = vmax.f32 %v4039, 0.0
        %v4044 = vmax.f32 %v4040, 0.0
        %v4045 = vmax.f32 %v4041, 0.0
        %4046 = vset.pattern.permute.xlu0 54
        %4047 = vperm.xlu0 %4046, %v290
        %v4048 = vpop.permute.xlu0 %4047
        %4050 = vset.pattern.permute.xlu0 54
        %4051 = vperm.xlu0 %4050, %v291
        %v4052 = vpop.permute.xlu0 %4051
        %4054 = vset.pattern.permute.xlu0 54
        %4055 = vperm.xlu0 %4054, %v292
        %v4056 = vpop.permute.xlu0 %4055
        %4058 = vset.pattern.permute.xlu0 54
        %4059 = vperm.xlu0 %4058, %v293
        %v4060 = vpop.permute.xlu0 %4059
        %v4062 = vmul.f32 %v4042, %v4048
        %v4063 = vmul.f32 %v4043, %v4052
        %v4064 = vmul.f32 %v4044, %v4056
        %v4065 = vmul.f32 %v4045, %v4060
        %v4066 = vadd.f32 %v3998, %v4062
        %v4067 = vadd.f32 %v3999, %v4063
        %v4068 = vadd.f32 %v4000, %v4064
        %v4069 = vadd.f32 %v4001, %v4065
        %4070 = vset.pattern.permute.xlu0 55
        %4071 = vperm.xlu0 %4070, %v238
        %v4072 = vpop.permute.xlu0 %4071
        %4074 = vset.pattern.permute.xlu0 55
        %4075 = vperm.xlu0 %4074, %v239
        %v4076 = vpop.permute.xlu0 %4075
        %4078 = vset.pattern.permute.xlu0 55
        %4079 = vperm.xlu0 %4078, %v240
        %v4080 = vpop.permute.xlu0 %4079
        %4082 = vset.pattern.permute.xlu0 55
        %4083 = vperm.xlu0 %4082, %v241
        %v4084 = vpop.permute.xlu0 %4083
        %v4086 = vmul.f32 %v2482, %v4072
        %v4087 = vmul.f32 %v2483, %v4076
        %v4088 = vmul.f32 %v2484, %v4080
        %v4089 = vmul.f32 %v2485, %v4084
        %4090 = vset.pattern.permute.xlu0 119
        %4091 = vperm.xlu0 %4090, %v238
        %v4092 = vpop.permute.xlu0 %4091
        %4094 = vset.pattern.permute.xlu0 119
        %4095 = vperm.xlu0 %4094, %v239
        %v4096 = vpop.permute.xlu0 %4095
        %4098 = vset.pattern.permute.xlu0 119
        %4099 = vperm.xlu0 %4098, %v240
        %v4100 = vpop.permute.xlu0 %4099
        %4102 = vset.pattern.permute.xlu0 119
        %4103 = vperm.xlu0 %4102, %v241
        %v4104 = vpop.permute.xlu0 %4103
        %v4106 = vadd.f32 %v4086, %v4092
        %v4107 = vadd.f32 %v4087, %v4096
        %v4108 = vadd.f32 %v4088, %v4100
        %v4109 = vadd.f32 %v4089, %v4104
        %v4110 = vmax.f32 %v4106, 0.0
        %v4111 = vmax.f32 %v4107, 0.0
        %v4112 = vmax.f32 %v4108, 0.0
        %v4113 = vmax.f32 %v4109, 0.0
        %4114 = vset.pattern.permute.xlu0 55
        %4115 = vperm.xlu0 %4114, %v290
        %v4116 = vpop.permute.xlu0 %4115
        %4118 = vset.pattern.permute.xlu0 55
        %4119 = vperm.xlu0 %4118, %v291
        %v4120 = vpop.permute.xlu0 %4119
        %4122 = vset.pattern.permute.xlu0 55
        %4123 = vperm.xlu0 %4122, %v292
        %v4124 = vpop.permute.xlu0 %4123
        %4126 = vset.pattern.permute.xlu0 55
        %4127 = vperm.xlu0 %4126, %v293
        %v4128 = vpop.permute.xlu0 %4127
        %v4130 = vmul.f32 %v4110, %v4116
        %v4131 = vmul.f32 %v4111, %v4120
        %v4132 = vmul.f32 %v4112, %v4124
        %v4133 = vmul.f32 %v4113, %v4128
        %v4134 = vadd.f32 %v4066, %v4130
        %v4135 = vadd.f32 %v4067, %v4131
        %v4136 = vadd.f32 %v4068, %v4132
        %v4137 = vadd.f32 %v4069, %v4133
        %4138 = vset.pattern.permute.xlu0 56
        %4139 = vperm.xlu0 %4138, %v238
        %v4140 = vpop.permute.xlu0 %4139
        %4142 = vset.pattern.permute.xlu0 56
        %4143 = vperm.xlu0 %4142, %v239
        %v4144 = vpop.permute.xlu0 %4143
        %4146 = vset.pattern.permute.xlu0 56
        %4147 = vperm.xlu0 %4146, %v240
        %v4148 = vpop.permute.xlu0 %4147
        %4150 = vset.pattern.permute.xlu0 56
        %4151 = vperm.xlu0 %4150, %v241
        %v4152 = vpop.permute.xlu0 %4151
        %v4154 = vmul.f32 %v2482, %v4140
        %v4155 = vmul.f32 %v2483, %v4144
        %v4156 = vmul.f32 %v2484, %v4148
        %v4157 = vmul.f32 %v2485, %v4152
        %4158 = vset.pattern.permute.xlu0 120
        %4159 = vperm.xlu0 %4158, %v238
        %v4160 = vpop.permute.xlu0 %4159
        %4162 = vset.pattern.permute.xlu0 120
        %4163 = vperm.xlu0 %4162, %v239
        %v4164 = vpop.permute.xlu0 %4163
        %4166 = vset.pattern.permute.xlu0 120
        %4167 = vperm.xlu0 %4166, %v240
        %v4168 = vpop.permute.xlu0 %4167
        %4170 = vset.pattern.permute.xlu0 120
        %4171 = vperm.xlu0 %4170, %v241
        %v4172 = vpop.permute.xlu0 %4171
        %v4174 = vadd.f32 %v4154, %v4160
        %v4175 = vadd.f32 %v4155, %v4164
        %v4176 = vadd.f32 %v4156, %v4168
        %v4177 = vadd.f32 %v4157, %v4172
        %v4178 = vmax.f32 %v4174, 0.0
        %v4179 = vmax.f32 %v4175, 0.0
        %v4180 = vmax.f32 %v4176, 0.0
        %v4181 = vmax.f32 %v4177, 0.0
        %4182 = vset.pattern.permute.xlu0 56
        %4183 = vperm.xlu0 %4182, %v290
        %v4184 = vpop.permute.xlu0 %4183
        %4186 = vset.pattern.permute.xlu0 56
        %4187 = vperm.xlu0 %4186, %v291
        %v4188 = vpop.permute.xlu0 %4187
        %4190 = vset.pattern.permute.xlu0 56
        %4191 = vperm.xlu0 %4190, %v292
        %v4192 = vpop.permute.xlu0 %4191
        %4194 = vset.pattern.permute.xlu0 56
        %4195 = vperm.xlu0 %4194, %v293
        %v4196 = vpop.permute.xlu0 %4195
        %v4198 = vmul.f32 %v4178, %v4184
        %v4199 = vmul.f32 %v4179, %v4188
        %v4200 = vmul.f32 %v4180, %v4192
        %v4201 = vmul.f32 %v4181, %v4196
        %v4202 = vadd.f32 %v4134, %v4198
        %v4203 = vadd.f32 %v4135, %v4199
        %v4204 = vadd.f32 %v4136, %v4200
        %v4205 = vadd.f32 %v4137, %v4201
        %4206 = vset.pattern.permute.xlu0 57
        %4207 = vperm.xlu0 %4206, %v238
        %v4208 = vpop.permute.xlu0 %4207
        %4210 = vset.pattern.permute.xlu0 57
        %4211 = vperm.xlu0 %4210, %v239
        %v4212 = vpop.permute.xlu0 %4211
        %4214 = vset.pattern.permute.xlu0 57
        %4215 = vperm.xlu0 %4214, %v240
        %v4216 = vpop.permute.xlu0 %4215
        %4218 = vset.pattern.permute.xlu0 57
        %4219 = vperm.xlu0 %4218, %v241
        %v4220 = vpop.permute.xlu0 %4219
        %v4222 = vmul.f32 %v2482, %v4208
        %v4223 = vmul.f32 %v2483, %v4212
        %v4224 = vmul.f32 %v2484, %v4216
        %v4225 = vmul.f32 %v2485, %v4220
        %4226 = vset.pattern.permute.xlu0 121
        %4227 = vperm.xlu0 %4226, %v238
        %v4228 = vpop.permute.xlu0 %4227
        %4230 = vset.pattern.permute.xlu0 121
        %4231 = vperm.xlu0 %4230, %v239
        %v4232 = vpop.permute.xlu0 %4231
        %4234 = vset.pattern.permute.xlu0 121
        %4235 = vperm.xlu0 %4234, %v240
        %v4236 = vpop.permute.xlu0 %4235
        %4238 = vset.pattern.permute.xlu0 121
        %4239 = vperm.xlu0 %4238, %v241
        %v4240 = vpop.permute.xlu0 %4239
        %v4242 = vadd.f32 %v4222, %v4228
        %v4243 = vadd.f32 %v4223, %v4232
        %v4244 = vadd.f32 %v4224, %v4236
        %v4245 = vadd.f32 %v4225, %v4240
        %v4246 = vmax.f32 %v4242, 0.0
        %v4247 = vmax.f32 %v4243, 0.0
        %v4248 = vmax.f32 %v4244, 0.0
        %v4249 = vmax.f32 %v4245, 0.0
        %4250 = vset.pattern.permute.xlu0 57
        %4251 = vperm.xlu0 %4250, %v290
        %v4252 = vpop.permute.xlu0 %4251
        %4254 = vset.pattern.permute.xlu0 57
        %4255 = vperm.xlu0 %4254, %v291
        %v4256 = vpop.permute.xlu0 %4255
        %4258 = vset.pattern.permute.xlu0 57
        %4259 = vperm.xlu0 %4258, %v292
        %v4260 = vpop.permute.xlu0 %4259
        %4262 = vset.pattern.permute.xlu0 57
        %4263 = vperm.xlu0 %4262, %v293
        %v4264 = vpop.permute.xlu0 %4263
        %v4266 = vmul.f32 %v4246, %v4252
        %v4267 = vmul.f32 %v4247, %v4256
        %v4268 = vmul.f32 %v4248, %v4260
        %v4269 = vmul.f32 %v4249, %v4264
        %v4270 = vadd.f32 %v4202, %v4266
        %v4271 = vadd.f32 %v4203, %v4267
        %v4272 = vadd.f32 %v4204, %v4268
        %v4273 = vadd.f32 %v4205, %v4269
        %4274 = vset.pattern.permute.xlu0 58
        %4275 = vperm.xlu0 %4274, %v238
        %v4276 = vpop.permute.xlu0 %4275
        %4278 = vset.pattern.permute.xlu0 58
        %4279 = vperm.xlu0 %4278, %v239
        %v4280 = vpop.permute.xlu0 %4279
        %4282 = vset.pattern.permute.xlu0 58
        %4283 = vperm.xlu0 %4282, %v240
        %v4284 = vpop.permute.xlu0 %4283
        %4286 = vset.pattern.permute.xlu0 58
        %4287 = vperm.xlu0 %4286, %v241
        %v4288 = vpop.permute.xlu0 %4287
        %v4290 = vmul.f32 %v2482, %v4276
        %v4291 = vmul.f32 %v2483, %v4280
        %v4292 = vmul.f32 %v2484, %v4284
        %v4293 = vmul.f32 %v2485, %v4288
        %4294 = vset.pattern.permute.xlu0 122
        %4295 = vperm.xlu0 %4294, %v238
        %v4296 = vpop.permute.xlu0 %4295
        %4298 = vset.pattern.permute.xlu0 122
        %4299 = vperm.xlu0 %4298, %v239
        %v4300 = vpop.permute.xlu0 %4299
        %4302 = vset.pattern.permute.xlu0 122
        %4303 = vperm.xlu0 %4302, %v240
        %v4304 = vpop.permute.xlu0 %4303
        %4306 = vset.pattern.permute.xlu0 122
        %4307 = vperm.xlu0 %4306, %v241
        %v4308 = vpop.permute.xlu0 %4307
        %v4310 = vadd.f32 %v4290, %v4296
        %v4311 = vadd.f32 %v4291, %v4300
        %v4312 = vadd.f32 %v4292, %v4304
        %v4313 = vadd.f32 %v4293, %v4308
        %v4314 = vmax.f32 %v4310, 0.0
        %v4315 = vmax.f32 %v4311, 0.0
        %v4316 = vmax.f32 %v4312, 0.0
        %v4317 = vmax.f32 %v4313, 0.0
        %4318 = vset.pattern.permute.xlu0 58
        %4319 = vperm.xlu0 %4318, %v290
        %v4320 = vpop.permute.xlu0 %4319
        %4322 = vset.pattern.permute.xlu0 58
        %4323 = vperm.xlu0 %4322, %v291
        %v4324 = vpop.permute.xlu0 %4323
        %4326 = vset.pattern.permute.xlu0 58
        %4327 = vperm.xlu0 %4326, %v292
        %v4328 = vpop.permute.xlu0 %4327
        %4330 = vset.pattern.permute.xlu0 58
        %4331 = vperm.xlu0 %4330, %v293
        %v4332 = vpop.permute.xlu0 %4331
        %v4334 = vmul.f32 %v4314, %v4320
        %v4335 = vmul.f32 %v4315, %v4324
        %v4336 = vmul.f32 %v4316, %v4328
        %v4337 = vmul.f32 %v4317, %v4332
        %v4338 = vadd.f32 %v4270, %v4334
        %v4339 = vadd.f32 %v4271, %v4335
        %v4340 = vadd.f32 %v4272, %v4336
        %v4341 = vadd.f32 %v4273, %v4337
        %4342 = vset.pattern.permute.xlu0 59
        %4343 = vperm.xlu0 %4342, %v238
        %v4344 = vpop.permute.xlu0 %4343
        %4346 = vset.pattern.permute.xlu0 59
        %4347 = vperm.xlu0 %4346, %v239
        %v4348 = vpop.permute.xlu0 %4347
        %4350 = vset.pattern.permute.xlu0 59
        %4351 = vperm.xlu0 %4350, %v240
        %v4352 = vpop.permute.xlu0 %4351
        %4354 = vset.pattern.permute.xlu0 59
        %4355 = vperm.xlu0 %4354, %v241
        %v4356 = vpop.permute.xlu0 %4355
        %v4358 = vmul.f32 %v2482, %v4344
        %v4359 = vmul.f32 %v2483, %v4348
        %v4360 = vmul.f32 %v2484, %v4352
        %v4361 = vmul.f32 %v2485, %v4356
        %4362 = vset.pattern.permute.xlu0 123
        %4363 = vperm.xlu0 %4362, %v238
        %v4364 = vpop.permute.xlu0 %4363
        %4366 = vset.pattern.permute.xlu0 123
        %4367 = vperm.xlu0 %4366, %v239
        %v4368 = vpop.permute.xlu0 %4367
        %4370 = vset.pattern.permute.xlu0 123
        %4371 = vperm.xlu0 %4370, %v240
        %v4372 = vpop.permute.xlu0 %4371
        %4374 = vset.pattern.permute.xlu0 123
        %4375 = vperm.xlu0 %4374, %v241
        %v4376 = vpop.permute.xlu0 %4375
        %v4378 = vadd.f32 %v4358, %v4364
        %v4379 = vadd.f32 %v4359, %v4368
        %v4380 = vadd.f32 %v4360, %v4372
        %v4381 = vadd.f32 %v4361, %v4376
        %v4382 = vmax.f32 %v4378, 0.0
        %v4383 = vmax.f32 %v4379, 0.0
        %v4384 = vmax.f32 %v4380, 0.0
        %v4385 = vmax.f32 %v4381, 0.0
        %4386 = vset.pattern.permute.xlu0 59
        %4387 = vperm.xlu0 %4386, %v290
        %v4388 = vpop.permute.xlu0 %4387
        %4390 = vset.pattern.permute.xlu0 59
        %4391 = vperm.xlu0 %4390, %v291
        %v4392 = vpop.permute.xlu0 %4391
        %4394 = vset.pattern.permute.xlu0 59
        %4395 = vperm.xlu0 %4394, %v292
        %v4396 = vpop.permute.xlu0 %4395
        %4398 = vset.pattern.permute.xlu0 59
        %4399 = vperm.xlu0 %4398, %v293
        %v4400 = vpop.permute.xlu0 %4399
        %v4402 = vmul.f32 %v4382, %v4388
        %v4403 = vmul.f32 %v4383, %v4392
        %v4404 = vmul.f32 %v4384, %v4396
        %v4405 = vmul.f32 %v4385, %v4400
        %v4406 = vadd.f32 %v4338, %v4402
        %v4407 = vadd.f32 %v4339, %v4403
        %v4408 = vadd.f32 %v4340, %v4404
        %v4409 = vadd.f32 %v4341, %v4405
        %4410 = vset.pattern.permute.xlu0 60
        %4411 = vperm.xlu0 %4410, %v238
        %v4412 = vpop.permute.xlu0 %4411
        %4414 = vset.pattern.permute.xlu0 60
        %4415 = vperm.xlu0 %4414, %v239
        %v4416 = vpop.permute.xlu0 %4415
        %4418 = vset.pattern.permute.xlu0 60
        %4419 = vperm.xlu0 %4418, %v240
        %v4420 = vpop.permute.xlu0 %4419
        %4422 = vset.pattern.permute.xlu0 60
        %4423 = vperm.xlu0 %4422, %v241
        %v4424 = vpop.permute.xlu0 %4423
        %v4426 = vmul.f32 %v2482, %v4412
        %v4427 = vmul.f32 %v2483, %v4416
        %v4428 = vmul.f32 %v2484, %v4420
        %v4429 = vmul.f32 %v2485, %v4424
        %4430 = vset.pattern.permute.xlu0 124
        %4431 = vperm.xlu0 %4430, %v238
        %v4432 = vpop.permute.xlu0 %4431
        %4434 = vset.pattern.permute.xlu0 124
        %4435 = vperm.xlu0 %4434, %v239
        %v4436 = vpop.permute.xlu0 %4435
        %4438 = vset.pattern.permute.xlu0 124
        %4439 = vperm.xlu0 %4438, %v240
        %v4440 = vpop.permute.xlu0 %4439
        %4442 = vset.pattern.permute.xlu0 124
        %4443 = vperm.xlu0 %4442, %v241
        %v4444 = vpop.permute.xlu0 %4443
        %v4446 = vadd.f32 %v4426, %v4432
        %v4447 = vadd.f32 %v4427, %v4436
        %v4448 = vadd.f32 %v4428, %v4440
        %v4449 = vadd.f32 %v4429, %v4444
        %v4450 = vmax.f32 %v4446, 0.0
        %v4451 = vmax.f32 %v4447, 0.0
        %v4452 = vmax.f32 %v4448, 0.0
        %v4453 = vmax.f32 %v4449, 0.0
        %4454 = vset.pattern.permute.xlu0 60
        %4455 = vperm.xlu0 %4454, %v290
        %v4456 = vpop.permute.xlu0 %4455
        %4458 = vset.pattern.permute.xlu0 60
        %4459 = vperm.xlu0 %4458, %v291
        %v4460 = vpop.permute.xlu0 %4459
        %4462 = vset.pattern.permute.xlu0 60
        %4463 = vperm.xlu0 %4462, %v292
        %v4464 = vpop.permute.xlu0 %4463
        %4466 = vset.pattern.permute.xlu0 60
        %4467 = vperm.xlu0 %4466, %v293
        %v4468 = vpop.permute.xlu0 %4467
        %v4470 = vmul.f32 %v4450, %v4456
        %v4471 = vmul.f32 %v4451, %v4460
        %v4472 = vmul.f32 %v4452, %v4464
        %v4473 = vmul.f32 %v4453, %v4468
        %v4474 = vadd.f32 %v4406, %v4470
        %v4475 = vadd.f32 %v4407, %v4471
        %v4476 = vadd.f32 %v4408, %v4472
        %v4477 = vadd.f32 %v4409, %v4473
        %4478 = vset.pattern.permute.xlu0 61
        %4479 = vperm.xlu0 %4478, %v238
        %v4480 = vpop.permute.xlu0 %4479
        %4482 = vset.pattern.permute.xlu0 61
        %4483 = vperm.xlu0 %4482, %v239
        %v4484 = vpop.permute.xlu0 %4483
        %4486 = vset.pattern.permute.xlu0 61
        %4487 = vperm.xlu0 %4486, %v240
        %v4488 = vpop.permute.xlu0 %4487
        %4490 = vset.pattern.permute.xlu0 61
        %4491 = vperm.xlu0 %4490, %v241
        %v4492 = vpop.permute.xlu0 %4491
        %v4494 = vmul.f32 %v2482, %v4480
        %v4495 = vmul.f32 %v2483, %v4484
        %v4496 = vmul.f32 %v2484, %v4488
        %v4497 = vmul.f32 %v2485, %v4492
        %4498 = vset.pattern.permute.xlu0 125
        %4499 = vperm.xlu0 %4498, %v238
        %v4500 = vpop.permute.xlu0 %4499
        %4502 = vset.pattern.permute.xlu0 125
        %4503 = vperm.xlu0 %4502, %v239
        %v4504 = vpop.permute.xlu0 %4503
        %4506 = vset.pattern.permute.xlu0 125
        %4507 = vperm.xlu0 %4506, %v240
        %v4508 = vpop.permute.xlu0 %4507
        %4510 = vset.pattern.permute.xlu0 125
        %4511 = vperm.xlu0 %4510, %v241
        %v4512 = vpop.permute.xlu0 %4511
        %v4514 = vadd.f32 %v4494, %v4500
        %v4515 = vadd.f32 %v4495, %v4504
        %v4516 = vadd.f32 %v4496, %v4508
        %v4517 = vadd.f32 %v4497, %v4512
        %v4518 = vmax.f32 %v4514, 0.0
        %v4519 = vmax.f32 %v4515, 0.0
        %v4520 = vmax.f32 %v4516, 0.0
        %v4521 = vmax.f32 %v4517, 0.0
        %4522 = vset.pattern.permute.xlu0 61
        %4523 = vperm.xlu0 %4522, %v290
        %v4524 = vpop.permute.xlu0 %4523
        %4526 = vset.pattern.permute.xlu0 61
        %4527 = vperm.xlu0 %4526, %v291
        %v4528 = vpop.permute.xlu0 %4527
        %4530 = vset.pattern.permute.xlu0 61
        %4531 = vperm.xlu0 %4530, %v292
        %v4532 = vpop.permute.xlu0 %4531
        %4534 = vset.pattern.permute.xlu0 61
        %4535 = vperm.xlu0 %4534, %v293
        %v4536 = vpop.permute.xlu0 %4535
        %v4538 = vmul.f32 %v4518, %v4524
        %v4539 = vmul.f32 %v4519, %v4528
        %v4540 = vmul.f32 %v4520, %v4532
        %v4541 = vmul.f32 %v4521, %v4536
        %v4542 = vadd.f32 %v4474, %v4538
        %v4543 = vadd.f32 %v4475, %v4539
        %v4544 = vadd.f32 %v4476, %v4540
        %v4545 = vadd.f32 %v4477, %v4541
        %4546 = vset.pattern.permute.xlu0 62
        %4547 = vperm.xlu0 %4546, %v238
        %v4548 = vpop.permute.xlu0 %4547
        %4550 = vset.pattern.permute.xlu0 62
        %4551 = vperm.xlu0 %4550, %v239
        %v4552 = vpop.permute.xlu0 %4551
        %4554 = vset.pattern.permute.xlu0 62
        %4555 = vperm.xlu0 %4554, %v240
        %v4556 = vpop.permute.xlu0 %4555
        %4558 = vset.pattern.permute.xlu0 62
        %4559 = vperm.xlu0 %4558, %v241
        %v4560 = vpop.permute.xlu0 %4559
        %v4562 = vmul.f32 %v2482, %v4548
        %v4563 = vmul.f32 %v2483, %v4552
        %v4564 = vmul.f32 %v2484, %v4556
        %v4565 = vmul.f32 %v2485, %v4560
        %4566 = vset.pattern.permute.xlu0 126
        %4567 = vperm.xlu0 %4566, %v238
        %v4568 = vpop.permute.xlu0 %4567
        %4570 = vset.pattern.permute.xlu0 126
        %4571 = vperm.xlu0 %4570, %v239
        %v4572 = vpop.permute.xlu0 %4571
        %4574 = vset.pattern.permute.xlu0 126
        %4575 = vperm.xlu0 %4574, %v240
        %v4576 = vpop.permute.xlu0 %4575
        %4578 = vset.pattern.permute.xlu0 126
        %4579 = vperm.xlu0 %4578, %v241
        %v4580 = vpop.permute.xlu0 %4579
        %v4582 = vadd.f32 %v4562, %v4568
        %v4583 = vadd.f32 %v4563, %v4572
        %v4584 = vadd.f32 %v4564, %v4576
        %v4585 = vadd.f32 %v4565, %v4580
        %v4586 = vmax.f32 %v4582, 0.0
        %v4587 = vmax.f32 %v4583, 0.0
        %v4588 = vmax.f32 %v4584, 0.0
        %v4589 = vmax.f32 %v4585, 0.0
        %4590 = vset.pattern.permute.xlu0 62
        %4591 = vperm.xlu0 %4590, %v290
        %v4592 = vpop.permute.xlu0 %4591
        %4594 = vset.pattern.permute.xlu0 62
        %4595 = vperm.xlu0 %4594, %v291
        %v4596 = vpop.permute.xlu0 %4595
        %4598 = vset.pattern.permute.xlu0 62
        %4599 = vperm.xlu0 %4598, %v292
        %v4600 = vpop.permute.xlu0 %4599
        %4602 = vset.pattern.permute.xlu0 62
        %4603 = vperm.xlu0 %4602, %v293
        %v4604 = vpop.permute.xlu0 %4603
        %v4606 = vmul.f32 %v4586, %v4592
        %v4607 = vmul.f32 %v4587, %v4596
        %v4608 = vmul.f32 %v4588, %v4600
        %v4609 = vmul.f32 %v4589, %v4604
        %v4610 = vadd.f32 %v4542, %v4606
        %v4611 = vadd.f32 %v4543, %v4607
        %v4612 = vadd.f32 %v4544, %v4608
        %v4613 = vadd.f32 %v4545, %v4609
        %4614 = vset.pattern.permute.xlu0 63
        %4615 = vperm.xlu0 %4614, %v238
        %v4616 = vpop.permute.xlu0 %4615
        %4618 = vset.pattern.permute.xlu0 63
        %4619 = vperm.xlu0 %4618, %v239
        %v4620 = vpop.permute.xlu0 %4619
        %4622 = vset.pattern.permute.xlu0 63
        %4623 = vperm.xlu0 %4622, %v240
        %v4624 = vpop.permute.xlu0 %4623
        %4626 = vset.pattern.permute.xlu0 63
        %4627 = vperm.xlu0 %4626, %v241
        %v4628 = vpop.permute.xlu0 %4627
        %v4630 = vmul.f32 %v2482, %v4616
        %v4631 = vmul.f32 %v2483, %v4620
        %v4632 = vmul.f32 %v2484, %v4624
        %v4633 = vmul.f32 %v2485, %v4628
        %4634 = vset.pattern.permute.xlu0 127
        %4635 = vperm.xlu0 %4634, %v238
        %v4636 = vpop.permute.xlu0 %4635
        %4638 = vset.pattern.permute.xlu0 127
        %4639 = vperm.xlu0 %4638, %v239
        %v4640 = vpop.permute.xlu0 %4639
        %4642 = vset.pattern.permute.xlu0 127
        %4643 = vperm.xlu0 %4642, %v240
        %v4644 = vpop.permute.xlu0 %4643
        %4646 = vset.pattern.permute.xlu0 127
        %4647 = vperm.xlu0 %4646, %v241
        %v4648 = vpop.permute.xlu0 %4647
        %v4650 = vadd.f32 %v4630, %v4636
        %v4651 = vadd.f32 %v4631, %v4640
        %v4652 = vadd.f32 %v4632, %v4644
        %v4653 = vadd.f32 %v4633, %v4648
        %v4654 = vmax.f32 %v4650, 0.0
        %v4655 = vmax.f32 %v4651, 0.0
        %v4656 = vmax.f32 %v4652, 0.0
        %v4657 = vmax.f32 %v4653, 0.0
        %4658 = vset.pattern.permute.xlu0 63
        %4659 = vperm.xlu0 %4658, %v290
        %v4660 = vpop.permute.xlu0 %4659
        %4662 = vset.pattern.permute.xlu0 63
        %4663 = vperm.xlu0 %4662, %v291
        %v4664 = vpop.permute.xlu0 %4663
        %4666 = vset.pattern.permute.xlu0 63
        %4667 = vperm.xlu0 %4666, %v292
        %v4668 = vpop.permute.xlu0 %4667
        %4670 = vset.pattern.permute.xlu0 63
        %4671 = vperm.xlu0 %4670, %v293
        %v4672 = vpop.permute.xlu0 %4671
        %v4674 = vmul.f32 %v4654, %v4660
        %v4675 = vmul.f32 %v4655, %v4664
        %v4676 = vmul.f32 %v4656, %v4668
        %v4677 = vmul.f32 %v4657, %v4672
        %v4678 = vadd.f32 %v4610, %v4674
        %v4679 = vadd.f32 %v4611, %v4675
        %v4680 = vadd.f32 %v4612, %v4676
        %v4681 = vadd.f32 %v4613, %v4677
        %4682 = vset.pattern.permute.xlu0 67
        %4683 = vperm.xlu0 %4682, %v290
        %v4684 = vpop.permute.xlu0 %4683
        %4686 = vset.pattern.permute.xlu0 67
        %4687 = vperm.xlu0 %4686, %v291
        %v4688 = vpop.permute.xlu0 %4687
        %4690 = vset.pattern.permute.xlu0 67
        %4691 = vperm.xlu0 %4690, %v292
        %v4692 = vpop.permute.xlu0 %4691
        %4694 = vset.pattern.permute.xlu0 67
        %4695 = vperm.xlu0 %4694, %v293
        %v4696 = vpop.permute.xlu0 %4695
        %v4698 = vadd.f32 %v4678, %v4684
        %v4699 = vadd.f32 %v4679, %v4688
        %v4700 = vadd.f32 %v4680, %v4692
        %v4701 = vadd.f32 %v4681, %v4696
        %v4702 = vmul.f32 %v3590, 1.442695
        %v4703 = vpow.pop %v4702
        %v4704 = vmul.f32 %v3591, 1.442695
        %v4705 = vpow.pop %v4704
        %v4706 = vmul.f32 %v3592, 1.442695
        %v4707 = vpow.pop %v4706
        %v4708 = vmul.f32 %v3593, 1.442695
        %v4709 = vpow.pop %v4708
        %v4710 = vmul.f32 %v229, %v4703
        %v4711 = vmul.f32 %v230, %v4705
        %v4712 = vmul.f32 %v231, %v4707
        %v4713 = vmul.f32 %v232, %v4709
        %v4714 = vadd.f32 %v4710, %v4698
        %v4715 = vadd.f32 %v4711, %v4699
        %v4716 = vadd.f32 %v4712, %v4700
        %v4717 = vadd.f32 %v4713, %v4701
        %4718 = vset.pattern.permute.xlu0 68
        %4719 = vperm.xlu0 %4718, %v290
        %v4720 = vpop.permute.xlu0 %4719
        %4722 = vset.pattern.permute.xlu0 68
        %4723 = vperm.xlu0 %4722, %v291
        %v4724 = vpop.permute.xlu0 %4723
        %4726 = vset.pattern.permute.xlu0 68
        %4727 = vperm.xlu0 %4726, %v292
        %v4728 = vpop.permute.xlu0 %4727
        %4730 = vset.pattern.permute.xlu0 68
        %4731 = vperm.xlu0 %4730, %v293
        %v4732 = vpop.permute.xlu0 %4731
        %v4734 = vmul.f32 %v4720, %v4714
        %v4735 = vmul.f32 %v4724, %v4715
        %v4736 = vmul.f32 %v4728, %v4716
        %v4737 = vmul.f32 %v4732, %v4717
        %4738 = vset.pattern.permute.xlu0 69
        %4739 = vperm.xlu0 %4738, %v290
        %v4740 = vpop.permute.xlu0 %4739
        %4742 = vset.pattern.permute.xlu0 69
        %4743 = vperm.xlu0 %4742, %v291
        %v4744 = vpop.permute.xlu0 %4743
        %4746 = vset.pattern.permute.xlu0 69
        %4747 = vperm.xlu0 %4746, %v292
        %v4748 = vpop.permute.xlu0 %4747
        %4750 = vset.pattern.permute.xlu0 69
        %4751 = vperm.xlu0 %4750, %v293
        %v4752 = vpop.permute.xlu0 %4751
        %v4754 = vmul.f32 %v4740, %v2482
        %v4755 = vmul.f32 %v4744, %v2483
        %v4756 = vmul.f32 %v4748, %v2484
        %v4757 = vmul.f32 %v4752, %v2485
        %v4758 = vadd.f32 %v4734, %v4754
        %v4759 = vadd.f32 %v4735, %v4755
        %v4760 = vadd.f32 %v4736, %v4756
        %v4761 = vadd.f32 %v4737, %v4757
        %4762 = vset.pattern.permute.xlu0 72
        %4763 = vperm.xlu0 %4762, %v290
        %v4764 = vpop.permute.xlu0 %4763
        %4766 = vset.pattern.permute.xlu0 72
        %4767 = vperm.xlu0 %4766, %v291
        %v4768 = vpop.permute.xlu0 %4767
        %4770 = vset.pattern.permute.xlu0 72
        %4771 = vperm.xlu0 %4770, %v292
        %v4772 = vpop.permute.xlu0 %4771
        %4774 = vset.pattern.permute.xlu0 72
        %4775 = vperm.xlu0 %4774, %v293
        %v4776 = vpop.permute.xlu0 %4775
        %v4778 = vadd.f32 %v4758, %v4764
        %v4779 = vadd.f32 %v4759, %v4768
        %v4780 = vadd.f32 %v4760, %v4772
        %v4781 = vadd.f32 %v4761, %v4776
        %4782 = vst [vmem:[%s219] sm:$0xff] %v4778
        %4783 = vst [vmem:[%s219 + $0x8] sm:$0xff] %v4779
        %4784 = vst [vmem:[%s219 + $0x10] sm:$0xff] %v4780
        %4785 = vst [vmem:[%s219 + $0x18] sm:$0xff] %v4781
        %4786 = vset.pattern.permute.xlu0 70
        %4787 = vperm.xlu0 %4786, %v290
        %v4788 = vpop.permute.xlu0 %4787
        %4790 = vset.pattern.permute.xlu0 70
        %4791 = vperm.xlu0 %4790, %v291
        %v4792 = vpop.permute.xlu0 %4791
        %4794 = vset.pattern.permute.xlu0 70
        %4795 = vperm.xlu0 %4794, %v292
        %v4796 = vpop.permute.xlu0 %4795
        %4798 = vset.pattern.permute.xlu0 70
        %4799 = vperm.xlu0 %4798, %v293
        %v4800 = vpop.permute.xlu0 %4799
        %v4802 = vmul.f32 %v4788, %v4714
        %v4803 = vmul.f32 %v4792, %v4715
        %v4804 = vmul.f32 %v4796, %v4716
        %v4805 = vmul.f32 %v4800, %v4717
        %4806 = vset.pattern.permute.xlu0 71
        %4807 = vperm.xlu0 %4806, %v290
        %v4808 = vpop.permute.xlu0 %4807
        %4810 = vset.pattern.permute.xlu0 71
        %4811 = vperm.xlu0 %4810, %v291
        %v4812 = vpop.permute.xlu0 %4811
        %4814 = vset.pattern.permute.xlu0 71
        %4815 = vperm.xlu0 %4814, %v292
        %v4816 = vpop.permute.xlu0 %4815
        %4818 = vset.pattern.permute.xlu0 71
        %4819 = vperm.xlu0 %4818, %v293
        %v4820 = vpop.permute.xlu0 %4819
        %v4822 = vmul.f32 %v4808, %v2482
        %v4823 = vmul.f32 %v4812, %v2483
        %v4824 = vmul.f32 %v4816, %v2484
        %v4825 = vmul.f32 %v4820, %v2485
        %v4826 = vadd.f32 %v4802, %v4822
        %v4827 = vadd.f32 %v4803, %v4823
        %v4828 = vadd.f32 %v4804, %v4824
        %v4829 = vadd.f32 %v4805, %v4825
        %4830 = vset.pattern.permute.xlu0 73
        %4831 = vperm.xlu0 %4830, %v290
        %v4832 = vpop.permute.xlu0 %4831
        %4834 = vset.pattern.permute.xlu0 73
        %4835 = vperm.xlu0 %4834, %v291
        %v4836 = vpop.permute.xlu0 %4835
        %4838 = vset.pattern.permute.xlu0 73
        %4839 = vperm.xlu0 %4838, %v292
        %v4840 = vpop.permute.xlu0 %4839
        %4842 = vset.pattern.permute.xlu0 73
        %4843 = vperm.xlu0 %4842, %v293
        %v4844 = vpop.permute.xlu0 %4843
        %v4846 = vadd.f32 %v4826, %v4832
        %v4847 = vadd.f32 %v4827, %v4836
        %v4848 = vadd.f32 %v4828, %v4840
        %v4849 = vadd.f32 %v4829, %v4844
        %s4850 = scalar_lea.vmem %s219, 32 [#allocation3]
        %4851 = vst [vmem:[%s4850] sm:$0xff] %v4846
        %4852 = vst [vmem:[%s4850 + $0x8] sm:$0xff] %v4847
        %4853 = vst [vmem:[%s4850 + $0x10] sm:$0xff] %v4848
        %4854 = vst [vmem:[%s4850 + $0x18] sm:$0xff] %v4849
        %s4855 = sand.u32 %s73, 1
        %s4856 = sand.u32 %s73, 1
        %s4857 = smul.addr %s4856, 64
        %s4858 = scalar_lea.vmem [#allocation3], %s4857
        // Predicated region
        $region67: #{coordinate_transform.1} parent=61 // pred_check
          %p4859 = pneg %p83
        $region68: #{coordinate_transform.1} parent=61 // pred_check_branch
          %4861 = sbr.rel (%p4859) target = $region70
        $region69: #{coordinate_transform.1} parent=61 // pred_region
          %s4862 = smul.u32 4, %s13
          %s4863 = smul.addr %s4862, 8
          %s4864 = scalar_lea.vmem %s2, %s4863
          // Predicated region
          $region71: #{coordinate_transform.1} parent=69 // pred_check
            _
          $region72: #{coordinate_transform.1} parent=69 // pred_check_branch
            %4866 = sbr.rel (0) target = $region74
          $region73: #{coordinate_transform.1} parent=69 // pred_region
            // Predicated region
            $region75: #{coordinate_transform.1} parent=73 // pred_check
              _
            $region76: #{coordinate_transform.1} parent=73 // pred_check_branch
              %4868 = sbr.rel (0) target = $region78
            $region77: #{coordinate_transform.1} parent=73 // pred_region
              // Predicated region
              $region90: #{coordinate_transform.1} parent=77 // pred_check
                _
              $region91: #{coordinate_transform.1} parent=77 // pred_check_branch
                %4898 = sbr.rel (0) target = $region93
              $region92: #{coordinate_transform.1} parent=77 // pred_region
                loop: start=0, step=1, limit=1
                $region94: #{coordinate_transform.1} parent=92 // loop_pre_header
                  _
                $region95: #{coordinate_transform.1} parent=92 // loop_header
                  %s4900 = sphi 0, %s4904
                  %p4901 = scmp.ge.s32.totalorder %s4900, 1
                  %s4905 = sphi %s4858, %s4858
                  %s4906 = sphi %s4864, %s4864
                $region96: #{coordinate_transform.1} parent=92 // loop_header_branch
                  %4903 = sbr.rel (%p4901) target = $region100
                $region97: #{coordinate_transform.1} parent=92 // loop_body
                  %v4907 = vld [vmem:[%s4905] sm:$0xff]
                  %4908 = vst [vmem:[%s4906] sm:$0xff] %v4907
                  %v4909 = vld [vmem:[%s4905 + $0x8] sm:$0xff]
                  %4910 = vst [vmem:[%s4906 + $0x8] sm:$0xff] %v4909
                  %v4911 = vld [vmem:[%s4905 + $0x10] sm:$0xff]
                  %4912 = vst [vmem:[%s4906 + $0x10] sm:$0xff] %v4911
                  %v4913 = vld [vmem:[%s4905 + $0x18] sm:$0xff]
                  %4914 = vst [vmem:[%s4906 + $0x18] sm:$0xff] %v4913
                  %v4915 = vld [vmem:[%s4905 + $0x20] sm:$0xff]
                  %4916 = vst [vmem:[%s4906 + $0x40] sm:$0xff] %v4915
                  %v4917 = vld [vmem:[%s4905 + $0x28] sm:$0xff]
                  %4918 = vst [vmem:[%s4906 + $0x48] sm:$0xff] %v4917
                  %v4919 = vld [vmem:[%s4905 + $0x30] sm:$0xff]
                  %4920 = vst [vmem:[%s4906 + $0x50] sm:$0xff] %v4919
                  %v4921 = vld [vmem:[%s4905 + $0x38] sm:$0xff]
                  %4922 = vst [vmem:[%s4906 + $0x58] sm:$0xff] %v4921
                $region98: #{coordinate_transform.1} parent=92 // loop_footer
                  %s4904 = sadd.s32 1, %s4900
                $region99: #{coordinate_transform.1} parent=92 // loop_footer_branch
                  %4899 = sbr.rel target = $region95
                $region100: #{coordinate_transform.1} parent=92 // loop_exit
                  _
              $region93: #{coordinate_transform.1} parent=77 // pred_fallthru
                _
              // Predicated region
              $region101: #{coordinate_transform.1} parent=77 // pred_check
                _
              $region102: #{coordinate_transform.1} parent=77 // pred_check_branch
                %4924 = sbr.rel target = $region104
              $region103: #{coordinate_transform.1} parent=77 // pred_region
                _
              $region104: #{coordinate_transform.1} parent=77 // pred_fallthru
                _
            $region78: #{coordinate_transform.1} parent=73 // pred_fallthru
              _
            // Predicated region
            $region79: #{coordinate_transform.1} parent=73 // pred_check
              _
            $region80: #{coordinate_transform.1} parent=73 // pred_check_branch
              %4870 = sbr.rel target = $region82
            $region81: #{coordinate_transform.1} parent=73 // pred_region
              %s4872 = ssub.s32 256, 1
              loop: start=0, step=1, limit=1
              $region83: #{coordinate_transform.1} parent=81 // loop_pre_header
                _
              $region84: #{coordinate_transform.1} parent=81 // loop_header
                %s4874 = sphi 0, %s4878
                %p4875 = scmp.ge.s32.totalorder %s4874, 1
                %s4879 = sphi %s4858, %s4858
                %s4880 = sphi %s4864, %s4864
              $region85: #{coordinate_transform.1} parent=81 // loop_header_branch
                %4877 = sbr.rel (%p4875) target = $region89
              $region86: #{coordinate_transform.1} parent=81 // loop_body
                %v4881 = vld [vmem:[%s4879] sm:%s4872]
                %4882 = vst [vmem:[%s4880] sm:%s4872] %v4881
                %v4883 = vld [vmem:[%s4879 + $0x8] sm:%s4872]
                %4884 = vst [vmem:[%s4880 + $0x8] sm:%s4872] %v4883
                %v4885 = vld [vmem:[%s4879 + $0x10] sm:%s4872]
                %4886 = vst [vmem:[%s4880 + $0x10] sm:%s4872] %v4885
                %v4887 = vld [vmem:[%s4879 + $0x18] sm:%s4872]
                %4888 = vst [vmem:[%s4880 + $0x18] sm:%s4872] %v4887
                %v4889 = vld [vmem:[%s4879 + $0x20] sm:%s4872]
                %4890 = vst [vmem:[%s4880 + $0x40] sm:%s4872] %v4889
                %v4891 = vld [vmem:[%s4879 + $0x28] sm:%s4872]
                %4892 = vst [vmem:[%s4880 + $0x48] sm:%s4872] %v4891
                %v4893 = vld [vmem:[%s4879 + $0x30] sm:%s4872]
                %4894 = vst [vmem:[%s4880 + $0x50] sm:%s4872] %v4893
                %v4895 = vld [vmem:[%s4879 + $0x38] sm:%s4872]
                %4896 = vst [vmem:[%s4880 + $0x58] sm:%s4872] %v4895
              $region87: #{coordinate_transform.1} parent=81 // loop_footer
                %s4878 = sadd.s32 1, %s4874
              $region88: #{coordinate_transform.1} parent=81 // loop_footer_branch
                %4873 = sbr.rel target = $region84
              $region89: #{coordinate_transform.1} parent=81 // loop_exit
                _
            $region82: #{coordinate_transform.1} parent=73 // pred_fallthru
              _
          $region74: #{coordinate_transform.1} parent=69 // pred_fallthru
            _
          %4925 = vnop
        $region70: #{coordinate_transform.1} parent=61 // pred_fallthru
          _
      $region62: #{coordinate_transform.1} parent=5 // pred_fallthru
        _
      %p4926 = scmp.le.s32.totalorder 2, %s8
      // Predicated region
      $region105: #{coordinate_transform.1} parent=5 // pred_check
        %p4927 = pneg %p4926
      $region106: #{coordinate_transform.1} parent=5 // pred_check_branch
        %4929 = sbr.rel (%p4927) target = $region108
      $region107: #{coordinate_transform.1} parent=5 // pred_region
        %s4930 = ssub.s32 %s8, 2
        // Predicated region
        $region109: #{coordinate_transform.1} parent=107 // pred_check
          %p4931 = pneg %p89
        $region110: #{coordinate_transform.1} parent=107 // pred_check_branch
          %4933 = sbr.rel (%p4931) target = $region112
        $region111: #{coordinate_transform.1} parent=107 // pred_region
          %s4934 = sand.u32 %s74, 1
          %s4935 = sand.u32 %s74, 1
          %s4936 = smul.addr %s4935, 64
          %s4937 = scalar_lea.vmem [#allocation3], %s4936
        $region112: #{coordinate_transform.1} parent=107 // pred_fallthru
          _
      $region108: #{coordinate_transform.1} parent=5 // pred_fallthru
        _
    $region6: #{coordinate_transform.1} parent=1 // loop_footer
      %s12 = sadd.s32 1, %s8
    $region7: #{coordinate_transform.1} parent=1 // loop_footer_branch
      %7 = sbr.rel target = $region3
    $region8: #{coordinate_transform.1} parent=1 // loop_exit
      _

</llo_original>
